<compile_context>
chip_gen: v7x
topology: tpu7x:2x2x1
jax: 0.10.0
libtpu: 0.0.40
codegen_flags: <defaults>
</compile_context>

<pallas_src>
import jax
import jax.numpy as jnp
from jax.experimental import pallas as pl
from jax.experimental.pallas import tpu as pltpu


# ----------------------------------------------------------------------------
# Fixed operand orderings (graphs / per-layer packed params)
# ----------------------------------------------------------------------------

GRAPH_NAMES = (
    "centerFace", "facePoint", "pointCenter",
    "pp0", "pp1", "pp2", "pp3",
    "pool01", "pool12", "pool23",
    "unpool32", "unpool21", "unpool10",
)

LAYER_NAMES = (
    "c1_cf", "c1_fp", "c1_pp",
    "c2_l1", "c2_l2", "c3_l1", "c3_l2",
    "c4_l1", "c4_l2", "c4_l3", "c4_l4",
    "c7_l1", "c7_l2", "c8_l1", "c8_l2",
    "c9_l1", "c9_l2", "final",
)

# Layers whose input is torch.cat([x1, x2], dim=-1); value = channels of x1.
CAT_SPLITS = {"c1_fp": 28, "c7_l1": 64, "c8_l1": 64, "c9_l1": 32}


# ----------------------------------------------------------------------------
# Weight folding (batch -> block-diagonal) and bf16 packing
# ----------------------------------------------------------------------------

def _fold(w, batch):
    """(cin, cout) -> (B*cin, B*cout) block-diagonal: batch b maps to batch b."""
    return jnp.kron(jnp.eye(batch, dtype=w.dtype), w)


def _pack_layer_bf16(pieces):
    """Row-stack a layer's (already folded) pieces in bf16 at 16-aligned offsets."""
    chunks, layout, off = [], {}, 0
    for name, arr in pieces.items():
        r = arr.shape[0]
        layout[name] = (off, r)
        pad = (-r) % 16                       # bf16 sublane tile alignment
        if pad:
            arr = jnp.pad(arr, ((0, pad), (0, 0)))
        chunks.append(arr.astype(jnp.bfloat16))
        off += r + pad
    return jnp.concatenate(chunks, axis=0), layout


def fold_pack_params(params, batch):
    """Fold per-batch block-diag weights, tile biases, pack per layer (bf16)."""
    packed, layouts = {}, {}
    for lname, pieces in params.items():
        split = CAT_SPLITS.get(lname)
        folded = {}
        for pname, arr in pieces.items():
            if pname == "b":
                folded[pname] = jnp.tile(arr, (1, batch))          # (1, B*cout)
            elif split is None:
                folded[pname] = _fold(arr, batch)                  # (B*cin, B*cout)
            else:                                                  # concat layer
                folded[pname] = jnp.concatenate(
                    [_fold(arr[:split], batch), _fold(arr[split:], batch)], axis=0)
        packed[lname], layouts[lname] = _pack_layer_bf16(folded)
    return packed, layouts


# ----------------------------------------------------------------------------
# Fused forward kernel (single invocation, no grid; everything VMEM-resident)
# ----------------------------------------------------------------------------

def build_kernel(layouts):
    n_g, n_p = len(GRAPH_NAMES), len(LAYER_NAMES)
    bf16 = jnp.bfloat16

    def kernel(xc_ref, xf_ref, *refs):
        g = dict(zip(GRAPH_NAMES, refs[:n_g]))
        p = dict(zip(LAYER_NAMES, refs[n_g:n_g + n_p]))
        out_ref = refs[n_g + n_p]

        def piece(layer, name):                       # bf16 weight piece (pre-folded)
            off, r = layouts[layer][name]
            return p[layer][off:off + r, :]

        def adj(name):                                # bf16 adjacency
            return g[name][...]

        def mm(a, b):                                 # bf16 MXU matmul, f32 accum
            return jnp.dot(a.astype(bf16), b, preferred_element_type=jnp.float32)

        def inorm(x):                                 # InstanceNorm1d(affine=False)
            # Statistics over the node axis per lane == per (sample, channel).
            inv_n = 1.0 / x.shape[0]
            s1 = jnp.sum(x, axis=0, keepdims=True)
            s2 = jnp.sum(x * x, axis=0, keepdims=True)
            mu = s1 * inv_n
            var = jnp.maximum(s2 * inv_n - mu * mu, 0.0)
            return (x - mu) * jax.lax.rsqrt(var + 1e-5)

        def pp_core(aname, xb, layer):                # CustomGraphConvPointPoint
            acc = mm(mm(adj(aname), xb), piece(layer, "Wn"))
            acc = acc + mm(xb, piece(layer, "Ws"))
            acc = acc + piece(layer, "b").astype(jnp.float32)
            return jnp.maximum(acc, 0.0)

        def pp(aname, x, layer):
            return pp_core(aname, x.astype(bf16), layer)

        def pp_cat(aname, x1, x2, layer):             # pp conv on concat([x1, x2])
            # NOTE: f32 lane-concat, single cast; stacked folded weights make this
            # 3 matmuls instead of 6.  (Fallback if a Mosaic build rejects
            # unaligned minor-dim concat: split-weight form as in v1.)
            xcat = jnp.concatenate([x1, x2], axis=-1).astype(bf16)
            return pp_core(aname, xcat, layer)

        def bip_core(aname, xb, layer):               # CustomGraphConv (bipartite)
            acc = mm(mm(adj(aname), xb), piece(layer, "W"))
            acc = acc + piece(layer, "b").astype(jnp.float32)
            return jnp.maximum(acc, 0.0)

        def bip(aname, x, layer):
            return bip_core(aname, x.astype(bf16), layer)

        # ----- forward (mirrors GraphUNetFullScaleLessLayers.forward) -----
        xc = inorm(xc_ref[...])                       # inInputCellCenters (Nc, B*2)
        xf = inorm(xf_ref[...])                       # inInputFace        (Nf, B*4)

        # convN_1
        h_cf = bip("centerFace", xc, "c1_cf")         # (Nf, B*28)
        cat1 = jnp.concatenate([h_cf, xf], axis=-1).astype(bf16)   # (Nf, B*32)
        h = bip_core("facePoint", cat1, "c1_fp")      # (N0, B*32)
        c1 = inorm(pp("pp0", h, "c1_pp"))             # in1 (N0, B*32)

        # convN_2
        xp = mm(adj("pool01"), c1.astype(bf16))       # pooling (N1, B*32)
        c2 = inorm(pp("pp1", pp("pp1", xp, "c2_l1"), "c2_l2"))     # in2

        # convN_3
        xp = mm(adj("pool12"), c2.astype(bf16))       # (N2, B*32)
        c3 = inorm(pp("pp2", pp("pp2", xp, "c3_l1"), "c3_l2"))     # in3

        # convN_4 (less layers)
        xp = mm(adj("pool23"), c3.astype(bf16))       # (N3, B*32)
        h = pp("pp3", xp, "c4_l1")                    # (N3, B*64)
        h = pp("pp3", h, "c4_l2")
        h = pp("pp3", h, "c4_l3")
        h = pp("pp3", h, "c4_l4")
        c4 = inorm(mm(adj("unpool32"), h.astype(bf16)))            # in4 (N2, B*64)

        # convN_7  (input = concat(c4, c3), 96 ch)
        h = pp_cat("pp2", c4, c3, "c7_l1")            # (N2, B*64)
        h = pp("pp2", h, "c7_l2")
        c7 = inorm(mm(adj("unpool21"), h.astype(bf16)))            # in7 (N1, B*64)

        # convN_8  (input = concat(c7, c2), 96 ch)
        h = pp_cat("pp1", c7, c2, "c8_l1")            # (N1, B*32)
        h = pp("pp1", h, "c8_l2")
        c8 = inorm(mm(adj("unpool10"), h.astype(bf16)))            # in8 (N0, B*32)

        # convN_9  (input = concat(c8, c1), 64 ch)
        h = pp_cat("pp0", c8, c1, "c9_l1")            # (N0, B*32)
        c9 = bip("pointCenter", h, "c9_l2")           # (Nc, B*32)

        # final (_ConvBlock10 / SelfLoopLayer 32 -> 1, no norm / activation):
        # folded (B*32, B) weight reduces channels and separates batches at once.
        out = mm(c9, piece("final", "W")) + piece("final", "b").astype(jnp.float32)
        out_ref[...] = out                            # (Nc, B)

    return kernel


def _fold_batch(x):
    """(B, N, C) -> (N, B*C), lane index = b*C + c (batch-major groups)."""
    b, n, c = x.shape
    return jnp.transpose(x, (1, 0, 2)).reshape(n, b * c)


def graph_unet_forward(graphs, packed_params, layouts, x_cell, x_face):
    b, n_cells, _ = x_cell.shape

    xc_f = _fold_batch(x_cell)                        # (Nc, B*2)
    xf_f = _fold_batch(x_face)                        # (Nf, B*4)

    graph_list = [graphs[n] for n in GRAPH_NAMES]
    param_list = [packed_params[n] for n in LAYER_NAMES]
    operands = [xc_f, xf_f] + graph_list + param_list

    # Explicit scoped-VMEM budget: operands + output + activation headroom.
    total_bytes = sum(int(a.size) * a.dtype.itemsize for a in operands)
    total_bytes += n_cells * b * 4
    vmem_limit = int(min(64 * (1 << 20), max(4 * total_bytes, 8 * (1 << 20))))

    vmem = pltpu.MemorySpace.VMEM
    out = pl.pallas_call(
        build_kernel(layouts),
        out_shape=jax.ShapeDtypeStruct((n_cells, b), jnp.float32),
        in_specs=[pl.BlockSpec(memory_space=vmem) for _ in operands],
        out_specs=pl.BlockSpec(memory_space=vmem),
        compiler_params=pltpu.CompilerParams(vmem_limit_bytes=vmem_limit),
    )(*operands)

    # (Nc, B) -> (B, Nc, 1) to match the PyTorch module's output layout.
    return jnp.transpose(out)[:, :, None]


# ----------------------------------------------------------------------------
# Deterministic parameter / graph construction
# ----------------------------------------------------------------------------

def _key_stream(key):
    while True:
        key, sub = jax.random.split(key)
        yield sub


def _mat(key, r, c, scale):
    return jax.random.normal(key, (r, c), jnp.float32) * scale


def make_params(key):
    """Base (unfolded, PyTorch-shaped) parameters."""
    ks = _key_stream(key)

    def lin(cin, cout):                               # CustomGraphConv / SelfLoop
        s = float(cin) ** -0.5
        return {"W": _mat(next(ks), cin, cout, s),
                "b": _mat(next(ks), 1, cout, 0.01)}

    def pp_layer(cin, cout):                          # CustomGraphConvPointPoint
        s = float(cin) ** -0.5
        return {"Wn": _mat(next(ks), cin, cout, s),
                "Ws": _mat(next(ks), cin, cout, s),
                "b": _mat(next(ks), 1, cout, 0.01)}

    return {
        "c1_cf": lin(2, 28),                          # _ConvBlock1.layerCenterFace
        "c1_fp": lin(32, 32),                         # _ConvBlock1.layerFacePoint (cat in)
        "c1_pp": pp_layer(32, 32),                    # _ConvBlock1.layerPointPoint
        "c2_l1": pp_layer(32, 32), "c2_l2": pp_layer(32, 32),
        "c3_l1": pp_layer(32, 32), "c3_l2": pp_layer(32, 32),
        "c4_l1": pp_layer(32, 64), "c4_l2": pp_layer(64, 64),
        "c4_l3": pp_layer(64, 64), "c4_l4": pp_layer(64, 64),
        "c7_l1": pp_layer(96, 64), "c7_l2": pp_layer(64, 64),
        "c8_l1": pp_layer(96, 32), "c8_l2": pp_layer(32, 32),
        "c9_l1": pp_layer(64, 32), "c9_l2": lin(32, 32),
        "final": {"W": _mat(next(ks), 32, 1, 32.0 ** -0.5),
                  "b": jnp.zeros((1, 1), jnp.float32)},
    }


def _adjacency(key, n_dst, n_src):
    """Dense weighted adjacency (row-normalized), standing in for edge_index/attr."""
    kw, km = jax.random.split(key)
    w = jax.random.uniform(kw, (n_dst, n_src), jnp.float32)
    mask = (jax.random.uniform(km, (n_dst, n_src), jnp.float32) < 0.3)
    a = w * mask.astype(jnp.float32)
    a = a / (jnp.sum(a, axis=1, keepdims=True) + 1e-6)
    return a.astype(jnp.bfloat16)


def make_graphs(key, n_cells, n_faces, n0, n1, n2, n3):
    ks = _key_stream(key)
    shapes = {
        "centerFace": (n_faces, n_cells), "facePoint": (n0, n_faces),
        "pointCenter": (n_cells, n0),
        "pp0": (n0, n0), "pp1": (n1, n1), "pp2": (n2, n2), "pp3": (n3, n3),
        "pool01": (n1, n0), "pool12": (n2, n1), "pool23": (n3, n2),
        "unpool32": (n2, n3), "unpool21": (n1, n2), "unpool10": (n0, n1),
    }
    return {name: _adjacency(next(ks), d, s) for name, (d, s) in shapes.items()}


# ----------------------------------------------------------------------------
# Main
# ----------------------------------------------------------------------------

if __name__ == "__main__":
    B = 2
    N_CELLS, N_FACES = 32, 48
    N0, N1, N2, N3 = 64, 32, 16, 8

    root = jax.random.PRNGKey(0)
    k_params, k_graphs, k_xc, k_xf = jax.random.split(root, 4)

    params = make_params(k_params)
    packed_params, layouts = fold_pack_params(params, B)   # folded for this B
    graphs = make_graphs(k_graphs, N_CELLS, N_FACES, N0, N1, N2, N3)

    x_cell_centers = jax.random.normal(k_xc, (B, N_CELLS, 2), jnp.float32)
    x_face = jax.random.normal(k_xf, (B, N_FACES, 4), jnp.float32)

    out = graph_unet_forward(graphs, packed_params, layouts, x_cell_centers, x_face)
    out = jax.block_until_ready(out)

    assert out.shape == (B, N_CELLS, 1), out.shape
    assert bool(jnp.all(jnp.isfinite(out)))
    print("KERNEL_OK")
</pallas_src>

<mosaic_0001>
module attributes {stable_mosaic.version = 11 : i64} {
  func.func @kernel(%arg0: memref<32x4xf32, #tpu.memory_space<vmem>>, %arg1: memref<48x8xf32, #tpu.memory_space<vmem>>, %arg2: memref<48x32xbf16, #tpu.memory_space<vmem>>, %arg3: memref<64x48xbf16, #tpu.memory_space<vmem>>, %arg4: memref<32x64xbf16, #tpu.memory_space<vmem>>, %arg5: memref<64x64xbf16, #tpu.memory_space<vmem>>, %arg6: memref<32x32xbf16, #tpu.memory_space<vmem>>, %arg7: memref<16x16xbf16, #tpu.memory_space<vmem>>, %arg8: memref<8x8xbf16, #tpu.memory_space<vmem>>, %arg9: memref<32x64xbf16, #tpu.memory_space<vmem>>, %arg10: memref<16x32xbf16, #tpu.memory_space<vmem>>, %arg11: memref<8x16xbf16, #tpu.memory_space<vmem>>, %arg12: memref<16x8xbf16, #tpu.memory_space<vmem>>, %arg13: memref<32x16xbf16, #tpu.memory_space<vmem>>, %arg14: memref<64x32xbf16, #tpu.memory_space<vmem>>, %arg15: memref<32x56xbf16, #tpu.memory_space<vmem>>, %arg16: memref<80x64xbf16, #tpu.memory_space<vmem>>, %arg17: memref<144x64xbf16, #tpu.memory_space<vmem>>, %arg18: memref<144x64xbf16, #tpu.memory_space<vmem>>, %arg19: memref<144x64xbf16, #tpu.memory_space<vmem>>, %arg20: memref<144x64xbf16, #tpu.memory_space<vmem>>, %arg21: memref<144x64xbf16, #tpu.memory_space<vmem>>, %arg22: memref<144x128xbf16, #tpu.memory_space<vmem>>, %arg23: memref<272x128xbf16, #tpu.memory_space<vmem>>, %arg24: memref<272x128xbf16, #tpu.memory_space<vmem>>, %arg25: memref<272x128xbf16, #tpu.memory_space<vmem>>, %arg26: memref<400x128xbf16, #tpu.memory_space<vmem>>, %arg27: memref<272x128xbf16, #tpu.memory_space<vmem>>, %arg28: memref<400x64xbf16, #tpu.memory_space<vmem>>, %arg29: memref<144x64xbf16, #tpu.memory_space<vmem>>, %arg30: memref<272x64xbf16, #tpu.memory_space<vmem>>, %arg31: memref<80x64xbf16, #tpu.memory_space<vmem>>, %arg32: memref<80x2xbf16, #tpu.memory_space<vmem>>, %arg33: memref<32x2xf32, #tpu.memory_space<vmem>>) attributes {dimension_semantics = [], scalar_prefetch = 0 : i64, scratch_operands = 0 : i64, tpu.core_type = #tpu.core_type<tc>} {
    %c0 = arith.constant 0 : index
    %c0_0 = arith.constant 0 : index
    %0 = vector.load %arg0[%c0, %c0_0] : memref<32x4xf32, #tpu.memory_space<vmem>>, vector<32x4xf32>
    %cst = arith.constant dense<0.000000e+00> : vector<4xf32>
    %1 = vector.multi_reduction <add>, %0, %cst [0] : vector<32x4xf32> to vector<4xf32>
    %2 = vector.shape_cast %1 : vector<4xf32> to vector<1x4xf32>
    %3 = arith.mulf %0, %0 : vector<32x4xf32>
    %cst_1 = arith.constant dense<0.000000e+00> : vector<4xf32>
    %4 = vector.multi_reduction <add>, %3, %cst_1 [0] : vector<32x4xf32> to vector<4xf32>
    %5 = vector.shape_cast %4 : vector<4xf32> to vector<1x4xf32>
    %cst_2 = arith.constant 3.125000e-02 : f32
    %6 = vector.broadcast %cst_2 : f32 to vector<1x4xf32>
    %7 = arith.mulf %2, %6 : vector<1x4xf32>
    %cst_3 = arith.constant 3.125000e-02 : f32
    %8 = vector.broadcast %cst_3 : f32 to vector<1x4xf32>
    %9 = arith.mulf %5, %8 : vector<1x4xf32>
    %10 = arith.mulf %7, %7 : vector<1x4xf32>
    %11 = arith.subf %9, %10 : vector<1x4xf32>
    %cst_4 = arith.constant 0.000000e+00 : f32
    %12 = vector.broadcast %cst_4 : f32 to vector<1x4xf32>
    %13 = arith.maximumf %11, %12 : vector<1x4xf32>
    %14 = vector.broadcast %7 : vector<1x4xf32> to vector<32x4xf32>
    %15 = arith.subf %0, %14 : vector<32x4xf32>
    %cst_5 = arith.constant 9.99999974E-6 : f32
    %16 = vector.broadcast %cst_5 : f32 to vector<1x4xf32>
    %17 = arith.addf %13, %16 : vector<1x4xf32>
    %18 = math.rsqrt %17 : vector<1x4xf32>
    %19 = vector.broadcast %18 : vector<1x4xf32> to vector<32x4xf32>
    %20 = arith.mulf %15, %19 : vector<32x4xf32>
    %c0_6 = arith.constant 0 : index
    %c0_7 = arith.constant 0 : index
    %21 = vector.load %arg1[%c0_6, %c0_7] : memref<48x8xf32, #tpu.memory_space<vmem>>, vector<48x8xf32>
    %cst_8 = arith.constant dense<0.000000e+00> : vector<8xf32>
    %22 = vector.multi_reduction <add>, %21, %cst_8 [0] : vector<48x8xf32> to vector<8xf32>
    %23 = vector.shape_cast %22 : vector<8xf32> to vector<1x8xf32>
    %24 = arith.mulf %21, %21 : vector<48x8xf32>
    %cst_9 = arith.constant dense<0.000000e+00> : vector<8xf32>
    %25 = vector.multi_reduction <add>, %24, %cst_9 [0] : vector<48x8xf32> to vector<8xf32>
    %26 = vector.shape_cast %25 : vector<8xf32> to vector<1x8xf32>
    %cst_10 = arith.constant 0.020833334 : f32
    %27 = vector.broadcast %cst_10 : f32 to vector<1x8xf32>
    %28 = arith.mulf %23, %27 : vector<1x8xf32>
    %cst_11 = arith.constant 0.020833334 : f32
    %29 = vector.broadcast %cst_11 : f32 to vector<1x8xf32>
    %30 = arith.mulf %26, %29 : vector<1x8xf32>
    %31 = arith.mulf %28, %28 : vector<1x8xf32>
    %32 = arith.subf %30, %31 : vector<1x8xf32>
    %cst_12 = arith.constant 0.000000e+00 : f32
    %33 = vector.broadcast %cst_12 : f32 to vector<1x8xf32>
    %34 = arith.maximumf %32, %33 : vector<1x8xf32>
    %35 = vector.broadcast %28 : vector<1x8xf32> to vector<48x8xf32>
    %36 = arith.subf %21, %35 : vector<48x8xf32>
    %cst_13 = arith.constant 9.99999974E-6 : f32
    %37 = vector.broadcast %cst_13 : f32 to vector<1x8xf32>
    %38 = arith.addf %34, %37 : vector<1x8xf32>
    %39 = math.rsqrt %38 : vector<1x8xf32>
    %40 = vector.broadcast %39 : vector<1x8xf32> to vector<48x8xf32>
    %41 = arith.mulf %36, %40 : vector<48x8xf32>
    %42 = arith.truncf %20 : vector<32x4xf32> to vector<32x4xbf16>
    %c0_14 = arith.constant 0 : index
    %c0_15 = arith.constant 0 : index
    %43 = vector.load %arg2[%c0_14, %c0_15] : memref<48x32xbf16, #tpu.memory_space<vmem>>, vector<48x32xbf16>
    %cst_16 = arith.constant dense<0.000000e+00> : vector<48x4xf32>
    %44 = tpu.matmul %43, %42, %cst_16 {dimension_numbers = #tpu.dot_dimension_numbers<[1], [0], [0], [1], [0, 0, 1, 1], [], []>} : vector<48x32xbf16>, vector<32x4xbf16>, vector<48x4xf32> -> vector<48x4xf32>
    %c0_17 = arith.constant 0 : index
    %c0_18 = arith.constant 0 : index
    %45 = vector.load %arg15[%c0_17, %c0_18] : memref<32x56xbf16, #tpu.memory_space<vmem>>, vector<4x56xbf16>
    %46 = arith.truncf %44 : vector<48x4xf32> to vector<48x4xbf16>
    %cst_19 = arith.constant dense<0.000000e+00> : vector<48x56xf32>
    %47 = tpu.matmul %46, %45, %cst_19 {dimension_numbers = #tpu.dot_dimension_numbers<[1], [0], [0], [1], [0, 0, 1, 1], [], []>} : vector<48x4xbf16>, vector<4x56xbf16>, vector<48x56xf32> -> vector<48x56xf32>
    %c16 = arith.constant 16 : index
    %c0_20 = arith.constant 0 : index
    %48 = vector.load %arg15[%c16, %c0_20] : memref<32x56xbf16, #tpu.memory_space<vmem>>, vector<1x56xbf16>
    %49 = arith.extf %48 : vector<1x56xbf16> to vector<1x56xf32>
    %50 = vector.broadcast %49 : vector<1x56xf32> to vector<48x56xf32>
    %51 = arith.addf %47, %50 : vector<48x56xf32>
    %cst_21 = arith.constant 0.000000e+00 : f32
    %52 = vector.broadcast %cst_21 : f32 to vector<48x56xf32>
    %53 = arith.maximumf %51, %52 : vector<48x56xf32>
    %54 = tpu.concatenate %53, %41 in 1 : vector<48x56xf32>, vector<48x8xf32> -> vector<48x64xf32>
    %55 = arith.truncf %54 : vector<48x64xf32> to vector<48x64xbf16>
    %c0_22 = arith.constant 0 : index
    %c0_23 = arith.constant 0 : index
    %56 = vector.load %arg3[%c0_22, %c0_23] : memref<64x48xbf16, #tpu.memory_space<vmem>>, vector<64x48xbf16>
    %cst_24 = arith.constant dense<0.000000e+00> : vector<64x64xf32>
    %57 = tpu.matmul %56, %55, %cst_24 {dimension_numbers = #tpu.dot_dimension_numbers<[1], [0], [0], [1], [0, 0, 1, 1], [], []>} : vector<64x48xbf16>, vector<48x64xbf16>, vector<64x64xf32> -> vector<64x64xf32>
    %c0_25 = arith.constant 0 : index
    %c0_26 = arith.constant 0 : index
    %58 = vector.load %arg16[%c0_25, %c0_26] : memref<80x64xbf16, #tpu.memory_space<vmem>>, vector<64x64xbf16>
    %59 = arith.truncf %57 : vector<64x64xf32> to vector<64x64xbf16>
    %cst_27 = arith.constant dense<0.000000e+00> : vector<64x64xf32>
    %60 = tpu.matmul %59, %58, %cst_27 {dimension_numbers = #tpu.dot_dimension_numbers<[1], [0], [0], [1], [0, 0, 1, 1], [], []>} : vector<64x64xbf16>, vector<64x64xbf16>, vector<64x64xf32> -> vector<64x64xf32>
    %c64 = arith.constant 64 : index
    %c0_28 = arith.constant 0 : index
    %61 = vector.load %arg16[%c64, %c0_28] : memref<80x64xbf16, #tpu.memory_space<vmem>>, vector<1x64xbf16>
    %62 = arith.extf %61 : vector<1x64xbf16> to vector<1x64xf32>
    %63 = vector.broadcast %62 : vector<1x64xf32> to vector<64x64xf32>
    %64 = arith.addf %60, %63 : vector<64x64xf32>
    %cst_29 = arith.constant 0.000000e+00 : f32
    %65 = vector.broadcast %cst_29 : f32 to vector<64x64xf32>
    %66 = arith.maximumf %64, %65 : vector<64x64xf32>
    %67 = arith.truncf %66 : vector<64x64xf32> to vector<64x64xbf16>
    %c0_30 = arith.constant 0 : index
    %c0_31 = arith.constant 0 : index
    %68 = vector.load %arg5[%c0_30, %c0_31] : memref<64x64xbf16, #tpu.memory_space<vmem>>, vector<64x64xbf16>
    %cst_32 = arith.constant dense<0.000000e+00> : vector<64x64xf32>
    %69 = tpu.matmul %68, %67, %cst_32 {dimension_numbers = #tpu.dot_dimension_numbers<[1], [0], [0], [1], [0, 0, 1, 1], [], []>} : vector<64x64xbf16>, vector<64x64xbf16>, vector<64x64xf32> -> vector<64x64xf32>
    %c0_33 = arith.constant 0 : index
    %c0_34 = arith.constant 0 : index
    %70 = vector.load %arg17[%c0_33, %c0_34] : memref<144x64xbf16, #tpu.memory_space<vmem>>, vector<64x64xbf16>
    %71 = arith.truncf %69 : vector<64x64xf32> to vector<64x64xbf16>
    %cst_35 = arith.constant dense<0.000000e+00> : vector<64x64xf32>
    %72 = tpu.matmul %71, %70, %cst_35 {dimension_numbers = #tpu.dot_dimension_numbers<[1], [0], [0], [1], [0, 0, 1, 1], [], []>} : vector<64x64xbf16>, vector<64x64xbf16>, vector<64x64xf32> -> vector<64x64xf32>
    %c64_36 = arith.constant 64 : index
    %c0_37 = arith.constant 0 : index
    %73 = vector.load %arg17[%c64_36, %c0_37] : memref<144x64xbf16, #tpu.memory_space<vmem>>, vector<64x64xbf16>
    %cst_38 = arith.constant dense<0.000000e+00> : vector<64x64xf32>
    %74 = tpu.matmul %67, %73, %cst_38 {dimension_numbers = #tpu.dot_dimension_numbers<[1], [0], [0], [1], [0, 0, 1, 1], [], []>} : vector<64x64xbf16>, vector<64x64xbf16>, vector<64x64xf32> -> vector<64x64xf32>
    %75 = arith.addf %72, %74 : vector<64x64xf32>
    %c128 = arith.constant 128 : index
    %c0_39 = arith.constant 0 : index
    %76 = vector.load %arg17[%c128, %c0_39] : memref<144x64xbf16, #tpu.memory_space<vmem>>, vector<1x64xbf16>
    %77 = arith.extf %76 : vector<1x64xbf16> to vector<1x64xf32>
    %78 = vector.broadcast %77 : vector<1x64xf32> to vector<64x64xf32>
    %79 = arith.addf %75, %78 : vector<64x64xf32>
    %cst_40 = arith.constant 0.000000e+00 : f32
    %80 = vector.broadcast %cst_40 : f32 to vector<64x64xf32>
    %81 = arith.maximumf %79, %80 : vector<64x64xf32>
    %cst_41 = arith.constant dense<0.000000e+00> : vector<64xf32>
    %82 = vector.multi_reduction <add>, %81, %cst_41 [0] : vector<64x64xf32> to vector<64xf32>
    %83 = vector.shape_cast %82 : vector<64xf32> to vector<1x64xf32>
    %84 = arith.mulf %81, %81 : vector<64x64xf32>
    %cst_42 = arith.constant dense<0.000000e+00> : vector<64xf32>
    %85 = vector.multi_reduction <add>, %84, %cst_42 [0] : vector<64x64xf32> to vector<64xf32>
    %86 = vector.shape_cast %85 : vector<64xf32> to vector<1x64xf32>
    %cst_43 = arith.constant 1.562500e-02 : f32
    %87 = vector.broadcast %cst_43 : f32 to vector<1x64xf32>
    %88 = arith.mulf %83, %87 : vector<1x64xf32>
    %cst_44 = arith.constant 1.562500e-02 : f32
    %89 = vector.broadcast %cst_44 : f32 to vector<1x64xf32>
    %90 = arith.mulf %86, %89 : vector<1x64xf32>
    %91 = arith.mulf %88, %88 : vector<1x64xf32>
    %92 = arith.subf %90, %91 : vector<1x64xf32>
    %cst_45 = arith.constant 0.000000e+00 : f32
    %93 = vector.broadcast %cst_45 : f32 to vector<1x64xf32>
    %94 = arith.maximumf %92, %93 : vector<1x64xf32>
    %95 = vector.broadcast %88 : vector<1x64xf32> to vector<64x64xf32>
    %96 = arith.subf %81, %95 : vector<64x64xf32>
    %cst_46 = arith.constant 9.99999974E-6 : f32
    %97 = vector.broadcast %cst_46 : f32 to vector<1x64xf32>
    %98 = arith.addf %94, %97 : vector<1x64xf32>
    %99 = math.rsqrt %98 : vector<1x64xf32>
    %100 = vector.broadcast %99 : vector<1x64xf32> to vector<64x64xf32>
    %101 = arith.mulf %96, %100 : vector<64x64xf32>
    %c0_47 = arith.constant 0 : index
    %c0_48 = arith.constant 0 : index
    %102 = vector.load %arg9[%c0_47, %c0_48] : memref<32x64xbf16, #tpu.memory_space<vmem>>, vector<32x64xbf16>
    %103 = arith.truncf %101 : vector<64x64xf32> to vector<64x64xbf16>
    %cst_49 = arith.constant dense<0.000000e+00> : vector<32x64xf32>
    %104 = tpu.matmul %102, %103, %cst_49 {dimension_numbers = #tpu.dot_dimension_numbers<[1], [0], [0], [1], [0, 0, 1, 1], [], []>} : vector<32x64xbf16>, vector<64x64xbf16>, vector<32x64xf32> -> vector<32x64xf32>
    %105 = arith.truncf %104 : vector<32x64xf32> to vector<32x64xbf16>
    %c0_50 = arith.constant 0 : index
    %c0_51 = arith.constant 0 : index
    %106 = vector.load %arg6[%c0_50, %c0_51] : memref<32x32xbf16, #tpu.memory_space<vmem>>, vector<32x32xbf16>
    %cst_52 = arith.constant dense<0.000000e+00> : vector<32x64xf32>
    %107 = tpu.matmul %106, %105, %cst_52 {dimension_numbers = #tpu.dot_dimension_numbers<[1], [0], [0], [1], [0, 0, 1, 1], [], []>} : vector<32x32xbf16>, vector<32x64xbf16>, vector<32x64xf32> -> vector<32x64xf32>
    %c0_53 = arith.constant 0 : index
    %c0_54 = arith.constant 0 : index
    %108 = vector.load %arg18[%c0_53, %c0_54] : memref<144x64xbf16, #tpu.memory_space<vmem>>, vector<64x64xbf16>
    %109 = arith.truncf %107 : vector<32x64xf32> to vector<32x64xbf16>
    %cst_55 = arith.constant dense<0.000000e+00> : vector<32x64xf32>
    %110 = tpu.matmul %109, %108, %cst_55 {dimension_numbers = #tpu.dot_dimension_numbers<[1], [0], [0], [1], [0, 0, 1, 1], [], []>} : vector<32x64xbf16>, vector<64x64xbf16>, vector<32x64xf32> -> vector<32x64xf32>
    %c64_56 = arith.constant 64 : index
    %c0_57 = arith.constant 0 : index
    %111 = vector.load %arg18[%c64_56, %c0_57] : memref<144x64xbf16, #tpu.memory_space<vmem>>, vector<64x64xbf16>
    %cst_58 = arith.constant dense<0.000000e+00> : vector<32x64xf32>
    %112 = tpu.matmul %105, %111, %cst_58 {dimension_numbers = #tpu.dot_dimension_numbers<[1], [0], [0], [1], [0, 0, 1, 1], [], []>} : vector<32x64xbf16>, vector<64x64xbf16>, vector<32x64xf32> -> vector<32x64xf32>
    %113 = arith.addf %110, %112 : vector<32x64xf32>
    %c128_59 = arith.constant 128 : index
    %c0_60 = arith.constant 0 : index
    %114 = vector.load %arg18[%c128_59, %c0_60] : memref<144x64xbf16, #tpu.memory_space<vmem>>, vector<1x64xbf16>
    %115 = arith.extf %114 : vector<1x64xbf16> to vector<1x64xf32>
    %116 = vector.broadcast %115 : vector<1x64xf32> to vector<32x64xf32>
    %117 = arith.addf %113, %116 : vector<32x64xf32>
    %cst_61 = arith.constant 0.000000e+00 : f32
    %118 = vector.broadcast %cst_61 : f32 to vector<32x64xf32>
    %119 = arith.maximumf %117, %118 : vector<32x64xf32>
    %120 = arith.truncf %119 : vector<32x64xf32> to vector<32x64xbf16>
    %c0_62 = arith.constant 0 : index
    %c0_63 = arith.constant 0 : index
    %121 = vector.load %arg6[%c0_62, %c0_63] : memref<32x32xbf16, #tpu.memory_space<vmem>>, vector<32x32xbf16>
    %cst_64 = arith.constant dense<0.000000e+00> : vector<32x64xf32>
    %122 = tpu.matmul %121, %120, %cst_64 {dimension_numbers = #tpu.dot_dimension_numbers<[1], [0], [0], [1], [0, 0, 1, 1], [], []>} : vector<32x32xbf16>, vector<32x64xbf16>, vector<32x64xf32> -> vector<32x64xf32>
    %c0_65 = arith.constant 0 : index
    %c0_66 = arith.constant 0 : index
    %123 = vector.load %arg19[%c0_65, %c0_66] : memref<144x64xbf16, #tpu.memory_space<vmem>>, vector<64x64xbf16>
    %124 = arith.truncf %122 : vector<32x64xf32> to vector<32x64xbf16>
    %cst_67 = arith.constant dense<0.000000e+00> : vector<32x64xf32>
    %125 = tpu.matmul %124, %123, %cst_67 {dimension_numbers = #tpu.dot_dimension_numbers<[1], [0], [0], [1], [0, 0, 1, 1], [], []>} : vector<32x64xbf16>, vector<64x64xbf16>, vector<32x64xf32> -> vector<32x64xf32>
    %c64_68 = arith.constant 64 : index
    %c0_69 = arith.constant 0 : index
    %126 = vector.load %arg19[%c64_68, %c0_69] : memref<144x64xbf16, #tpu.memory_space<vmem>>, vector<64x64xbf16>
    %cst_70 = arith.constant dense<0.000000e+00> : vector<32x64xf32>
    %127 = tpu.matmul %120, %126, %cst_70 {dimension_numbers = #tpu.dot_dimension_numbers<[1], [0], [0], [1], [0, 0, 1, 1], [], []>} : vector<32x64xbf16>, vector<64x64xbf16>, vector<32x64xf32> -> vector<32x64xf32>
    %128 = arith.addf %125, %127 : vector<32x64xf32>
    %c128_71 = arith.constant 128 : index
    %c0_72 = arith.constant 0 : index
    %129 = vector.load %arg19[%c128_71, %c0_72] : memref<144x64xbf16, #tpu.memory_space<vmem>>, vector<1x64xbf16>
    %130 = arith.extf %129 : vector<1x64xbf16> to vector<1x64xf32>
    %131 = vector.broadcast %130 : vector<1x64xf32> to vector<32x64xf32>
    %132 = arith.addf %128, %131 : vector<32x64xf32>
    %cst_73 = arith.constant 0.000000e+00 : f32
    %133 = vector.broadcast %cst_73 : f32 to vector<32x64xf32>
    %134 = arith.maximumf %132, %133 : vector<32x64xf32>
    %cst_74 = arith.constant dense<0.000000e+00> : vector<64xf32>
    %135 = vector.multi_reduction <add>, %134, %cst_74 [0] : vector<32x64xf32> to vector<64xf32>
    %136 = vector.shape_cast %135 : vector<64xf32> to vector<1x64xf32>
    %137 = arith.mulf %134, %134 : vector<32x64xf32>
    %cst_75 = arith.constant dense<0.000000e+00> : vector<64xf32>
    %138 = vector.multi_reduction <add>, %137, %cst_75 [0] : vector<32x64xf32> to vector<64xf32>
    %139 = vector.shape_cast %138 : vector<64xf32> to vector<1x64xf32>
    %cst_76 = arith.constant 3.125000e-02 : f32
    %140 = vector.broadcast %cst_76 : f32 to vector<1x64xf32>
    %141 = arith.mulf %136, %140 : vector<1x64xf32>
    %cst_77 = arith.constant 3.125000e-02 : f32
    %142 = vector.broadcast %cst_77 : f32 to vector<1x64xf32>
    %143 = arith.mulf %139, %142 : vector<1x64xf32>
    %144 = arith.mulf %141, %141 : vector<1x64xf32>
    %145 = arith.subf %143, %144 : vector<1x64xf32>
    %cst_78 = arith.constant 0.000000e+00 : f32
    %146 = vector.broadcast %cst_78 : f32 to vector<1x64xf32>
    %147 = arith.maximumf %145, %146 : vector<1x64xf32>
    %148 = vector.broadcast %141 : vector<1x64xf32> to vector<32x64xf32>
    %149 = arith.subf %134, %148 : vector<32x64xf32>
    %cst_79 = arith.constant 9.99999974E-6 : f32
    %150 = vector.broadcast %cst_79 : f32 to vector<1x64xf32>
    %151 = arith.addf %147, %150 : vector<1x64xf32>
    %152 = math.rsqrt %151 : vector<1x64xf32>
    %153 = vector.broadcast %152 : vector<1x64xf32> to vector<32x64xf32>
    %154 = arith.mulf %149, %153 : vector<32x64xf32>
    %c0_80 = arith.constant 0 : index
    %c0_81 = arith.constant 0 : index
    %155 = vector.load %arg10[%c0_80, %c0_81] : memref<16x32xbf16, #tpu.memory_space<vmem>>, vector<16x32xbf16>
    %156 = arith.truncf %154 : vector<32x64xf32> to vector<32x64xbf16>
    %cst_82 = arith.constant dense<0.000000e+00> : vector<16x64xf32>
    %157 = tpu.matmul %155, %156, %cst_82 {dimension_numbers = #tpu.dot_dimension_numbers<[1], [0], [0], [1], [0, 0, 1, 1], [], []>} : vector<16x32xbf16>, vector<32x64xbf16>, vector<16x64xf32> -> vector<16x64xf32>
    %158 = arith.truncf %157 : vector<16x64xf32> to vector<16x64xbf16>
    %c0_83 = arith.constant 0 : index
    %c0_84 = arith.constant 0 : index
    %159 = vector.load %arg7[%c0_83, %c0_84] : memref<16x16xbf16, #tpu.memory_space<vmem>>, vector<16x16xbf16>
    %cst_85 = arith.constant dense<0.000000e+00> : vector<16x64xf32>
    %160 = tpu.matmul %159, %158, %cst_85 {dimension_numbers = #tpu.dot_dimension_numbers<[1], [0], [0], [1], [0, 0, 1, 1], [], []>} : vector<16x16xbf16>, vector<16x64xbf16>, vector<16x64xf32> -> vector<16x64xf32>
    %c0_86 = arith.constant 0 : index
    %c0_87 = arith.constant 0 : index
    %161 = vector.load %arg20[%c0_86, %c0_87] : memref<144x64xbf16, #tpu.memory_space<vmem>>, vector<64x64xbf16>
    %162 = arith.truncf %160 : vector<16x64xf32> to vector<16x64xbf16>
    %cst_88 = arith.constant dense<0.000000e+00> : vector<16x64xf32>
    %163 = tpu.matmul %162, %161, %cst_88 {dimension_numbers = #tpu.dot_dimension_numbers<[1], [0], [0], [1], [0, 0, 1, 1], [], []>} : vector<16x64xbf16>, vector<64x64xbf16>, vector<16x64xf32> -> vector<16x64xf32>
    %c64_89 = arith.constant 64 : index
    %c0_90 = arith.constant 0 : index
    %164 = vector.load %arg20[%c64_89, %c0_90] : memref<144x64xbf16, #tpu.memory_space<vmem>>, vector<64x64xbf16>
    %cst_91 = arith.constant dense<0.000000e+00> : vector<16x64xf32>
    %165 = tpu.matmul %158, %164, %cst_91 {dimension_numbers = #tpu.dot_dimension_numbers<[1], [0], [0], [1], [0, 0, 1, 1], [], []>} : vector<16x64xbf16>, vector<64x64xbf16>, vector<16x64xf32> -> vector<16x64xf32>
    %166 = arith.addf %163, %165 : vector<16x64xf32>
    %c128_92 = arith.constant 128 : index
    %c0_93 = arith.constant 0 : index
    %167 = vector.load %arg20[%c128_92, %c0_93] : memref<144x64xbf16, #tpu.memory_space<vmem>>, vector<1x64xbf16>
    %168 = arith.extf %167 : vector<1x64xbf16> to vector<1x64xf32>
    %169 = vector.broadcast %168 : vector<1x64xf32> to vector<16x64xf32>
    %170 = arith.addf %166, %169 : vector<16x64xf32>
    %cst_94 = arith.constant 0.000000e+00 : f32
    %171 = vector.broadcast %cst_94 : f32 to vector<16x64xf32>
    %172 = arith.maximumf %170, %171 : vector<16x64xf32>
    %173 = arith.truncf %172 : vector<16x64xf32> to vector<16x64xbf16>
    %c0_95 = arith.constant 0 : index
    %c0_96 = arith.constant 0 : index
    %174 = vector.load %arg7[%c0_95, %c0_96] : memref<16x16xbf16, #tpu.memory_space<vmem>>, vector<16x16xbf16>
    %cst_97 = arith.constant dense<0.000000e+00> : vector<16x64xf32>
    %175 = tpu.matmul %174, %173, %cst_97 {dimension_numbers = #tpu.dot_dimension_numbers<[1], [0], [0], [1], [0, 0, 1, 1], [], []>} : vector<16x16xbf16>, vector<16x64xbf16>, vector<16x64xf32> -> vector<16x64xf32>
    %c0_98 = arith.constant 0 : index
    %c0_99 = arith.constant 0 : index
    %176 = vector.load %arg21[%c0_98, %c0_99] : memref<144x64xbf16, #tpu.memory_space<vmem>>, vector<64x64xbf16>
    %177 = arith.truncf %175 : vector<16x64xf32> to vector<16x64xbf16>
    %cst_100 = arith.constant dense<0.000000e+00> : vector<16x64xf32>
    %178 = tpu.matmul %177, %176, %cst_100 {dimension_numbers = #tpu.dot_dimension_numbers<[1], [0], [0], [1], [0, 0, 1, 1], [], []>} : vector<16x64xbf16>, vector<64x64xbf16>, vector<16x64xf32> -> vector<16x64xf32>
    %c64_101 = arith.constant 64 : index
    %c0_102 = arith.constant 0 : index
    %179 = vector.load %arg21[%c64_101, %c0_102] : memref<144x64xbf16, #tpu.memory_space<vmem>>, vector<64x64xbf16>
    %cst_103 = arith.constant dense<0.000000e+00> : vector<16x64xf32>
    %180 = tpu.matmul %173, %179, %cst_103 {dimension_numbers = #tpu.dot_dimension_numbers<[1], [0], [0], [1], [0, 0, 1, 1], [], []>} : vector<16x64xbf16>, vector<64x64xbf16>, vector<16x64xf32> -> vector<16x64xf32>
    %181 = arith.addf %178, %180 : vector<16x64xf32>
    %c128_104 = arith.constant 128 : index
    %c0_105 = arith.constant 0 : index
    %182 = vector.load %arg21[%c128_104, %c0_105] : memref<144x64xbf16, #tpu.memory_space<vmem>>, vector<1x64xbf16>
    %183 = arith.extf %182 : vector<1x64xbf16> to vector<1x64xf32>
    %184 = vector.broadcast %183 : vector<1x64xf32> to vector<16x64xf32>
    %185 = arith.addf %181, %184 : vector<16x64xf32>
    %cst_106 = arith.constant 0.000000e+00 : f32
    %186 = vector.broadcast %cst_106 : f32 to vector<16x64xf32>
    %187 = arith.maximumf %185, %186 : vector<16x64xf32>
    %cst_107 = arith.constant dense<0.000000e+00> : vector<64xf32>
    %188 = vector.multi_reduction <add>, %187, %cst_107 [0] : vector<16x64xf32> to vector<64xf32>
    %189 = vector.shape_cast %188 : vector<64xf32> to vector<1x64xf32>
    %190 = arith.mulf %187, %187 : vector<16x64xf32>
    %cst_108 = arith.constant dense<0.000000e+00> : vector<64xf32>
    %191 = vector.multi_reduction <add>, %190, %cst_108 [0] : vector<16x64xf32> to vector<64xf32>
    %192 = vector.shape_cast %191 : vector<64xf32> to vector<1x64xf32>
    %cst_109 = arith.constant 6.250000e-02 : f32
    %193 = vector.broadcast %cst_109 : f32 to vector<1x64xf32>
    %194 = arith.mulf %189, %193 : vector<1x64xf32>
    %cst_110 = arith.constant 6.250000e-02 : f32
    %195 = vector.broadcast %cst_110 : f32 to vector<1x64xf32>
    %196 = arith.mulf %192, %195 : vector<1x64xf32>
    %197 = arith.mulf %194, %194 : vector<1x64xf32>
    %198 = arith.subf %196, %197 : vector<1x64xf32>
    %cst_111 = arith.constant 0.000000e+00 : f32
    %199 = vector.broadcast %cst_111 : f32 to vector<1x64xf32>
    %200 = arith.maximumf %198, %199 : vector<1x64xf32>
    %201 = vector.broadcast %194 : vector<1x64xf32> to vector<16x64xf32>
    %202 = arith.subf %187, %201 : vector<16x64xf32>
    %cst_112 = arith.constant 9.99999974E-6 : f32
    %203 = vector.broadcast %cst_112 : f32 to vector<1x64xf32>
    %204 = arith.addf %200, %203 : vector<1x64xf32>
    %205 = math.rsqrt %204 : vector<1x64xf32>
    %206 = vector.broadcast %205 : vector<1x64xf32> to vector<16x64xf32>
    %207 = arith.mulf %202, %206 : vector<16x64xf32>
    %c0_113 = arith.constant 0 : index
    %c0_114 = arith.constant 0 : index
    %208 = vector.load %arg11[%c0_113, %c0_114] : memref<8x16xbf16, #tpu.memory_space<vmem>>, vector<8x16xbf16>
    %209 = arith.truncf %207 : vector<16x64xf32> to vector<16x64xbf16>
    %cst_115 = arith.constant dense<0.000000e+00> : vector<8x64xf32>
    %210 = tpu.matmul %208, %209, %cst_115 {dimension_numbers = #tpu.dot_dimension_numbers<[1], [0], [0], [1], [0, 0, 1, 1], [], []>} : vector<8x16xbf16>, vector<16x64xbf16>, vector<8x64xf32> -> vector<8x64xf32>
    %211 = arith.truncf %210 : vector<8x64xf32> to vector<8x64xbf16>
    %c0_116 = arith.constant 0 : index
    %c0_117 = arith.constant 0 : index
    %212 = vector.load %arg8[%c0_116, %c0_117] : memref<8x8xbf16, #tpu.memory_space<vmem>>, vector<8x8xbf16>
    %cst_118 = arith.constant dense<0.000000e+00> : vector<8x64xf32>
    %213 = tpu.matmul %212, %211, %cst_118 {dimension_numbers = #tpu.dot_dimension_numbers<[1], [0], [0], [1], [0, 0, 1, 1], [], []>} : vector<8x8xbf16>, vector<8x64xbf16>, vector<8x64xf32> -> vector<8x64xf32>
    %c0_119 = arith.constant 0 : index
    %c0_120 = arith.constant 0 : index
    %214 = vector.load %arg22[%c0_119, %c0_120] : memref<144x128xbf16, #tpu.memory_space<vmem>>, vector<64x128xbf16>
    %215 = arith.truncf %213 : vector<8x64xf32> to vector<8x64xbf16>
    %cst_121 = arith.constant dense<0.000000e+00> : vector<8x128xf32>
    %216 = tpu.matmul %215, %214, %cst_121 {dimension_numbers = #tpu.dot_dimension_numbers<[1], [0], [0], [1], [0, 0, 1, 1], [], []>} : vector<8x64xbf16>, vector<64x128xbf16>, vector<8x128xf32> -> vector<8x128xf32>
    %c64_122 = arith.constant 64 : index
    %c0_123 = arith.constant 0 : index
    %217 = vector.load %arg22[%c64_122, %c0_123] : memref<144x128xbf16, #tpu.memory_space<vmem>>, vector<64x128xbf16>
    %cst_124 = arith.constant dense<0.000000e+00> : vector<8x128xf32>
    %218 = tpu.matmul %211, %217, %cst_124 {dimension_numbers = #tpu.dot_dimension_numbers<[1], [0], [0], [1], [0, 0, 1, 1], [], []>} : vector<8x64xbf16>, vector<64x128xbf16>, vector<8x128xf32> -> vector<8x128xf32>
    %219 = arith.addf %216, %218 : vector<8x128xf32>
    %c128_125 = arith.constant 128 : index
    %c0_126 = arith.constant 0 : index
    %220 = vector.load %arg22[%c128_125, %c0_126] : memref<144x128xbf16, #tpu.memory_space<vmem>>, vector<1x128xbf16>
    %221 = arith.extf %220 : vector<1x128xbf16> to vector<1x128xf32>
    %222 = vector.broadcast %221 : vector<1x128xf32> to vector<8x128xf32>
    %223 = arith.addf %219, %222 : vector<8x128xf32>
    %cst_127 = arith.constant 0.000000e+00 : f32
    %224 = vector.broadcast %cst_127 : f32 to vector<8x128xf32>
    %225 = arith.maximumf %223, %224 : vector<8x128xf32>
    %226 = arith.truncf %225 : vector<8x128xf32> to vector<8x128xbf16>
    %c0_128 = arith.constant 0 : index
    %c0_129 = arith.constant 0 : index
    %227 = vector.load %arg8[%c0_128, %c0_129] : memref<8x8xbf16, #tpu.memory_space<vmem>>, vector<8x8xbf16>
    %cst_130 = arith.constant dense<0.000000e+00> : vector<8x128xf32>
    %228 = tpu.matmul %227, %226, %cst_130 {dimension_numbers = #tpu.dot_dimension_numbers<[1], [0], [0], [1], [0, 0, 1, 1], [], []>} : vector<8x8xbf16>, vector<8x128xbf16>, vector<8x128xf32> -> vector<8x128xf32>
    %c0_131 = arith.constant 0 : index
    %c0_132 = arith.constant 0 : index
    %229 = vector.load %arg23[%c0_131, %c0_132] : memref<272x128xbf16, #tpu.memory_space<vmem>>, vector<128x128xbf16>
    %230 = arith.truncf %228 : vector<8x128xf32> to vector<8x128xbf16>
    %cst_133 = arith.constant dense<0.000000e+00> : vector<8x128xf32>
    %231 = tpu.matmul %230, %229, %cst_133 {dimension_numbers = #tpu.dot_dimension_numbers<[1], [0], [0], [1], [0, 0, 1, 1], [], []>} : vector<8x128xbf16>, vector<128x128xbf16>, vector<8x128xf32> -> vector<8x128xf32>
    %c128_134 = arith.constant 128 : index
    %c0_135 = arith.constant 0 : index
    %232 = vector.load %arg23[%c128_134, %c0_135] : memref<272x128xbf16, #tpu.memory_space<vmem>>, vector<128x128xbf16>
    %cst_136 = arith.constant dense<0.000000e+00> : vector<8x128xf32>
    %233 = tpu.matmul %226, %232, %cst_136 {dimension_numbers = #tpu.dot_dimension_numbers<[1], [0], [0], [1], [0, 0, 1, 1], [], []>} : vector<8x128xbf16>, vector<128x128xbf16>, vector<8x128xf32> -> vector<8x128xf32>
    %234 = arith.addf %231, %233 : vector<8x128xf32>
    %c256 = arith.constant 256 : index
    %c0_137 = arith.constant 0 : index
    %235 = vector.load %arg23[%c256, %c0_137] : memref<272x128xbf16, #tpu.memory_space<vmem>>, vector<1x128xbf16>
    %236 = arith.extf %235 : vector<1x128xbf16> to vector<1x128xf32>
    %237 = vector.broadcast %236 : vector<1x128xf32> to vector<8x128xf32>
    %238 = arith.addf %234, %237 : vector<8x128xf32>
    %cst_138 = arith.constant 0.000000e+00 : f32
    %239 = vector.broadcast %cst_138 : f32 to vector<8x128xf32>
    %240 = arith.maximumf %238, %239 : vector<8x128xf32>
    %241 = arith.truncf %240 : vector<8x128xf32> to vector<8x128xbf16>
    %c0_139 = arith.constant 0 : index
    %c0_140 = arith.constant 0 : index
    %242 = vector.load %arg8[%c0_139, %c0_140] : memref<8x8xbf16, #tpu.memory_space<vmem>>, vector<8x8xbf16>
    %cst_141 = arith.constant dense<0.000000e+00> : vector<8x128xf32>
    %243 = tpu.matmul %242, %241, %cst_141 {dimension_numbers = #tpu.dot_dimension_numbers<[1], [0], [0], [1], [0, 0, 1, 1], [], []>} : vector<8x8xbf16>, vector<8x128xbf16>, vector<8x128xf32> -> vector<8x128xf32>
    %c0_142 = arith.constant 0 : index
    %c0_143 = arith.constant 0 : index
    %244 = vector.load %arg24[%c0_142, %c0_143] : memref<272x128xbf16, #tpu.memory_space<vmem>>, vector<128x128xbf16>
    %245 = arith.truncf %243 : vector<8x128xf32> to vector<8x128xbf16>
    %cst_144 = arith.constant dense<0.000000e+00> : vector<8x128xf32>
    %246 = tpu.matmul %245, %244, %cst_144 {dimension_numbers = #tpu.dot_dimension_numbers<[1], [0], [0], [1], [0, 0, 1, 1], [], []>} : vector<8x128xbf16>, vector<128x128xbf16>, vector<8x128xf32> -> vector<8x128xf32>
    %c128_145 = arith.constant 128 : index
    %c0_146 = arith.constant 0 : index
    %247 = vector.load %arg24[%c128_145, %c0_146] : memref<272x128xbf16, #tpu.memory_space<vmem>>, vector<128x128xbf16>
    %cst_147 = arith.constant dense<0.000000e+00> : vector<8x128xf32>
    %248 = tpu.matmul %241, %247, %cst_147 {dimension_numbers = #tpu.dot_dimension_numbers<[1], [0], [0], [1], [0, 0, 1, 1], [], []>} : vector<8x128xbf16>, vector<128x128xbf16>, vector<8x128xf32> -> vector<8x128xf32>
    %249 = arith.addf %246, %248 : vector<8x128xf32>
    %c256_148 = arith.constant 256 : index
    %c0_149 = arith.constant 0 : index
    %250 = vector.load %arg24[%c256_148, %c0_149] : memref<272x128xbf16, #tpu.memory_space<vmem>>, vector<1x128xbf16>
    %251 = arith.extf %250 : vector<1x128xbf16> to vector<1x128xf32>
    %252 = vector.broadcast %251 : vector<1x128xf32> to vector<8x128xf32>
    %253 = arith.addf %249, %252 : vector<8x128xf32>
    %cst_150 = arith.constant 0.000000e+00 : f32
    %254 = vector.broadcast %cst_150 : f32 to vector<8x128xf32>
    %255 = arith.maximumf %253, %254 : vector<8x128xf32>
    %256 = arith.truncf %255 : vector<8x128xf32> to vector<8x128xbf16>
    %c0_151 = arith.constant 0 : index
    %c0_152 = arith.constant 0 : index
    %257 = vector.load %arg8[%c0_151, %c0_152] : memref<8x8xbf16, #tpu.memory_space<vmem>>, vector<8x8xbf16>
    %cst_153 = arith.constant dense<0.000000e+00> : vector<8x128xf32>
    %258 = tpu.matmul %257, %256, %cst_153 {dimension_numbers = #tpu.dot_dimension_numbers<[1], [0], [0], [1], [0, 0, 1, 1], [], []>} : vector<8x8xbf16>, vector<8x128xbf16>, vector<8x128xf32> -> vector<8x128xf32>
    %c0_154 = arith.constant 0 : index
    %c0_155 = arith.constant 0 : index
    %259 = vector.load %arg25[%c0_154, %c0_155] : memref<272x128xbf16, #tpu.memory_space<vmem>>, vector<128x128xbf16>
    %260 = arith.truncf %258 : vector<8x128xf32> to vector<8x128xbf16>
    %cst_156 = arith.constant dense<0.000000e+00> : vector<8x128xf32>
    %261 = tpu.matmul %260, %259, %cst_156 {dimension_numbers = #tpu.dot_dimension_numbers<[1], [0], [0], [1], [0, 0, 1, 1], [], []>} : vector<8x128xbf16>, vector<128x128xbf16>, vector<8x128xf32> -> vector<8x128xf32>
    %c128_157 = arith.constant 128 : index
    %c0_158 = arith.constant 0 : index
    %262 = vector.load %arg25[%c128_157, %c0_158] : memref<272x128xbf16, #tpu.memory_space<vmem>>, vector<128x128xbf16>
    %cst_159 = arith.constant dense<0.000000e+00> : vector<8x128xf32>
    %263 = tpu.matmul %256, %262, %cst_159 {dimension_numbers = #tpu.dot_dimension_numbers<[1], [0], [0], [1], [0, 0, 1, 1], [], []>} : vector<8x128xbf16>, vector<128x128xbf16>, vector<8x128xf32> -> vector<8x128xf32>
    %264 = arith.addf %261, %263 : vector<8x128xf32>
    %c256_160 = arith.constant 256 : index
    %c0_161 = arith.constant 0 : index
    %265 = vector.load %arg25[%c256_160, %c0_161] : memref<272x128xbf16, #tpu.memory_space<vmem>>, vector<1x128xbf16>
    %266 = arith.extf %265 : vector<1x128xbf16> to vector<1x128xf32>
    %267 = vector.broadcast %266 : vector<1x128xf32> to vector<8x128xf32>
    %268 = arith.addf %264, %267 : vector<8x128xf32>
    %cst_162 = arith.constant 0.000000e+00 : f32
    %269 = vector.broadcast %cst_162 : f32 to vector<8x128xf32>
    %270 = arith.maximumf %268, %269 : vector<8x128xf32>
    %c0_163 = arith.constant 0 : index
    %c0_164 = arith.constant 0 : index
    %271 = vector.load %arg12[%c0_163, %c0_164] : memref<16x8xbf16, #tpu.memory_space<vmem>>, vector<16x8xbf16>
    %272 = arith.truncf %270 : vector<8x128xf32> to vector<8x128xbf16>
    %cst_165 = arith.constant dense<0.000000e+00> : vector<16x128xf32>
    %273 = tpu.matmul %271, %272, %cst_165 {dimension_numbers = #tpu.dot_dimension_numbers<[1], [0], [0], [1], [0, 0, 1, 1], [], []>} : vector<16x8xbf16>, vector<8x128xbf16>, vector<16x128xf32> -> vector<16x128xf32>
    %cst_166 = arith.constant dense<0.000000e+00> : vector<128xf32>
    %274 = vector.multi_reduction <add>, %273, %cst_166 [0] : vector<16x128xf32> to vector<128xf32>
    %275 = vector.shape_cast %274 : vector<128xf32> to vector<1x128xf32>
    %276 = arith.mulf %273, %273 : vector<16x128xf32>
    %cst_167 = arith.constant dense<0.000000e+00> : vector<128xf32>
    %277 = vector.multi_reduction <add>, %276, %cst_167 [0] : vector<16x128xf32> to vector<128xf32>
    %278 = vector.shape_cast %277 : vector<128xf32> to vector<1x128xf32>
    %cst_168 = arith.constant 6.250000e-02 : f32
    %279 = vector.broadcast %cst_168 : f32 to vector<1x128xf32>
    %280 = arith.mulf %275, %279 : vector<1x128xf32>
    %cst_169 = arith.constant 6.250000e-02 : f32
    %281 = vector.broadcast %cst_169 : f32 to vector<1x128xf32>
    %282 = arith.mulf %278, %281 : vector<1x128xf32>
    %283 = arith.mulf %280, %280 : vector<1x128xf32>
    %284 = arith.subf %282, %283 : vector<1x128xf32>
    %cst_170 = arith.constant 0.000000e+00 : f32
    %285 = vector.broadcast %cst_170 : f32 to vector<1x128xf32>
    %286 = arith.maximumf %284, %285 : vector<1x128xf32>
    %287 = vector.broadcast %280 : vector<1x128xf32> to vector<16x128xf32>
    %288 = arith.subf %273, %287 : vector<16x128xf32>
    %cst_171 = arith.constant 9.99999974E-6 : f32
    %289 = vector.broadcast %cst_171 : f32 to vector<1x128xf32>
    %290 = arith.addf %286, %289 : vector<1x128xf32>
    %291 = math.rsqrt %290 : vector<1x128xf32>
    %292 = vector.broadcast %291 : vector<1x128xf32> to vector<16x128xf32>
    %293 = arith.mulf %288, %292 : vector<16x128xf32>
    %294 = tpu.concatenate %293, %207 in 1 : vector<16x128xf32>, vector<16x64xf32> -> vector<16x192xf32>
    %295 = arith.truncf %294 : vector<16x192xf32> to vector<16x192xbf16>
    %c0_172 = arith.constant 0 : index
    %c0_173 = arith.constant 0 : index
    %296 = vector.load %arg7[%c0_172, %c0_173] : memref<16x16xbf16, #tpu.memory_space<vmem>>, vector<16x16xbf16>
    %cst_174 = arith.constant dense<0.000000e+00> : vector<16x192xf32>
    %297 = tpu.matmul %296, %295, %cst_174 {dimension_numbers = #tpu.dot_dimension_numbers<[1], [0], [0], [1], [0, 0, 1, 1], [], []>} : vector<16x16xbf16>, vector<16x192xbf16>, vector<16x192xf32> -> vector<16x192xf32>
    %c0_175 = arith.constant 0 : index
    %c0_176 = arith.constant 0 : index
    %298 = vector.load %arg26[%c0_175, %c0_176] : memref<400x128xbf16, #tpu.memory_space<vmem>>, vector<192x128xbf16>
    %299 = arith.truncf %297 : vector<16x192xf32> to vector<16x192xbf16>
    %cst_177 = arith.constant dense<0.000000e+00> : vector<16x128xf32>
    %300 = tpu.matmul %299, %298, %cst_177 {dimension_numbers = #tpu.dot_dimension_numbers<[1], [0], [0], [1], [0, 0, 1, 1], [], []>} : vector<16x192xbf16>, vector<192x128xbf16>, vector<16x128xf32> -> vector<16x128xf32>
    %c192 = arith.constant 192 : index
    %c0_178 = arith.constant 0 : index
    %301 = vector.load %arg26[%c192, %c0_178] : memref<400x128xbf16, #tpu.memory_space<vmem>>, vector<192x128xbf16>
    %cst_179 = arith.constant dense<0.000000e+00> : vector<16x128xf32>
    %302 = tpu.matmul %295, %301, %cst_179 {dimension_numbers = #tpu.dot_dimension_numbers<[1], [0], [0], [1], [0, 0, 1, 1], [], []>} : vector<16x192xbf16>, vector<192x128xbf16>, vector<16x128xf32> -> vector<16x128xf32>
    %303 = arith.addf %300, %302 : vector<16x128xf32>
    %c384 = arith.constant 384 : index
    %c0_180 = arith.constant 0 : index
    %304 = vector.load %arg26[%c384, %c0_180] : memref<400x128xbf16, #tpu.memory_space<vmem>>, vector<1x128xbf16>
    %305 = arith.extf %304 : vector<1x128xbf16> to vector<1x128xf32>
    %306 = vector.broadcast %305 : vector<1x128xf32> to vector<16x128xf32>
    %307 = arith.addf %303, %306 : vector<16x128xf32>
    %cst_181 = arith.constant 0.000000e+00 : f32
    %308 = vector.broadcast %cst_181 : f32 to vector<16x128xf32>
    %309 = arith.maximumf %307, %308 : vector<16x128xf32>
    %310 = arith.truncf %309 : vector<16x128xf32> to vector<16x128xbf16>
    %c0_182 = arith.constant 0 : index
    %c0_183 = arith.constant 0 : index
    %311 = vector.load %arg7[%c0_182, %c0_183] : memref<16x16xbf16, #tpu.memory_space<vmem>>, vector<16x16xbf16>
    %cst_184 = arith.constant dense<0.000000e+00> : vector<16x128xf32>
    %312 = tpu.matmul %311, %310, %cst_184 {dimension_numbers = #tpu.dot_dimension_numbers<[1], [0], [0], [1], [0, 0, 1, 1], [], []>} : vector<16x16xbf16>, vector<16x128xbf16>, vector<16x128xf32> -> vector<16x128xf32>
    %c0_185 = arith.constant 0 : index
    %c0_186 = arith.constant 0 : index
    %313 = vector.load %arg27[%c0_185, %c0_186] : memref<272x128xbf16, #tpu.memory_space<vmem>>, vector<128x128xbf16>
    %314 = arith.truncf %312 : vector<16x128xf32> to vector<16x128xbf16>
    %cst_187 = arith.constant dense<0.000000e+00> : vector<16x128xf32>
    %315 = tpu.matmul %314, %313, %cst_187 {dimension_numbers = #tpu.dot_dimension_numbers<[1], [0], [0], [1], [0, 0, 1, 1], [], []>} : vector<16x128xbf16>, vector<128x128xbf16>, vector<16x128xf32> -> vector<16x128xf32>
    %c128_188 = arith.constant 128 : index
    %c0_189 = arith.constant 0 : index
    %316 = vector.load %arg27[%c128_188, %c0_189] : memref<272x128xbf16, #tpu.memory_space<vmem>>, vector<128x128xbf16>
    %cst_190 = arith.constant dense<0.000000e+00> : vector<16x128xf32>
    %317 = tpu.matmul %310, %316, %cst_190 {dimension_numbers = #tpu.dot_dimension_numbers<[1], [0], [0], [1], [0, 0, 1, 1], [], []>} : vector<16x128xbf16>, vector<128x128xbf16>, vector<16x128xf32> -> vector<16x128xf32>
    %318 = arith.addf %315, %317 : vector<16x128xf32>
    %c256_191 = arith.constant 256 : index
    %c0_192 = arith.constant 0 : index
    %319 = vector.load %arg27[%c256_191, %c0_192] : memref<272x128xbf16, #tpu.memory_space<vmem>>, vector<1x128xbf16>
    %320 = arith.extf %319 : vector<1x128xbf16> to vector<1x128xf32>
    %321 = vector.broadcast %320 : vector<1x128xf32> to vector<16x128xf32>
    %322 = arith.addf %318, %321 : vector<16x128xf32>
    %cst_193 = arith.constant 0.000000e+00 : f32
    %323 = vector.broadcast %cst_193 : f32 to vector<16x128xf32>
    %324 = arith.maximumf %322, %323 : vector<16x128xf32>
    %c0_194 = arith.constant 0 : index
    %c0_195 = arith.constant 0 : index
    %325 = vector.load %arg13[%c0_194, %c0_195] : memref<32x16xbf16, #tpu.memory_space<vmem>>, vector<32x16xbf16>
    %326 = arith.truncf %324 : vector<16x128xf32> to vector<16x128xbf16>
    %cst_196 = arith.constant dense<0.000000e+00> : vector<32x128xf32>
    %327 = tpu.matmul %325, %326, %cst_196 {dimension_numbers = #tpu.dot_dimension_numbers<[1], [0], [0], [1], [0, 0, 1, 1], [], []>} : vector<32x16xbf16>, vector<16x128xbf16>, vector<32x128xf32> -> vector<32x128xf32>
    %cst_197 = arith.constant dense<0.000000e+00> : vector<128xf32>
    %328 = vector.multi_reduction <add>, %327, %cst_197 [0] : vector<32x128xf32> to vector<128xf32>
    %329 = vector.shape_cast %328 : vector<128xf32> to vector<1x128xf32>
    %330 = arith.mulf %327, %327 : vector<32x128xf32>
    %cst_198 = arith.constant dense<0.000000e+00> : vector<128xf32>
    %331 = vector.multi_reduction <add>, %330, %cst_198 [0] : vector<32x128xf32> to vector<128xf32>
    %332 = vector.shape_cast %331 : vector<128xf32> to vector<1x128xf32>
    %cst_199 = arith.constant 3.125000e-02 : f32
    %333 = vector.broadcast %cst_199 : f32 to vector<1x128xf32>
    %334 = arith.mulf %329, %333 : vector<1x128xf32>
    %cst_200 = arith.constant 3.125000e-02 : f32
    %335 = vector.broadcast %cst_200 : f32 to vector<1x128xf32>
    %336 = arith.mulf %332, %335 : vector<1x128xf32>
    %337 = arith.mulf %334, %334 : vector<1x128xf32>
    %338 = arith.subf %336, %337 : vector<1x128xf32>
    %cst_201 = arith.constant 0.000000e+00 : f32
    %339 = vector.broadcast %cst_201 : f32 to vector<1x128xf32>
    %340 = arith.maximumf %338, %339 : vector<1x128xf32>
    %341 = vector.broadcast %334 : vector<1x128xf32> to vector<32x128xf32>
    %342 = arith.subf %327, %341 : vector<32x128xf32>
    %cst_202 = arith.constant 9.99999974E-6 : f32
    %343 = vector.broadcast %cst_202 : f32 to vector<1x128xf32>
    %344 = arith.addf %340, %343 : vector<1x128xf32>
    %345 = math.rsqrt %344 : vector<1x128xf32>
    %346 = vector.broadcast %345 : vector<1x128xf32> to vector<32x128xf32>
    %347 = arith.mulf %342, %346 : vector<32x128xf32>
    %348 = tpu.concatenate %347, %154 in 1 : vector<32x128xf32>, vector<32x64xf32> -> vector<32x192xf32>
    %349 = arith.truncf %348 : vector<32x192xf32> to vector<32x192xbf16>
    %c0_203 = arith.constant 0 : index
    %c0_204 = arith.constant 0 : index
    %350 = vector.load %arg6[%c0_203, %c0_204] : memref<32x32xbf16, #tpu.memory_space<vmem>>, vector<32x32xbf16>
    %cst_205 = arith.constant dense<0.000000e+00> : vector<32x192xf32>
    %351 = tpu.matmul %350, %349, %cst_205 {dimension_numbers = #tpu.dot_dimension_numbers<[1], [0], [0], [1], [0, 0, 1, 1], [], []>} : vector<32x32xbf16>, vector<32x192xbf16>, vector<32x192xf32> -> vector<32x192xf32>
    %c0_206 = arith.constant 0 : index
    %c0_207 = arith.constant 0 : index
    %352 = vector.load %arg28[%c0_206, %c0_207] : memref<400x64xbf16, #tpu.memory_space<vmem>>, vector<192x64xbf16>
    %353 = arith.truncf %351 : vector<32x192xf32> to vector<32x192xbf16>
    %cst_208 = arith.constant dense<0.000000e+00> : vector<32x64xf32>
    %354 = tpu.matmul %353, %352, %cst_208 {dimension_numbers = #tpu.dot_dimension_numbers<[1], [0], [0], [1], [0, 0, 1, 1], [], []>} : vector<32x192xbf16>, vector<192x64xbf16>, vector<32x64xf32> -> vector<32x64xf32>
    %c192_209 = arith.constant 192 : index
    %c0_210 = arith.constant 0 : index
    %355 = vector.load %arg28[%c192_209, %c0_210] : memref<400x64xbf16, #tpu.memory_space<vmem>>, vector<192x64xbf16>
    %cst_211 = arith.constant dense<0.000000e+00> : vector<32x64xf32>
    %356 = tpu.matmul %349, %355, %cst_211 {dimension_numbers = #tpu.dot_dimension_numbers<[1], [0], [0], [1], [0, 0, 1, 1], [], []>} : vector<32x192xbf16>, vector<192x64xbf16>, vector<32x64xf32> -> vector<32x64xf32>
    %357 = arith.addf %354, %356 : vector<32x64xf32>
    %c384_212 = arith.constant 384 : index
    %c0_213 = arith.constant 0 : index
    %358 = vector.load %arg28[%c384_212, %c0_213] : memref<400x64xbf16, #tpu.memory_space<vmem>>, vector<1x64xbf16>
    %359 = arith.extf %358 : vector<1x64xbf16> to vector<1x64xf32>
    %360 = vector.broadcast %359 : vector<1x64xf32> to vector<32x64xf32>
    %361 = arith.addf %357, %360 : vector<32x64xf32>
    %cst_214 = arith.constant 0.000000e+00 : f32
    %362 = vector.broadcast %cst_214 : f32 to vector<32x64xf32>
    %363 = arith.maximumf %361, %362 : vector<32x64xf32>
    %364 = arith.truncf %363 : vector<32x64xf32> to vector<32x64xbf16>
    %c0_215 = arith.constant 0 : index
    %c0_216 = arith.constant 0 : index
    %365 = vector.load %arg6[%c0_215, %c0_216] : memref<32x32xbf16, #tpu.memory_space<vmem>>, vector<32x32xbf16>
    %cst_217 = arith.constant dense<0.000000e+00> : vector<32x64xf32>
    %366 = tpu.matmul %365, %364, %cst_217 {dimension_numbers = #tpu.dot_dimension_numbers<[1], [0], [0], [1], [0, 0, 1, 1], [], []>} : vector<32x32xbf16>, vector<32x64xbf16>, vector<32x64xf32> -> vector<32x64xf32>
    %c0_218 = arith.constant 0 : index
    %c0_219 = arith.constant 0 : index
    %367 = vector.load %arg29[%c0_218, %c0_219] : memref<144x64xbf16, #tpu.memory_space<vmem>>, vector<64x64xbf16>
    %368 = arith.truncf %366 : vector<32x64xf32> to vector<32x64xbf16>
    %cst_220 = arith.constant dense<0.000000e+00> : vector<32x64xf32>
    %369 = tpu.matmul %368, %367, %cst_220 {dimension_numbers = #tpu.dot_dimension_numbers<[1], [0], [0], [1], [0, 0, 1, 1], [], []>} : vector<32x64xbf16>, vector<64x64xbf16>, vector<32x64xf32> -> vector<32x64xf32>
    %c64_221 = arith.constant 64 : index
    %c0_222 = arith.constant 0 : index
    %370 = vector.load %arg29[%c64_221, %c0_222] : memref<144x64xbf16, #tpu.memory_space<vmem>>, vector<64x64xbf16>
    %cst_223 = arith.constant dense<0.000000e+00> : vector<32x64xf32>
    %371 = tpu.matmul %364, %370, %cst_223 {dimension_numbers = #tpu.dot_dimension_numbers<[1], [0], [0], [1], [0, 0, 1, 1], [], []>} : vector<32x64xbf16>, vector<64x64xbf16>, vector<32x64xf32> -> vector<32x64xf32>
    %372 = arith.addf %369, %371 : vector<32x64xf32>
    %c128_224 = arith.constant 128 : index
    %c0_225 = arith.constant 0 : index
    %373 = vector.load %arg29[%c128_224, %c0_225] : memref<144x64xbf16, #tpu.memory_space<vmem>>, vector<1x64xbf16>
    %374 = arith.extf %373 : vector<1x64xbf16> to vector<1x64xf32>
    %375 = vector.broadcast %374 : vector<1x64xf32> to vector<32x64xf32>
    %376 = arith.addf %372, %375 : vector<32x64xf32>
    %cst_226 = arith.constant 0.000000e+00 : f32
    %377 = vector.broadcast %cst_226 : f32 to vector<32x64xf32>
    %378 = arith.maximumf %376, %377 : vector<32x64xf32>
    %c0_227 = arith.constant 0 : index
    %c0_228 = arith.constant 0 : index
    %379 = vector.load %arg14[%c0_227, %c0_228] : memref<64x32xbf16, #tpu.memory_space<vmem>>, vector<64x32xbf16>
    %380 = arith.truncf %378 : vector<32x64xf32> to vector<32x64xbf16>
    %cst_229 = arith.constant dense<0.000000e+00> : vector<64x64xf32>
    %381 = tpu.matmul %379, %380, %cst_229 {dimension_numbers = #tpu.dot_dimension_numbers<[1], [0], [0], [1], [0, 0, 1, 1], [], []>} : vector<64x32xbf16>, vector<32x64xbf16>, vector<64x64xf32> -> vector<64x64xf32>
    %cst_230 = arith.constant dense<0.000000e+00> : vector<64xf32>
    %382 = vector.multi_reduction <add>, %381, %cst_230 [0] : vector<64x64xf32> to vector<64xf32>
    %383 = vector.shape_cast %382 : vector<64xf32> to vector<1x64xf32>
    %384 = arith.mulf %381, %381 : vector<64x64xf32>
    %cst_231 = arith.constant dense<0.000000e+00> : vector<64xf32>
    %385 = vector.multi_reduction <add>, %384, %cst_231 [0] : vector<64x64xf32> to vector<64xf32>
    %386 = vector.shape_cast %385 : vector<64xf32> to vector<1x64xf32>
    %cst_232 = arith.constant 1.562500e-02 : f32
    %387 = vector.broadcast %cst_232 : f32 to vector<1x64xf32>
    %388 = arith.mulf %383, %387 : vector<1x64xf32>
    %cst_233 = arith.constant 1.562500e-02 : f32
    %389 = vector.broadcast %cst_233 : f32 to vector<1x64xf32>
    %390 = arith.mulf %386, %389 : vector<1x64xf32>
    %391 = arith.mulf %388, %388 : vector<1x64xf32>
    %392 = arith.subf %390, %391 : vector<1x64xf32>
    %cst_234 = arith.constant 0.000000e+00 : f32
    %393 = vector.broadcast %cst_234 : f32 to vector<1x64xf32>
    %394 = arith.maximumf %392, %393 : vector<1x64xf32>
    %395 = vector.broadcast %388 : vector<1x64xf32> to vector<64x64xf32>
    %396 = arith.subf %381, %395 : vector<64x64xf32>
    %cst_235 = arith.constant 9.99999974E-6 : f32
    %397 = vector.broadcast %cst_235 : f32 to vector<1x64xf32>
    %398 = arith.addf %394, %397 : vector<1x64xf32>
    %399 = math.rsqrt %398 : vector<1x64xf32>
    %400 = vector.broadcast %399 : vector<1x64xf32> to vector<64x64xf32>
    %401 = arith.mulf %396, %400 : vector<64x64xf32>
    %402 = tpu.concatenate %401, %101 in 1 : vector<64x64xf32>, vector<64x64xf32> -> vector<64x128xf32>
    %403 = arith.truncf %402 : vector<64x128xf32> to vector<64x128xbf16>
    %c0_236 = arith.constant 0 : index
    %c0_237 = arith.constant 0 : index
    %404 = vector.load %arg5[%c0_236, %c0_237] : memref<64x64xbf16, #tpu.memory_space<vmem>>, vector<64x64xbf16>
    %cst_238 = arith.constant dense<0.000000e+00> : vector<64x128xf32>
    %405 = tpu.matmul %404, %403, %cst_238 {dimension_numbers = #tpu.dot_dimension_numbers<[1], [0], [0], [1], [0, 0, 1, 1], [], []>} : vector<64x64xbf16>, vector<64x128xbf16>, vector<64x128xf32> -> vector<64x128xf32>
    %c0_239 = arith.constant 0 : index
    %c0_240 = arith.constant 0 : index
    %406 = vector.load %arg30[%c0_239, %c0_240] : memref<272x64xbf16, #tpu.memory_space<vmem>>, vector<128x64xbf16>
    %407 = arith.truncf %405 : vector<64x128xf32> to vector<64x128xbf16>
    %cst_241 = arith.constant dense<0.000000e+00> : vector<64x64xf32>
    %408 = tpu.matmul %407, %406, %cst_241 {dimension_numbers = #tpu.dot_dimension_numbers<[1], [0], [0], [1], [0, 0, 1, 1], [], []>} : vector<64x128xbf16>, vector<128x64xbf16>, vector<64x64xf32> -> vector<64x64xf32>
    %c128_242 = arith.constant 128 : index
    %c0_243 = arith.constant 0 : index
    %409 = vector.load %arg30[%c128_242, %c0_243] : memref<272x64xbf16, #tpu.memory_space<vmem>>, vector<128x64xbf16>
    %cst_244 = arith.constant dense<0.000000e+00> : vector<64x64xf32>
    %410 = tpu.matmul %403, %409, %cst_244 {dimension_numbers = #tpu.dot_dimension_numbers<[1], [0], [0], [1], [0, 0, 1, 1], [], []>} : vector<64x128xbf16>, vector<128x64xbf16>, vector<64x64xf32> -> vector<64x64xf32>
    %411 = arith.addf %408, %410 : vector<64x64xf32>
    %c256_245 = arith.constant 256 : index
    %c0_246 = arith.constant 0 : index
    %412 = vector.load %arg30[%c256_245, %c0_246] : memref<272x64xbf16, #tpu.memory_space<vmem>>, vector<1x64xbf16>
    %413 = arith.extf %412 : vector<1x64xbf16> to vector<1x64xf32>
    %414 = vector.broadcast %413 : vector<1x64xf32> to vector<64x64xf32>
    %415 = arith.addf %411, %414 : vector<64x64xf32>
    %cst_247 = arith.constant 0.000000e+00 : f32
    %416 = vector.broadcast %cst_247 : f32 to vector<64x64xf32>
    %417 = arith.maximumf %415, %416 : vector<64x64xf32>
    %418 = arith.truncf %417 : vector<64x64xf32> to vector<64x64xbf16>
    %c0_248 = arith.constant 0 : index
    %c0_249 = arith.constant 0 : index
    %419 = vector.load %arg4[%c0_248, %c0_249] : memref<32x64xbf16, #tpu.memory_space<vmem>>, vector<32x64xbf16>
    %cst_250 = arith.constant dense<0.000000e+00> : vector<32x64xf32>
    %420 = tpu.matmul %419, %418, %cst_250 {dimension_numbers = #tpu.dot_dimension_numbers<[1], [0], [0], [1], [0, 0, 1, 1], [], []>} : vector<32x64xbf16>, vector<64x64xbf16>, vector<32x64xf32> -> vector<32x64xf32>
    %c0_251 = arith.constant 0 : index
    %c0_252 = arith.constant 0 : index
    %421 = vector.load %arg31[%c0_251, %c0_252] : memref<80x64xbf16, #tpu.memory_space<vmem>>, vector<64x64xbf16>
    %422 = arith.truncf %420 : vector<32x64xf32> to vector<32x64xbf16>
    %cst_253 = arith.constant dense<0.000000e+00> : vector<32x64xf32>
    %423 = tpu.matmul %422, %421, %cst_253 {dimension_numbers = #tpu.dot_dimension_numbers<[1], [0], [0], [1], [0, 0, 1, 1], [], []>} : vector<32x64xbf16>, vector<64x64xbf16>, vector<32x64xf32> -> vector<32x64xf32>
    %c64_254 = arith.constant 64 : index
    %c0_255 = arith.constant 0 : index
    %424 = vector.load %arg31[%c64_254, %c0_255] : memref<80x64xbf16, #tpu.memory_space<vmem>>, vector<1x64xbf16>
    %425 = arith.extf %424 : vector<1x64xbf16> to vector<1x64xf32>
    %426 = vector.broadcast %425 : vector<1x64xf32> to vector<32x64xf32>
    %427 = arith.addf %423, %426 : vector<32x64xf32>
    %cst_256 = arith.constant 0.000000e+00 : f32
    %428 = vector.broadcast %cst_256 : f32 to vector<32x64xf32>
    %429 = arith.maximumf %427, %428 : vector<32x64xf32>
    %c0_257 = arith.constant 0 : index
    %c0_258 = arith.constant 0 : index
    %430 = vector.load %arg32[%c0_257, %c0_258] : memref<80x2xbf16, #tpu.memory_space<vmem>>, vector<64x2xbf16>
    %431 = arith.truncf %429 : vector<32x64xf32> to vector<32x64xbf16>
    %cst_259 = arith.constant dense<0.000000e+00> : vector<32x2xf32>
    %432 = tpu.matmul %431, %430, %cst_259 {dimension_numbers = #tpu.dot_dimension_numbers<[1], [0], [0], [1], [0, 0, 1, 1], [], []>} : vector<32x64xbf16>, vector<64x2xbf16>, vector<32x2xf32> -> vector<32x2xf32>
    %c64_260 = arith.constant 64 : index
    %c0_261 = arith.constant 0 : index
    %433 = vector.load %arg32[%c64_260, %c0_261] : memref<80x2xbf16, #tpu.memory_space<vmem>>, vector<1x2xbf16>
    %434 = arith.extf %433 : vector<1x2xbf16> to vector<1x2xf32>
    %435 = vector.broadcast %434 : vector<1x2xf32> to vector<32x2xf32>
    %436 = arith.addf %432, %435 : vector<32x2xf32>
    %c0_262 = arith.constant 0 : index
    %c0_263 = arith.constant 0 : index
    %437 = vector.load %arg33[%c0_262, %c0_263] : memref<32x2xf32, #tpu.memory_space<vmem>>, vector<32x2xf32>
    tpu.vector_store %arg33[%c0_262, %c0_263], %436 {strides = array<i32>} : memref<32x2xf32, #tpu.memory_space<vmem>>, vector<32x2xf32>,
    return
  }
}

</mosaic_0001>

<llo_original>
// kernel: tpu_custom_call.1
$region0: #{tpu_custom_call.1}
  #allocation0 [shape = 'u32[]', space=smem, size = 0x4, offset = 0x4, fixed_abs, tag = 'smem constant byte address 0x4 - core index']
  #allocation1 [shape = 'u32[144,128]{1,0:T(1,128)}', space=vmem, size = 0x12000, scoped, tag = 'internal scratch']
  %s0 = inlined_call_operand.smem [shape: u32[34], index: -1, kind: input, shape index: {}]
  %s1 = sld [smem:[%s0]]
  %s2 = scalar_lea.smem %s0, 1
  %s3 = sld [smem:[%s2]]
  %s4 = scalar_lea.smem %s0, 2
  %s5 = sld [smem:[%s4]]
  %s6 = scalar_lea.smem %s0, 3
  %s7 = sld [smem:[%s6]]
  %s8 = scalar_lea.smem %s0, 4
  %s9 = sld [smem:[%s8]]
  %s10 = scalar_lea.smem %s0, 5
  %s11 = sld [smem:[%s10]]
  %s12 = scalar_lea.smem %s0, 6
  %s13 = sld [smem:[%s12]]
  %s14 = scalar_lea.smem %s0, 7
  %s15 = sld [smem:[%s14]]
  %s16 = scalar_lea.smem %s0, 8
  %s17 = sld [smem:[%s16]]
  %s18 = scalar_lea.smem %s0, 9
  %s19 = sld [smem:[%s18]]
  %s20 = scalar_lea.smem %s0, 10
  %s21 = sld [smem:[%s20]]
  %s22 = scalar_lea.smem %s0, 11
  %s23 = sld [smem:[%s22]]
  %s24 = scalar_lea.smem %s0, 12
  %s25 = sld [smem:[%s24]]
  %s26 = scalar_lea.smem %s0, 13
  %s27 = sld [smem:[%s26]]
  %s28 = scalar_lea.smem %s0, 14
  %s29 = sld [smem:[%s28]]
  %s30 = scalar_lea.smem %s0, 15
  %s31 = sld [smem:[%s30]]
  %s32 = scalar_lea.smem %s0, 16
  %s33 = sld [smem:[%s32]]
  %s34 = scalar_lea.smem %s0, 17
  %s35 = sld [smem:[%s34]]
  %s36 = scalar_lea.smem %s0, 18
  %s37 = sld [smem:[%s36]]
  %s38 = scalar_lea.smem %s0, 19
  %s39 = sld [smem:[%s38]]
  %s40 = scalar_lea.smem %s0, 20
  %s41 = sld [smem:[%s40]]
  %s42 = scalar_lea.smem %s0, 21
  %s43 = sld [smem:[%s42]]
  %s44 = scalar_lea.smem %s0, 22
  %s45 = sld [smem:[%s44]]
  %s46 = scalar_lea.smem %s0, 23
  %s47 = sld [smem:[%s46]]
  %s48 = scalar_lea.smem %s0, 24
  %s49 = sld [smem:[%s48]]
  %s50 = scalar_lea.smem %s0, 25
  %s51 = sld [smem:[%s50]]
  %s52 = scalar_lea.smem %s0, 26
  %s53 = sld [smem:[%s52]]
  %s54 = scalar_lea.smem %s0, 27
  %s55 = sld [smem:[%s54]]
  %s56 = scalar_lea.smem %s0, 28
  %s57 = sld [smem:[%s56]]
  %s58 = scalar_lea.smem %s0, 29
  %s59 = sld [smem:[%s58]]
  %s60 = scalar_lea.smem %s0, 30
  %s61 = sld [smem:[%s60]]
  %s62 = scalar_lea.smem %s0, 31
  %s63 = sld [smem:[%s62]]
  %s64 = scalar_lea.smem %s0, 32
  %s65 = sld [smem:[%s64]]
  %s66 = scalar_lea.smem %s0, 33
  %s67 = sld [smem:[%s66]]
  %s68 = sld [smem:[#allocation0]]
  $region142: #{tpu_custom_call.1} parent=0
    _
  %s70 = ssub.s32 1, %s68
  %s71 = scalar_select 0, %s70, %s68
  // Predicated region
  $region2: #{tpu_custom_call.1} parent=0 // pred_check
    _
  $region3: #{tpu_custom_call.1} parent=0 // pred_check_branch
    %73 = sbr.rel (0) target = $region5
  $region4: #{tpu_custom_call.1} parent=0 // pred_region
    _
  $region5: #{tpu_custom_call.1} parent=0 // pred_fallthru
    _
  // Predicated region
  $region6: #{tpu_custom_call.1} parent=0 // pred_check
    _
  $region7: #{tpu_custom_call.1} parent=0 // pred_check_branch
    %75 = sbr.rel (0) target = $region9
  $region8: #{tpu_custom_call.1} parent=0 // pred_region
    _
  $region9: #{tpu_custom_call.1} parent=0 // pred_fallthru
    _
  // Predicated region
  $region10: #{tpu_custom_call.1} parent=0 // pred_check
    _
  $region11: #{tpu_custom_call.1} parent=0 // pred_check_branch
    %77 = sbr.rel (0) target = $region13
  $region12: #{tpu_custom_call.1} parent=0 // pred_region
    _
  $region13: #{tpu_custom_call.1} parent=0 // pred_fallthru
    _
  // Predicated region
  $region14: #{tpu_custom_call.1} parent=0 // pred_check
    _
  $region15: #{tpu_custom_call.1} parent=0 // pred_check_branch
    %79 = sbr.rel (0) target = $region17
  $region16: #{tpu_custom_call.1} parent=0 // pred_region
    _
  $region17: #{tpu_custom_call.1} parent=0 // pred_fallthru
    _
  // Predicated region
  $region18: #{tpu_custom_call.1} parent=0 // pred_check
    _
  $region19: #{tpu_custom_call.1} parent=0 // pred_check_branch
    %81 = sbr.rel (0) target = $region21
  $region20: #{tpu_custom_call.1} parent=0 // pred_region
    _
  $region21: #{tpu_custom_call.1} parent=0 // pred_fallthru
    _
  // Predicated region
  $region22: #{tpu_custom_call.1} parent=0 // pred_check
    _
  $region23: #{tpu_custom_call.1} parent=0 // pred_check_branch
    %83 = sbr.rel (0) target = $region25
  $region24: #{tpu_custom_call.1} parent=0 // pred_region
    _
  $region25: #{tpu_custom_call.1} parent=0 // pred_fallthru
    _
  // Predicated region
  $region26: #{tpu_custom_call.1} parent=0 // pred_check
    _
  $region27: #{tpu_custom_call.1} parent=0 // pred_check_branch
    %85 = sbr.rel (0) target = $region29
  $region28: #{tpu_custom_call.1} parent=0 // pred_region
    _
  $region29: #{tpu_custom_call.1} parent=0 // pred_fallthru
    _
  // Predicated region
  $region30: #{tpu_custom_call.1} parent=0 // pred_check
    _
  $region31: #{tpu_custom_call.1} parent=0 // pred_check_branch
    %87 = sbr.rel (0) target = $region33
  $region32: #{tpu_custom_call.1} parent=0 // pred_region
    _
  $region33: #{tpu_custom_call.1} parent=0 // pred_fallthru
    _
  // Predicated region
  $region34: #{tpu_custom_call.1} parent=0 // pred_check
    _
  $region35: #{tpu_custom_call.1} parent=0 // pred_check_branch
    %89 = sbr.rel (0) target = $region37
  $region36: #{tpu_custom_call.1} parent=0 // pred_region
    _
  $region37: #{tpu_custom_call.1} parent=0 // pred_fallthru
    _
  // Predicated region
  $region38: #{tpu_custom_call.1} parent=0 // pred_check
    _
  $region39: #{tpu_custom_call.1} parent=0 // pred_check_branch
    %91 = sbr.rel (0) target = $region41
  $region40: #{tpu_custom_call.1} parent=0 // pred_region
    _
  $region41: #{tpu_custom_call.1} parent=0 // pred_fallthru
    _
  // Predicated region
  $region42: #{tpu_custom_call.1} parent=0 // pred_check
    _
  $region43: #{tpu_custom_call.1} parent=0 // pred_check_branch
    %93 = sbr.rel (0) target = $region45
  $region44: #{tpu_custom_call.1} parent=0 // pred_region
    _
  $region45: #{tpu_custom_call.1} parent=0 // pred_fallthru
    _
  // Predicated region
  $region46: #{tpu_custom_call.1} parent=0 // pred_check
    _
  $region47: #{tpu_custom_call.1} parent=0 // pred_check_branch
    %95 = sbr.rel (0) target = $region49
  $region48: #{tpu_custom_call.1} parent=0 // pred_region
    _
  $region49: #{tpu_custom_call.1} parent=0 // pred_fallthru
    _
  // Predicated region
  $region50: #{tpu_custom_call.1} parent=0 // pred_check
    _
  $region51: #{tpu_custom_call.1} parent=0 // pred_check_branch
    %97 = sbr.rel (0) target = $region53
  $region52: #{tpu_custom_call.1} parent=0 // pred_region
    _
  $region53: #{tpu_custom_call.1} parent=0 // pred_fallthru
    _
  // Predicated region
  $region54: #{tpu_custom_call.1} parent=0 // pred_check
    _
  $region55: #{tpu_custom_call.1} parent=0 // pred_check_branch
    %99 = sbr.rel (0) target = $region57
  $region56: #{tpu_custom_call.1} parent=0 // pred_region
    _
  $region57: #{tpu_custom_call.1} parent=0 // pred_fallthru
    _
  // Predicated region
  $region58: #{tpu_custom_call.1} parent=0 // pred_check
    _
  $region59: #{tpu_custom_call.1} parent=0 // pred_check_branch
    %101 = sbr.rel (0) target = $region61
  $region60: #{tpu_custom_call.1} parent=0 // pred_region
    _
  $region61: #{tpu_custom_call.1} parent=0 // pred_fallthru
    _
  // Predicated region
  $region62: #{tpu_custom_call.1} parent=0 // pred_check
    _
  $region63: #{tpu_custom_call.1} parent=0 // pred_check_branch
    %103 = sbr.rel (0) target = $region65
  $region64: #{tpu_custom_call.1} parent=0 // pred_region
    _
  $region65: #{tpu_custom_call.1} parent=0 // pred_fallthru
    _
  // Predicated region
  $region66: #{tpu_custom_call.1} parent=0 // pred_check
    _
  $region67: #{tpu_custom_call.1} parent=0 // pred_check_branch
    %105 = sbr.rel (0) target = $region69
  $region68: #{tpu_custom_call.1} parent=0 // pred_region
    _
  $region69: #{tpu_custom_call.1} parent=0 // pred_fallthru
    _
  // Predicated region
  $region70: #{tpu_custom_call.1} parent=0 // pred_check
    _
  $region71: #{tpu_custom_call.1} parent=0 // pred_check_branch
    %107 = sbr.rel (0) target = $region73
  $region72: #{tpu_custom_call.1} parent=0 // pred_region
    _
  $region73: #{tpu_custom_call.1} parent=0 // pred_fallthru
    _
  // Predicated region
  $region74: #{tpu_custom_call.1} parent=0 // pred_check
    _
  $region75: #{tpu_custom_call.1} parent=0 // pred_check_branch
    %109 = sbr.rel (0) target = $region77
  $region76: #{tpu_custom_call.1} parent=0 // pred_region
    _
  $region77: #{tpu_custom_call.1} parent=0 // pred_fallthru
    _
  // Predicated region
  $region78: #{tpu_custom_call.1} parent=0 // pred_check
    _
  $region79: #{tpu_custom_call.1} parent=0 // pred_check_branch
    %111 = sbr.rel (0) target = $region81
  $region80: #{tpu_custom_call.1} parent=0 // pred_region
    _
  $region81: #{tpu_custom_call.1} parent=0 // pred_fallthru
    _
  // Predicated region
  $region82: #{tpu_custom_call.1} parent=0 // pred_check
    _
  $region83: #{tpu_custom_call.1} parent=0 // pred_check_branch
    %113 = sbr.rel (0) target = $region85
  $region84: #{tpu_custom_call.1} parent=0 // pred_region
    _
  $region85: #{tpu_custom_call.1} parent=0 // pred_fallthru
    _
  // Predicated region
  $region86: #{tpu_custom_call.1} parent=0 // pred_check
    _
  $region87: #{tpu_custom_call.1} parent=0 // pred_check_branch
    %115 = sbr.rel (0) target = $region89
  $region88: #{tpu_custom_call.1} parent=0 // pred_region
    _
  $region89: #{tpu_custom_call.1} parent=0 // pred_fallthru
    _
  // Predicated region
  $region90: #{tpu_custom_call.1} parent=0 // pred_check
    _
  $region91: #{tpu_custom_call.1} parent=0 // pred_check_branch
    %117 = sbr.rel (0) target = $region93
  $region92: #{tpu_custom_call.1} parent=0 // pred_region
    _
  $region93: #{tpu_custom_call.1} parent=0 // pred_fallthru
    _
  // Predicated region
  $region94: #{tpu_custom_call.1} parent=0 // pred_check
    _
  $region95: #{tpu_custom_call.1} parent=0 // pred_check_branch
    %119 = sbr.rel (0) target = $region97
  $region96: #{tpu_custom_call.1} parent=0 // pred_region
    _
  $region97: #{tpu_custom_call.1} parent=0 // pred_fallthru
    _
  // Predicated region
  $region98: #{tpu_custom_call.1} parent=0 // pred_check
    _
  $region99: #{tpu_custom_call.1} parent=0 // pred_check_branch
    %121 = sbr.rel (0) target = $region101
  $region100: #{tpu_custom_call.1} parent=0 // pred_region
    _
  $region101: #{tpu_custom_call.1} parent=0 // pred_fallthru
    _
  // Predicated region
  $region102: #{tpu_custom_call.1} parent=0 // pred_check
    _
  $region103: #{tpu_custom_call.1} parent=0 // pred_check_branch
    %123 = sbr.rel (0) target = $region105
  $region104: #{tpu_custom_call.1} parent=0 // pred_region
    _
  $region105: #{tpu_custom_call.1} parent=0 // pred_fallthru
    _
  // Predicated region
  $region106: #{tpu_custom_call.1} parent=0 // pred_check
    _
  $region107: #{tpu_custom_call.1} parent=0 // pred_check_branch
    %125 = sbr.rel (0) target = $region109
  $region108: #{tpu_custom_call.1} parent=0 // pred_region
    _
  $region109: #{tpu_custom_call.1} parent=0 // pred_fallthru
    _
  // Predicated region
  $region110: #{tpu_custom_call.1} parent=0 // pred_check
    _
  $region111: #{tpu_custom_call.1} parent=0 // pred_check_branch
    %127 = sbr.rel (0) target = $region113
  $region112: #{tpu_custom_call.1} parent=0 // pred_region
    _
  $region113: #{tpu_custom_call.1} parent=0 // pred_fallthru
    _
  // Predicated region
  $region114: #{tpu_custom_call.1} parent=0 // pred_check
    _
  $region115: #{tpu_custom_call.1} parent=0 // pred_check_branch
    %129 = sbr.rel (0) target = $region117
  $region116: #{tpu_custom_call.1} parent=0 // pred_region
    _
  $region117: #{tpu_custom_call.1} parent=0 // pred_fallthru
    _
  // Predicated region
  $region118: #{tpu_custom_call.1} parent=0 // pred_check
    _
  $region119: #{tpu_custom_call.1} parent=0 // pred_check_branch
    %131 = sbr.rel (0) target = $region121
  $region120: #{tpu_custom_call.1} parent=0 // pred_region
    _
  $region121: #{tpu_custom_call.1} parent=0 // pred_fallthru
    _
  // Predicated region
  $region122: #{tpu_custom_call.1} parent=0 // pred_check
    _
  $region123: #{tpu_custom_call.1} parent=0 // pred_check_branch
    %133 = sbr.rel (0) target = $region125
  $region124: #{tpu_custom_call.1} parent=0 // pred_region
    _
  $region125: #{tpu_custom_call.1} parent=0 // pred_fallthru
    _
  // Predicated region
  $region126: #{tpu_custom_call.1} parent=0 // pred_check
    _
  $region127: #{tpu_custom_call.1} parent=0 // pred_check_branch
    %135 = sbr.rel (0) target = $region129
  $region128: #{tpu_custom_call.1} parent=0 // pred_region
    _
  $region129: #{tpu_custom_call.1} parent=0 // pred_fallthru
    _
  // Predicated region
  $region130: #{tpu_custom_call.1} parent=0 // pred_check
    _
  $region131: #{tpu_custom_call.1} parent=0 // pred_check_branch
    %137 = sbr.rel (0) target = $region133
  $region132: #{tpu_custom_call.1} parent=0 // pred_region
    _
  $region133: #{tpu_custom_call.1} parent=0 // pred_fallthru
    _
  %v139 = vld [vmem:[%s1] sm:$0xff]
  %v140 = vld [vmem:[%s1 + $0x8] sm:$0xff]
  %v141 = vld [vmem:[%s1 + $0x10] sm:$0xff]
  %v142 = vld [vmem:[%s1 + $0x18] sm:$0xff]
  %vm143 = vcmask 31744
  %v144 = vsel %vm143, %v139, 0.0
  %v145 = vsel %vm143, %v140, 0.0
  %v146 = vadd.f32 %v144, %v145
  %v147 = vsel %vm143, %v141, 0.0
  %v148 = vadd.f32 %v146, %v147
  %v149 = vsel %vm143, %v142, 0.0
  %v150 = vadd.f32 %v148, %v149
  %v151 = vrot.slane %v150, 4
  %v152 = vadd.f32 %v150, %v151
  %v153 = vrot.slane %v152, 2
  %v154 = vadd.f32 %v152, %v153
  %v155 = vrot.slane %v154, 1
  %v156 = vadd.f32 %v154, %v155
  %v157 = vmul.f32 %v139, %v139
  %v158 = vmul.f32 %v140, %v140
  %v159 = vmul.f32 %v141, %v141
  %v160 = vmul.f32 %v142, %v142
  %v161 = vsel %vm143, %v157, 0.0
  %v162 = vsel %vm143, %v158, 0.0
  %v163 = vadd.f32 %v161, %v162
  %v164 = vsel %vm143, %v159, 0.0
  %v165 = vadd.f32 %v163, %v164
  %v166 = vsel %vm143, %v160, 0.0
  %v167 = vadd.f32 %v165, %v166
  %v168 = vrot.slane %v167, 4
  %v169 = vadd.f32 %v167, %v168
  %v170 = vrot.slane %v169, 2
  %v171 = vadd.f32 %v169, %v170
  %v172 = vrot.slane %v171, 1
  %v173 = vadd.f32 %v171, %v172
  %v174 = vmul.f32 %v156, 0.03125
  %v175 = vmul.f32 %v173, 0.03125
  %v176 = vmul.f32 %v174, %v174
  %v177 = vsub.f32 %v175, %v176
  %v178 = vmax.f32 %v177, 0.0
  %v179 = vsub.f32 %v139, %v174
  %v180 = vsub.f32 %v140, %v174
  %v181 = vsub.f32 %v141, %v174
  %v182 = vsub.f32 %v142, %v174
  %v183 = vadd.f32 %v178, 1e-05
  %v184 = vrsqrt.pop %v183
  %v185 = vmul.f32 %v179, %v184
  %v186 = vmul.f32 %v180, %v184
  %v187 = vmul.f32 %v181, %v184
  %v188 = vmul.f32 %v182, %v184
  %v189 = vld [vmem:[%s3] sm:$0xff]
  %v190 = vld [vmem:[%s3 + $0x8] sm:$0xff]
  %v191 = vld [vmem:[%s3 + $0x10] sm:$0xff]
  %v192 = vld [vmem:[%s3 + $0x18] sm:$0xff]
  %v193 = vld [vmem:[%s3 + $0x20] sm:$0xff]
  %v194 = vld [vmem:[%s3 + $0x28] sm:$0xff]
  %vm195 = vcmask 64512
  %v196 = vsel %vm195, %v189, 0.0
  %v197 = vsel %vm195, %v190, 0.0
  %v198 = vadd.f32 %v196, %v197
  %v199 = vsel %vm195, %v191, 0.0
  %v200 = vadd.f32 %v198, %v199
  %v201 = vsel %vm195, %v192, 0.0
  %v202 = vadd.f32 %v200, %v201
  %v203 = vsel %vm195, %v193, 0.0
  %v204 = vadd.f32 %v202, %v203
  %v205 = vsel %vm195, %v194, 0.0
  %v206 = vadd.f32 %v204, %v205
  %v207 = vrot.slane %v206, 4
  %v208 = vadd.f32 %v206, %v207
  %v209 = vrot.slane %v208, 2
  %v210 = vadd.f32 %v208, %v209
  %v211 = vrot.slane %v210, 1
  %v212 = vadd.f32 %v210, %v211
  %v213 = vmul.f32 %v189, %v189
  %v214 = vmul.f32 %v190, %v190
  %v215 = vmul.f32 %v191, %v191
  %v216 = vmul.f32 %v192, %v192
  %v217 = vmul.f32 %v193, %v193
  %v218 = vmul.f32 %v194, %v194
  %v219 = vsel %vm195, %v213, 0.0
  %v220 = vsel %vm195, %v214, 0.0
  %v221 = vadd.f32 %v219, %v220
  %v222 = vsel %vm195, %v215, 0.0
  %v223 = vadd.f32 %v221, %v222
  %v224 = vsel %vm195, %v216, 0.0
  %v225 = vadd.f32 %v223, %v224
  %v226 = vsel %vm195, %v217, 0.0
  %v227 = vadd.f32 %v225, %v226
  %v228 = vsel %vm195, %v218, 0.0
  %v229 = vadd.f32 %v227, %v228
  %v230 = vrot.slane %v229, 4
  %v231 = vadd.f32 %v229, %v230
  %v232 = vrot.slane %v231, 2
  %v233 = vadd.f32 %v231, %v232
  %v234 = vrot.slane %v233, 1
  %v235 = vadd.f32 %v233, %v234
  %v236 = vmul.f32 %v212, 0.020833334
  %v237 = vmul.f32 %v235, 0.020833334
  %v238 = vmul.f32 %v236, %v236
  %v239 = vsub.f32 %v237, %v238
  %v240 = vmax.f32 %v239, 0.0
  %v241 = vsub.f32 %v189, %v236
  %v242 = vsub.f32 %v190, %v236
  %v243 = vsub.f32 %v191, %v236
  %v244 = vsub.f32 %v192, %v236
  %v245 = vsub.f32 %v193, %v236
  %v246 = vsub.f32 %v194, %v236
  %v247 = vadd.f32 %v240, 1e-05
  %v248 = vrsqrt.pop %v247
  %v249 = vmul.f32 %v241, %v248
  %v250 = vmul.f32 %v242, %v248
  %v251 = vmul.f32 %v243, %v248
  %v252 = vmul.f32 %v244, %v248
  %v253 = vmul.f32 %v245, %v248
  %v254 = vmul.f32 %v246, %v248
  %v255 = vpack.c.bf16 %v186, %v185
  %v256 = vpack.c.bf16 %v188, %v187
  %v257 = vld [vmem:[%s5] sm:$0xf]
  %v258 = vld [vmem:[%s5 + $0x4] sm:$0xf]
  %v259 = vld [vmem:[%s5 + $0x8] sm:$0xf]
  %v260 = vld [vmem:[%s5 + $0xc] sm:$0xf]
  %v261 = vld [vmem:[%s5 + $0x10] sm:$0xf]
  %v262 = vld [vmem:[%s5 + $0x14] sm:$0xf]
  %v269 = vunpack.c.l.b16 %v257
  %v270 = vunpack.c.l.b16 %v258
  %v271 = vunpack.c.l.b16 %v259
  %v272 = vunpack.c.l.b16 %v260
  %v273 = vunpack.c.l.b16 %v261
  %v274 = vunpack.c.l.b16 %v262
  %v275 = vpack.c.b16 %v270, %v269
  %v276 = vpack.c.b16 %v272, %v271
  %v277 = vpack.c.b16 %v274, %v273
  %vm278 = vcmask 261120
  %v280 = vsel %vm278, %v275, 0
  %v283 = vsel %vm278, %v276, 0
  %v286 = vsel %vm278, %v277, 0
  %288 = vmatprep.subr.bf16.mxu0 0
  %289 = vmatpush1.bf16.msra.mxu0 %v255
  %290 = vmatprep.subr.bf16.mxu0 0
  %291 = vmatpush1.bf16.msra.mxu0 %v256
  %292 = vmatprep.subr.bf16.mxu0 0
  %293 = vmatpush1.bf16.msra.mxu0 0
  %294 = vmatprep.subr.bf16.mxu0 0
  %295 = vmatpush1.bf16.msra.mxu0 0
  %296 = vmatprep.subr.bf16.mxu0 0
  %297 = vmatpush1.bf16.msra.mxu0 0
  %298 = vmatprep.subr.bf16.mxu0 0
  %299 = vmatpush1.bf16.msra.mxu0 0
  %300 = vmatprep.subr.bf16.mxu0 0
  %301 = vmatpush1.bf16.msra.mxu0 0
  %302 = vmatprep.subr.bf16.mxu0 0
  %303 = vmatpush1.bf16.msra.mxu0 0
  %304 = vmatprep.subr.bf16.mxu0 0
  %305 = vmatpush1.bf16.msra.mxu0 0
  %306 = vmatprep.subr.bf16.mxu0 0
  %307 = vmatpush1.bf16.msra.mxu0 0
  %308 = vmatprep.subr.bf16.mxu0 0
  %309 = vmatpush1.bf16.msra.mxu0 0
  %310 = vmatprep.subr.bf16.mxu0 0
  %311 = vmatpush1.bf16.msra.mxu0 0
  %312 = vmatprep.subr.bf16.mxu0 0
  %313 = vmatpush1.bf16.msra.mxu0 0
  %314 = vmatprep.subr.bf16.mxu0 0
  %315 = vmatpush1.bf16.msra.mxu0 0
  %316 = vmatprep.subr.bf16.mxu0 0
  %317 = vmatpush1.bf16.msra.mxu0 0
  %318 = vmatprep.subr.bf16.mxu0 0
  %319 = vmatpush1.bf16.msra.mxu0 0
  %320 = vmatprep.mubr.bf16.mxu0 0
  %321 = vmatmul.mubr.bf16.gmra.mrb[0].mxu0 %v280
  %v322 = vpop.f32.mrb[0].mxu0
  %v323 = vadd.f32 0.0, %v322
  %v324 = vpop.f32.mrb[0].mxu0
  %v325 = vpop.f32.mrb[0].mxu0
  %v326 = vadd.f32 0.0, %v325
  %v327 = vpop.f32.mrb[0].mxu0
  %328 = vmatprep.mubr.bf16.mxu0 0
  %329 = vmatmul.mubr.bf16.gmra.mrb[0].mxu0 %v283
  %v330 = vpop.f32.mrb[0].mxu0
  %v331 = vadd.f32 0.0, %v330
  %v332 = vpop.f32.mrb[0].mxu0
  %v333 = vpop.f32.mrb[0].mxu0
  %v334 = vadd.f32 0.0, %v333
  %v335 = vpop.f32.mrb[0].mxu0
  %336 = vmatprep.mubr.bf16.mxu0 0
  %337 = vmatmul.mubr.bf16.gmra.mrb[0].mxu0 %v286
  %v338 = vpop.f32.mrb[0].mxu0
  %v339 = vadd.f32 0.0, %v338
  %v340 = vpop.f32.mrb[0].mxu0
  %v341 = vpop.f32.mrb[0].mxu0
  %v342 = vadd.f32 0.0, %v341
  %v343 = vpop.f32.mrb[0].mxu0
  %344 = vdwg.mxu0
  %v345 = vld [vmem:[%s31] sm:$0x3]
  %v346 = vpack.c.bf16 %v326, %v323
  %v347 = vpack.c.bf16 %v334, %v331
  %v348 = vpack.c.bf16 %v342, %v339
  %v349 = vld [vmem:[%s31 + $0x8] sm:$0x1]
  %v350 = vunpack.c.l.bf16 %v349
  %v351 = vlaneseq
  %v352 = vshrl.u32 %v351, 7
  %v353 = vsub.s32 0, %v352
  %v354 = vrot.slane %v350, %v353
  %v356 = vsel %vm143, %v346, 0
  %v359 = vsel %vm143, %v347, 0
  %v362 = vsel %vm143, %v348, 0
  %vm364 = vcmask 1041408
  %v366 = vsel %vm364, %v345, 0
  %368 = vmatprep.subr.bf16.mxu0 0
  %369 = vmatpush1.bf16.msra.mxu0 %v366
  %370 = vmatprep.subr.bf16.mxu0 0
  %371 = vmatpush1.bf16.msra.mxu0 0
  %372 = vmatprep.subr.bf16.mxu0 0
  %373 = vmatpush1.bf16.msra.mxu0 0
  %374 = vmatprep.subr.bf16.mxu0 0
  %375 = vmatpush1.bf16.msra.mxu0 0
  %376 = vmatprep.subr.bf16.mxu0 0
  %377 = vmatpush1.bf16.msra.mxu0 0
  %378 = vmatprep.subr.bf16.mxu0 0
  %379 = vmatpush1.bf16.msra.mxu0 0
  %380 = vmatprep.subr.bf16.mxu0 0
  %381 = vmatpush1.bf16.msra.mxu0 0
  %382 = vmatprep.subr.bf16.mxu0 0
  %383 = vmatpush1.bf16.msra.mxu0 0
  %384 = vmatprep.subr.bf16.mxu0 0
  %385 = vmatpush1.bf16.msra.mxu0 0
  %386 = vmatprep.subr.bf16.mxu0 0
  %387 = vmatpush1.bf16.msra.mxu0 0
  %388 = vmatprep.subr.bf16.mxu0 0
  %389 = vmatpush1.bf16.msra.mxu0 0
  %390 = vmatprep.subr.bf16.mxu0 0
  %391 = vmatpush1.bf16.msra.mxu0 0
  %392 = vmatprep.subr.bf16.mxu0 0
  %393 = vmatpush1.bf16.msra.mxu0 0
  %394 = vmatprep.subr.bf16.mxu0 0
  %395 = vmatpush1.bf16.msra.mxu0 0
  %396 = vmatprep.subr.bf16.mxu0 0
  %397 = vmatpush1.bf16.msra.mxu0 0
  %398 = vmatprep.subr.bf16.mxu0 0
  %399 = vmatpush1.bf16.msra.mxu0 0
  %400 = vmatprep.mubr.bf16.mxu0 0
  %401 = vmatmul.mubr.bf16.gmra.mrb[0].mxu0 %v356
  %v402 = vpop.f32.mrb[0].mxu0
  %v403 = vadd.f32 %v354, %v402
  %v404 = vpop.f32.mrb[0].mxu0
  %v405 = vpop.f32.mrb[0].mxu0
  %v406 = vadd.f32 %v354, %v405
  %v407 = vpop.f32.mrb[0].mxu0
  %408 = vmatprep.mubr.bf16.mxu0 0
  %409 = vmatmul.mubr.bf16.gmra.mrb[0].mxu0 %v359
  %v410 = vpop.f32.mrb[0].mxu0
  %v411 = vadd.f32 %v354, %v410
  %v412 = vpop.f32.mrb[0].mxu0
  %v413 = vpop.f32.mrb[0].mxu0
  %v414 = vadd.f32 %v354, %v413
  %v415 = vpop.f32.mrb[0].mxu0
  %416 = vmatprep.mubr.bf16.mxu0 0
  %417 = vmatmul.mubr.bf16.gmra.mrb[0].mxu0 %v362
  %v418 = vpop.f32.mrb[0].mxu0
  %v419 = vadd.f32 %v354, %v418
  %v420 = vpop.f32.mrb[0].mxu0
  %v421 = vpop.f32.mrb[0].mxu0
  %v422 = vadd.f32 %v354, %v421
  %v423 = vpop.f32.mrb[0].mxu0
  %424 = vdwg.mxu0
  %v425 = vmax.f32 %v403, 0.0
  %v426 = vmax.f32 %v406, 0.0
  %v427 = vmax.f32 %v411, 0.0
  %v428 = vmax.f32 %v414, 0.0
  %v429 = vmax.f32 %v419, 0.0
  %v430 = vmax.f32 %v422, 0.0
  %437 = vrot.lane.b32.xlu0 %v249, 56
  %v438 = vpop.permute.xlu0 %437
  %439 = vrot.lane.b32.xlu0 %v250, 56
  %v440 = vpop.permute.xlu0 %439
  %441 = vrot.lane.b32.xlu0 %v251, 56
  %v442 = vpop.permute.xlu0 %441
  %443 = vrot.lane.b32.xlu0 %v252, 56
  %v444 = vpop.permute.xlu0 %443
  %445 = vrot.lane.b32.xlu0 %v253, 56
  %v446 = vpop.permute.xlu0 %445
  %447 = vrot.lane.b32.xlu0 %v254, 56
  %v448 = vpop.permute.xlu0 %447
  %vm455 = vcmask 457728
  %v456 = vsel %vm455, %v425, %v438
  %v457 = vsel %vm455, %v426, %v440
  %v458 = vsel %vm455, %v427, %v442
  %v459 = vsel %vm455, %v428, %v444
  %v460 = vsel %vm455, %v429, %v446
  %v461 = vsel %vm455, %v430, %v448
  %v462 = vpack.c.bf16 %v457, %v456
  %v463 = vpack.c.bf16 %v459, %v458
  %v464 = vpack.c.bf16 %v461, %v460
  %v465 = vld [vmem:[%s7] sm:$0xf]
  %v466 = vld [vmem:[%s7 + $0x4] sm:$0xf]
  %v467 = vld [vmem:[%s7 + $0x8] sm:$0xf]
  %v468 = vld [vmem:[%s7 + $0xc] sm:$0xf]
  %v469 = vld [vmem:[%s7 + $0x10] sm:$0xf]
  %v470 = vld [vmem:[%s7 + $0x14] sm:$0xf]
  %v471 = vld [vmem:[%s7 + $0x18] sm:$0xf]
  %v472 = vld [vmem:[%s7 + $0x1c] sm:$0xf]
  %v481 = vunpack.c.l.b16 %v465
  %v482 = vunpack.c.l.b16 %v466
  %v483 = vunpack.c.l.b16 %v467
  %v484 = vunpack.c.l.b16 %v468
  %v485 = vunpack.c.l.b16 %v469
  %v486 = vunpack.c.l.b16 %v470
  %v487 = vunpack.c.l.b16 %v471
  %v488 = vunpack.c.l.b16 %v472
  %v489 = vpack.c.b16 %v482, %v481
  %v490 = vpack.c.b16 %v484, %v483
  %v491 = vpack.c.b16 %v486, %v485
  %v492 = vpack.c.b16 %v488, %v487
  %vm493 = vcmask 392192
  %v495 = vsel %vm493, %v489, 0
  %v498 = vsel %vm493, %v490, 0
  %v501 = vsel %vm493, %v491, 0
  %v504 = vsel %vm493, %v492, 0
  %506 = vmatprep.subr.bf16.mxu0 0
  %507 = vmatpush1.bf16.msra.mxu0 %v462
  %508 = vmatprep.subr.bf16.mxu0 0
  %509 = vmatpush1.bf16.msra.mxu0 %v463
  %510 = vmatprep.subr.bf16.mxu0 0
  %511 = vmatpush1.bf16.msra.mxu0 %v464
  %512 = vmatprep.subr.bf16.mxu0 0
  %513 = vmatpush1.bf16.msra.mxu0 0
  %514 = vmatprep.subr.bf16.mxu0 0
  %515 = vmatpush1.bf16.msra.mxu0 0
  %516 = vmatprep.subr.bf16.mxu0 0
  %517 = vmatpush1.bf16.msra.mxu0 0
  %518 = vmatprep.subr.bf16.mxu0 0
  %519 = vmatpush1.bf16.msra.mxu0 0
  %520 = vmatprep.subr.bf16.mxu0 0
  %521 = vmatpush1.bf16.msra.mxu0 0
  %522 = vmatprep.subr.bf16.mxu0 0
  %523 = vmatpush1.bf16.msra.mxu0 0
  %524 = vmatprep.subr.bf16.mxu0 0
  %525 = vmatpush1.bf16.msra.mxu0 0
  %526 = vmatprep.subr.bf16.mxu0 0
  %527 = vmatpush1.bf16.msra.mxu0 0
  %528 = vmatprep.subr.bf16.mxu0 0
  %529 = vmatpush1.bf16.msra.mxu0 0
  %530 = vmatprep.subr.bf16.mxu0 0
  %531 = vmatpush1.bf16.msra.mxu0 0
  %532 = vmatprep.subr.bf16.mxu0 0
  %533 = vmatpush1.bf16.msra.mxu0 0
  %534 = vmatprep.subr.bf16.mxu0 0
  %535 = vmatpush1.bf16.msra.mxu0 0
  %536 = vmatprep.subr.bf16.mxu0 0
  %537 = vmatpush1.bf16.msra.mxu0 0
  %538 = vmatprep.mubr.bf16.mxu0 0
  %539 = vmatmul.mubr.bf16.gmra.mrb[0].mxu0 %v495
  %v540 = vpop.f32.mrb[0].mxu0
  %v541 = vadd.f32 0.0, %v540
  %v542 = vpop.f32.mrb[0].mxu0
  %v543 = vpop.f32.mrb[0].mxu0
  %v544 = vadd.f32 0.0, %v543
  %v545 = vpop.f32.mrb[0].mxu0
  %546 = vmatprep.mubr.bf16.mxu0 0
  %547 = vmatmul.mubr.bf16.gmra.mrb[0].mxu0 %v498
  %v548 = vpop.f32.mrb[0].mxu0
  %v549 = vadd.f32 0.0, %v548
  %v550 = vpop.f32.mrb[0].mxu0
  %v551 = vpop.f32.mrb[0].mxu0
  %v552 = vadd.f32 0.0, %v551
  %v553 = vpop.f32.mrb[0].mxu0
  %554 = vmatprep.mubr.bf16.mxu0 0
  %555 = vmatmul.mubr.bf16.gmra.mrb[0].mxu0 %v501
  %v556 = vpop.f32.mrb[0].mxu0
  %v557 = vadd.f32 0.0, %v556
  %v558 = vpop.f32.mrb[0].mxu0
  %v559 = vpop.f32.mrb[0].mxu0
  %v560 = vadd.f32 0.0, %v559
  %v561 = vpop.f32.mrb[0].mxu0
  %562 = vmatprep.mubr.bf16.mxu0 0
  %563 = vmatmul.mubr.bf16.gmra.mrb[0].mxu0 %v504
  %v564 = vpop.f32.mrb[0].mxu0
  %v565 = vadd.f32 0.0, %v564
  %v566 = vpop.f32.mrb[0].mxu0
  %v567 = vpop.f32.mrb[0].mxu0
  %v568 = vadd.f32 0.0, %v567
  %v569 = vpop.f32.mrb[0].mxu0
  %570 = vdwg.mxu0
  %v571 = vld [vmem:[%s33] sm:$0xf]
  %v572 = vld [vmem:[%s33 + $0x4] sm:$0xf]
  %v573 = vld [vmem:[%s33 + $0x8] sm:$0xf]
  %v574 = vld [vmem:[%s33 + $0xc] sm:$0xf]
  %v575 = vld [vmem:[%s33 + $0x10] sm:$0xf]
  %v576 = vld [vmem:[%s33 + $0x14] sm:$0xf]
  %v577 = vld [vmem:[%s33 + $0x18] sm:$0xf]
  %v578 = vld [vmem:[%s33 + $0x1c] sm:$0xf]
  %v579 = vpack.c.bf16 %v544, %v541
  %v580 = vpack.c.bf16 %v552, %v549
  %v581 = vpack.c.bf16 %v560, %v557
  %v582 = vpack.c.bf16 %v568, %v565
  %v583 = vld [vmem:[%s33 + $0x20] sm:$0x1]
  %v584 = vunpack.c.l.bf16 %v583
  %v585 = vlaneseq
  %v586 = vshrl.u32 %v585, 7
  %v587 = vsub.s32 0, %v586
  %v588 = vrot.slane %v584, %v587
  %v597 = vunpack.c.l.b16 %v571
  %v598 = vunpack.c.l.b16 %v572
  %v599 = vunpack.c.l.b16 %v573
  %v600 = vunpack.c.l.b16 %v574
  %v601 = vunpack.c.l.b16 %v575
  %v602 = vunpack.c.l.b16 %v576
  %v603 = vunpack.c.l.b16 %v577
  %v604 = vunpack.c.l.b16 %v578
  %v605 = vpack.c.b16 %v598, %v597
  %v606 = vpack.c.b16 %v600, %v599
  %v607 = vpack.c.b16 %v602, %v601
  %v608 = vpack.c.b16 %v604, %v603
  %vm613 = vcmask 523264
  %v615 = vsel %vm613, %v579, 0
  %v618 = vsel %vm613, %v580, 0
  %v621 = vsel %vm613, %v581, 0
  %v624 = vsel %vm613, %v582, 0
  %626 = vmatprep.subr.bf16.mxu0 0
  %627 = vmatpush1.bf16.msra.mxu0 %v605
  %628 = vmatprep.subr.bf16.mxu0 0
  %629 = vmatpush1.bf16.msra.mxu0 %v606
  %630 = vmatprep.subr.bf16.mxu0 0
  %631 = vmatpush1.bf16.msra.mxu0 %v607
  %632 = vmatprep.subr.bf16.mxu0 0
  %633 = vmatpush1.bf16.msra.mxu0 %v608
  %634 = vmatprep.subr.bf16.mxu0 0
  %635 = vmatpush1.bf16.msra.mxu0 0
  %636 = vmatprep.subr.bf16.mxu0 0
  %637 = vmatpush1.bf16.msra.mxu0 0
  %638 = vmatprep.subr.bf16.mxu0 0
  %639 = vmatpush1.bf16.msra.mxu0 0
  %640 = vmatprep.subr.bf16.mxu0 0
  %641 = vmatpush1.bf16.msra.mxu0 0
  %642 = vmatprep.subr.bf16.mxu0 0
  %643 = vmatpush1.bf16.msra.mxu0 0
  %644 = vmatprep.subr.bf16.mxu0 0
  %645 = vmatpush1.bf16.msra.mxu0 0
  %646 = vmatprep.subr.bf16.mxu0 0
  %647 = vmatpush1.bf16.msra.mxu0 0
  %648 = vmatprep.subr.bf16.mxu0 0
  %649 = vmatpush1.bf16.msra.mxu0 0
  %650 = vmatprep.subr.bf16.mxu0 0
  %651 = vmatpush1.bf16.msra.mxu0 0
  %652 = vmatprep.subr.bf16.mxu0 0
  %653 = vmatpush1.bf16.msra.mxu0 0
  %654 = vmatprep.subr.bf16.mxu0 0
  %655 = vmatpush1.bf16.msra.mxu0 0
  %656 = vmatprep.subr.bf16.mxu0 0
  %657 = vmatpush1.bf16.msra.mxu0 0
  %658 = vmatprep.mubr.bf16.mxu0 0
  %659 = vmatmul.mubr.bf16.gmra.mrb[0].mxu0 %v615
  %v660 = vpop.f32.mrb[0].mxu0
  %v661 = vadd.f32 %v588, %v660
  %v662 = vpop.f32.mrb[0].mxu0
  %v663 = vpop.f32.mrb[0].mxu0
  %v664 = vadd.f32 %v588, %v663
  %v665 = vpop.f32.mrb[0].mxu0
  %666 = vmatprep.mubr.bf16.mxu0 0
  %667 = vmatmul.mubr.bf16.gmra.mrb[0].mxu0 %v618
  %v668 = vpop.f32.mrb[0].mxu0
  %v669 = vadd.f32 %v588, %v668
  %v670 = vpop.f32.mrb[0].mxu0
  %v671 = vpop.f32.mrb[0].mxu0
  %v672 = vadd.f32 %v588, %v671
  %v673 = vpop.f32.mrb[0].mxu0
  %674 = vmatprep.mubr.bf16.mxu0 0
  %675 = vmatmul.mubr.bf16.gmra.mrb[0].mxu0 %v621
  %v676 = vpop.f32.mrb[0].mxu0
  %v677 = vadd.f32 %v588, %v676
  %v678 = vpop.f32.mrb[0].mxu0
  %v679 = vpop.f32.mrb[0].mxu0
  %v680 = vadd.f32 %v588, %v679
  %v681 = vpop.f32.mrb[0].mxu0
  %682 = vmatprep.mubr.bf16.mxu0 0
  %683 = vmatmul.mubr.bf16.gmra.mrb[0].mxu0 %v624
  %v684 = vpop.f32.mrb[0].mxu0
  %v685 = vadd.f32 %v588, %v684
  %v686 = vpop.f32.mrb[0].mxu0
  %v687 = vpop.f32.mrb[0].mxu0
  %v688 = vadd.f32 %v588, %v687
  %v689 = vpop.f32.mrb[0].mxu0
  %690 = vdwg.mxu0
  %v691 = vmax.f32 %v661, 0.0
  %v692 = vmax.f32 %v664, 0.0
  %v693 = vmax.f32 %v669, 0.0
  %v694 = vmax.f32 %v672, 0.0
  %v695 = vmax.f32 %v677, 0.0
  %v696 = vmax.f32 %v680, 0.0
  %v697 = vmax.f32 %v685, 0.0
  %v698 = vmax.f32 %v688, 0.0
  %v699 = vpack.c.bf16 %v692, %v691
  %v700 = vpack.c.bf16 %v694, %v693
  %v701 = vpack.c.bf16 %v696, %v695
  %v702 = vpack.c.bf16 %v698, %v697
  %v703 = vld [vmem:[%s11] sm:$0xf]
  %v704 = vld [vmem:[%s11 + $0x4] sm:$0xf]
  %v705 = vld [vmem:[%s11 + $0x8] sm:$0xf]
  %v706 = vld [vmem:[%s11 + $0xc] sm:$0xf]
  %v707 = vld [vmem:[%s11 + $0x10] sm:$0xf]
  %v708 = vld [vmem:[%s11 + $0x14] sm:$0xf]
  %v709 = vld [vmem:[%s11 + $0x18] sm:$0xf]
  %v710 = vld [vmem:[%s11 + $0x1c] sm:$0xf]
  %v719 = vunpack.c.l.b16 %v703
  %v720 = vunpack.c.l.b16 %v704
  %v721 = vunpack.c.l.b16 %v705
  %v722 = vunpack.c.l.b16 %v706
  %v723 = vunpack.c.l.b16 %v707
  %v724 = vunpack.c.l.b16 %v708
  %v725 = vunpack.c.l.b16 %v709
  %v726 = vunpack.c.l.b16 %v710
  %v727 = vpack.c.b16 %v720, %v719
  %v728 = vpack.c.b16 %v722, %v721
  %v729 = vpack.c.b16 %v724, %v723
  %v730 = vpack.c.b16 %v726, %v725
  %v732 = vsel %vm613, %v727, 0
  %v735 = vsel %vm613, %v728, 0
  %v738 = vsel %vm613, %v729, 0
  %v741 = vsel %vm613, %v730, 0
  %743 = vmatprep.subr.bf16.mxu0 0
  %744 = vmatpush1.bf16.msra.mxu0 %v699
  %745 = vmatprep.subr.bf16.mxu0 0
  %746 = vmatpush1.bf16.msra.mxu0 %v700
  %747 = vmatprep.subr.bf16.mxu0 0
  %748 = vmatpush1.bf16.msra.mxu0 %v701
  %749 = vmatprep.subr.bf16.mxu0 0
  %750 = vmatpush1.bf16.msra.mxu0 %v702
  %751 = vmatprep.subr.bf16.mxu0 0
  %752 = vmatpush1.bf16.msra.mxu0 0
  %753 = vmatprep.subr.bf16.mxu0 0
  %754 = vmatpush1.bf16.msra.mxu0 0
  %755 = vmatprep.subr.bf16.mxu0 0
  %756 = vmatpush1.bf16.msra.mxu0 0
  %757 = vmatprep.subr.bf16.mxu0 0
  %758 = vmatpush1.bf16.msra.mxu0 0
  %759 = vmatprep.subr.bf16.mxu0 0
  %760 = vmatpush1.bf16.msra.mxu0 0
  %761 = vmatprep.subr.bf16.mxu0 0
  %762 = vmatpush1.bf16.msra.mxu0 0
  %763 = vmatprep.subr.bf16.mxu0 0
  %764 = vmatpush1.bf16.msra.mxu0 0
  %765 = vmatprep.subr.bf16.mxu0 0
  %766 = vmatpush1.bf16.msra.mxu0 0
  %767 = vmatprep.subr.bf16.mxu0 0
  %768 = vmatpush1.bf16.msra.mxu0 0
  %769 = vmatprep.subr.bf16.mxu0 0
  %770 = vmatpush1.bf16.msra.mxu0 0
  %771 = vmatprep.subr.bf16.mxu0 0
  %772 = vmatpush1.bf16.msra.mxu0 0
  %773 = vmatprep.subr.bf16.mxu0 0
  %774 = vmatpush1.bf16.msra.mxu0 0
  %775 = vmatprep.mubr.bf16.mxu0 0
  %776 = vmatmul.mubr.bf16.gmra.mrb[0].mxu0 %v732
  %v777 = vpop.f32.mrb[0].mxu0
  %v778 = vadd.f32 0.0, %v777
  %v779 = vpop.f32.mrb[0].mxu0
  %v780 = vpop.f32.mrb[0].mxu0
  %v781 = vadd.f32 0.0, %v780
  %v782 = vpop.f32.mrb[0].mxu0
  %783 = vmatprep.mubr.bf16.mxu0 0
  %784 = vmatmul.mubr.bf16.gmra.mrb[0].mxu0 %v735
  %v785 = vpop.f32.mrb[0].mxu0
  %v786 = vadd.f32 0.0, %v785
  %v787 = vpop.f32.mrb[0].mxu0
  %v788 = vpop.f32.mrb[0].mxu0
  %v789 = vadd.f32 0.0, %v788
  %v790 = vpop.f32.mrb[0].mxu0
  %791 = vmatprep.mubr.bf16.mxu0 0
  %792 = vmatmul.mubr.bf16.gmra.mrb[0].mxu0 %v738
  %v793 = vpop.f32.mrb[0].mxu0
  %v794 = vadd.f32 0.0, %v793
  %v795 = vpop.f32.mrb[0].mxu0
  %v796 = vpop.f32.mrb[0].mxu0
  %v797 = vadd.f32 0.0, %v796
  %v798 = vpop.f32.mrb[0].mxu0
  %799 = vmatprep.mubr.bf16.mxu0 0
  %800 = vmatmul.mubr.bf16.gmra.mrb[0].mxu0 %v741
  %v801 = vpop.f32.mrb[0].mxu0
  %v802 = vadd.f32 0.0, %v801
  %v803 = vpop.f32.mrb[0].mxu0
  %v804 = vpop.f32.mrb[0].mxu0
  %v805 = vadd.f32 0.0, %v804
  %v806 = vpop.f32.mrb[0].mxu0
  %807 = vdwg.mxu0
  %v808 = vld [vmem:[%s35] sm:$0xf]
  %v809 = vld [vmem:[%s35 + $0x4] sm:$0xf]
  %v810 = vld [vmem:[%s35 + $0x8] sm:$0xf]
  %v811 = vld [vmem:[%s35 + $0xc] sm:$0xf]
  %v812 = vld [vmem:[%s35 + $0x10] sm:$0xf]
  %v813 = vld [vmem:[%s35 + $0x14] sm:$0xf]
  %v814 = vld [vmem:[%s35 + $0x18] sm:$0xf]
  %v815 = vld [vmem:[%s35 + $0x1c] sm:$0xf]
  %v816 = vpack.c.bf16 %v781, %v778
  %v817 = vpack.c.bf16 %v789, %v786
  %v818 = vpack.c.bf16 %v797, %v794
  %v819 = vpack.c.bf16 %v805, %v802
  %v820 = vld [vmem:[%s35 + $0x20] sm:$0xf]
  %v821 = vld [vmem:[%s35 + $0x24] sm:$0xf]
  %v822 = vld [vmem:[%s35 + $0x28] sm:$0xf]
  %v823 = vld [vmem:[%s35 + $0x2c] sm:$0xf]
  %v824 = vld [vmem:[%s35 + $0x30] sm:$0xf]
  %v825 = vld [vmem:[%s35 + $0x34] sm:$0xf]
  %v826 = vld [vmem:[%s35 + $0x38] sm:$0xf]
  %v827 = vld [vmem:[%s35 + $0x3c] sm:$0xf]
  %v836 = vunpack.c.l.b16 %v820
  %v837 = vunpack.c.l.b16 %v821
  %v838 = vunpack.c.l.b16 %v822
  %v839 = vunpack.c.l.b16 %v823
  %v840 = vunpack.c.l.b16 %v824
  %v841 = vunpack.c.l.b16 %v825
  %v842 = vunpack.c.l.b16 %v826
  %v843 = vunpack.c.l.b16 %v827
  %v844 = vpack.c.b16 %v837, %v836
  %v845 = vpack.c.b16 %v839, %v838
  %v846 = vpack.c.b16 %v841, %v840
  %v847 = vpack.c.b16 %v843, %v842
  %v853 = vsel %vm613, %v699, 0
  %v856 = vsel %vm613, %v700, 0
  %v859 = vsel %vm613, %v701, 0
  %v862 = vsel %vm613, %v702, 0
  %864 = vmatprep.subr.bf16.mxu0 0
  %865 = vmatpush1.bf16.msra.mxu0 %v844
  %866 = vmatprep.subr.bf16.mxu0 0
  %867 = vmatpush1.bf16.msra.mxu0 %v845
  %868 = vmatprep.subr.bf16.mxu0 0
  %869 = vmatpush1.bf16.msra.mxu0 %v846
  %870 = vmatprep.subr.bf16.mxu0 0
  %871 = vmatpush1.bf16.msra.mxu0 %v847
  %872 = vmatprep.subr.bf16.mxu0 0
  %873 = vmatpush1.bf16.msra.mxu0 0
  %874 = vmatprep.subr.bf16.mxu0 0
  %875 = vmatpush1.bf16.msra.mxu0 0
  %876 = vmatprep.subr.bf16.mxu0 0
  %877 = vmatpush1.bf16.msra.mxu0 0
  %878 = vmatprep.subr.bf16.mxu0 0
  %879 = vmatpush1.bf16.msra.mxu0 0
  %880 = vmatprep.subr.bf16.mxu0 0
  %881 = vmatpush1.bf16.msra.mxu0 0
  %882 = vmatprep.subr.bf16.mxu0 0
  %883 = vmatpush1.bf16.msra.mxu0 0
  %884 = vmatprep.subr.bf16.mxu0 0
  %885 = vmatpush1.bf16.msra.mxu0 0
  %886 = vmatprep.subr.bf16.mxu0 0
  %887 = vmatpush1.bf16.msra.mxu0 0
  %888 = vmatprep.subr.bf16.mxu0 0
  %889 = vmatpush1.bf16.msra.mxu0 0
  %890 = vmatprep.subr.bf16.mxu0 0
  %891 = vmatpush1.bf16.msra.mxu0 0
  %892 = vmatprep.subr.bf16.mxu0 0
  %893 = vmatpush1.bf16.msra.mxu0 0
  %894 = vmatprep.subr.bf16.mxu0 0
  %895 = vmatpush1.bf16.msra.mxu0 0
  %896 = vmatprep.mubr.bf16.mxu0 0
  %897 = vmatmul.mubr.bf16.gmra.mrb[0].mxu0 %v853
  %v898 = vpop.f32.mrb[0].mxu0
  %v899 = vadd.f32 0.0, %v898
  %v900 = vpop.f32.mrb[0].mxu0
  %v901 = vpop.f32.mrb[0].mxu0
  %v902 = vadd.f32 0.0, %v901
  %v903 = vpop.f32.mrb[0].mxu0
  %904 = vmatprep.mubr.bf16.mxu0 0
  %905 = vmatmul.mubr.bf16.gmra.mrb[0].mxu0 %v856
  %v906 = vpop.f32.mrb[0].mxu0
  %v907 = vadd.f32 0.0, %v906
  %v908 = vpop.f32.mrb[0].mxu0
  %v909 = vpop.f32.mrb[0].mxu0
  %v910 = vadd.f32 0.0, %v909
  %v911 = vpop.f32.mrb[0].mxu0
  %912 = vmatprep.mubr.bf16.mxu0 0
  %913 = vmatmul.mubr.bf16.gmra.mrb[0].mxu0 %v859
  %v914 = vpop.f32.mrb[0].mxu0
  %v915 = vadd.f32 0.0, %v914
  %v916 = vpop.f32.mrb[0].mxu0
  %v917 = vpop.f32.mrb[0].mxu0
  %v918 = vadd.f32 0.0, %v917
  %v919 = vpop.f32.mrb[0].mxu0
  %920 = vmatprep.mubr.bf16.mxu0 0
  %921 = vmatmul.mubr.bf16.gmra.mrb[0].mxu0 %v862
  %v922 = vpop.f32.mrb[0].mxu0
  %v923 = vadd.f32 0.0, %v922
  %v924 = vpop.f32.mrb[0].mxu0
  %v925 = vpop.f32.mrb[0].mxu0
  %v926 = vadd.f32 0.0, %v925
  %v927 = vpop.f32.mrb[0].mxu0
  %928 = vdwg.mxu0
  %v937 = vunpack.c.l.b16 %v808
  %v938 = vunpack.c.l.b16 %v809
  %v939 = vunpack.c.l.b16 %v810
  %v940 = vunpack.c.l.b16 %v811
  %v941 = vunpack.c.l.b16 %v812
  %v942 = vunpack.c.l.b16 %v813
  %v943 = vunpack.c.l.b16 %v814
  %v944 = vunpack.c.l.b16 %v815
  %v945 = vpack.c.b16 %v938, %v937
  %v946 = vpack.c.b16 %v940, %v939
  %v947 = vpack.c.b16 %v942, %v941
  %v948 = vpack.c.b16 %v944, %v943
  %v954 = vsel %vm613, %v816, 0
  %v957 = vsel %vm613, %v817, 0
  %v960 = vsel %vm613, %v818, 0
  %v963 = vsel %vm613, %v819, 0
  %965 = vmatprep.subr.bf16.mxu0 0
  %966 = vmatpush1.bf16.msra.mxu0 %v945
  %967 = vmatprep.subr.bf16.mxu0 0
  %968 = vmatpush1.bf16.msra.mxu0 %v946
  %969 = vmatprep.subr.bf16.mxu0 0
  %970 = vmatpush1.bf16.msra.mxu0 %v947
  %971 = vmatprep.subr.bf16.mxu0 0
  %972 = vmatpush1.bf16.msra.mxu0 %v948
  %973 = vmatprep.subr.bf16.mxu0 0
  %974 = vmatpush1.bf16.msra.mxu0 0
  %975 = vmatprep.subr.bf16.mxu0 0
  %976 = vmatpush1.bf16.msra.mxu0 0
  %977 = vmatprep.subr.bf16.mxu0 0
  %978 = vmatpush1.bf16.msra.mxu0 0
  %979 = vmatprep.subr.bf16.mxu0 0
  %980 = vmatpush1.bf16.msra.mxu0 0
  %981 = vmatprep.subr.bf16.mxu0 0
  %982 = vmatpush1.bf16.msra.mxu0 0
  %983 = vmatprep.subr.bf16.mxu0 0
  %984 = vmatpush1.bf16.msra.mxu0 0
  %985 = vmatprep.subr.bf16.mxu0 0
  %986 = vmatpush1.bf16.msra.mxu0 0
  %987 = vmatprep.subr.bf16.mxu0 0
  %988 = vmatpush1.bf16.msra.mxu0 0
  %989 = vmatprep.subr.bf16.mxu0 0
  %990 = vmatpush1.bf16.msra.mxu0 0
  %991 = vmatprep.subr.bf16.mxu0 0
  %992 = vmatpush1.bf16.msra.mxu0 0
  %993 = vmatprep.subr.bf16.mxu0 0
  %994 = vmatpush1.bf16.msra.mxu0 0
  %995 = vmatprep.subr.bf16.mxu0 0
  %996 = vmatpush1.bf16.msra.mxu0 0
  %997 = vmatprep.mubr.bf16.mxu0 0
  %998 = vmatmul.mubr.bf16.gmra.mrb[0].mxu0 %v954
  %v999 = vpop.f32.mrb[0].mxu0
  %v1000 = vadd.f32 %v899, %v999
  %v1001 = vpop.f32.mrb[0].mxu0
  %v1002 = vpop.f32.mrb[0].mxu0
  %v1003 = vadd.f32 %v902, %v1002
  %v1004 = vpop.f32.mrb[0].mxu0
  %1005 = vmatprep.mubr.bf16.mxu0 0
  %1006 = vmatmul.mubr.bf16.gmra.mrb[0].mxu0 %v957
  %v1007 = vpop.f32.mrb[0].mxu0
  %v1008 = vadd.f32 %v907, %v1007
  %v1009 = vpop.f32.mrb[0].mxu0
  %v1010 = vpop.f32.mrb[0].mxu0
  %v1011 = vadd.f32 %v910, %v1010
  %v1012 = vpop.f32.mrb[0].mxu0
  %1013 = vmatprep.mubr.bf16.mxu0 0
  %1014 = vmatmul.mubr.bf16.gmra.mrb[0].mxu0 %v960
  %v1015 = vpop.f32.mrb[0].mxu0
  %v1016 = vadd.f32 %v915, %v1015
  %v1017 = vpop.f32.mrb[0].mxu0
  %v1018 = vpop.f32.mrb[0].mxu0
  %v1019 = vadd.f32 %v918, %v1018
  %v1020 = vpop.f32.mrb[0].mxu0
  %1021 = vmatprep.mubr.bf16.mxu0 0
  %1022 = vmatmul.mubr.bf16.gmra.mrb[0].mxu0 %v963
  %v1023 = vpop.f32.mrb[0].mxu0
  %v1024 = vadd.f32 %v923, %v1023
  %v1025 = vpop.f32.mrb[0].mxu0
  %v1026 = vpop.f32.mrb[0].mxu0
  %v1027 = vadd.f32 %v926, %v1026
  %v1028 = vpop.f32.mrb[0].mxu0
  %1029 = vdwg.mxu0
  %v1030 = vld [vmem:[%s35 + $0x40] sm:$0x1]
  %v1031 = vunpack.c.l.bf16 %v1030
  %v1032 = vlaneseq
  %v1033 = vshrl.u32 %v1032, 7
  %v1034 = vsub.s32 0, %v1033
  %v1035 = vrot.slane %v1031, %v1034
  %v1036 = vadd.f32 %v1000, %v1035
  %v1037 = vadd.f32 %v1003, %v1035
  %v1038 = vadd.f32 %v1008, %v1035
  %v1039 = vadd.f32 %v1011, %v1035
  %v1040 = vadd.f32 %v1016, %v1035
  %v1041 = vadd.f32 %v1019, %v1035
  %v1042 = vadd.f32 %v1024, %v1035
  %v1043 = vadd.f32 %v1027, %v1035
  %v1044 = vmax.f32 %v1036, 0.0
  %v1045 = vmax.f32 %v1037, 0.0
  %v1046 = vmax.f32 %v1038, 0.0
  %v1047 = vmax.f32 %v1039, 0.0
  %v1048 = vmax.f32 %v1040, 0.0
  %v1049 = vmax.f32 %v1041, 0.0
  %v1050 = vmax.f32 %v1042, 0.0
  %v1051 = vmax.f32 %v1043, 0.0
  %v1052 = vsel %vm613, %v1044, 0.0
  %v1053 = vsel %vm613, %v1045, 0.0
  %v1054 = vadd.f32 %v1052, %v1053
  %v1055 = vsel %vm613, %v1046, 0.0
  %v1056 = vadd.f32 %v1054, %v1055
  %v1057 = vsel %vm613, %v1047, 0.0
  %v1058 = vadd.f32 %v1056, %v1057
  %v1059 = vsel %vm613, %v1048, 0.0
  %v1060 = vadd.f32 %v1058, %v1059
  %v1061 = vsel %vm613, %v1049, 0.0
  %v1062 = vadd.f32 %v1060, %v1061
  %v1063 = vsel %vm613, %v1050, 0.0
  %v1064 = vadd.f32 %v1062, %v1063
  %v1065 = vsel %vm613, %v1051, 0.0
  %v1066 = vadd.f32 %v1064, %v1065
  %v1067 = vrot.slane %v1066, 4
  %v1068 = vadd.f32 %v1066, %v1067
  %v1069 = vrot.slane %v1068, 2
  %v1070 = vadd.f32 %v1068, %v1069
  %v1071 = vrot.slane %v1070, 1
  %v1072 = vadd.f32 %v1070, %v1071
  %v1073 = vmul.f32 %v1044, %v1044
  %v1074 = vmul.f32 %v1045, %v1045
  %v1075 = vmul.f32 %v1046, %v1046
  %v1076 = vmul.f32 %v1047, %v1047
  %v1077 = vmul.f32 %v1048, %v1048
  %v1078 = vmul.f32 %v1049, %v1049
  %v1079 = vmul.f32 %v1050, %v1050
  %v1080 = vmul.f32 %v1051, %v1051
  %v1081 = vsel %vm613, %v1073, 0.0
  %v1082 = vsel %vm613, %v1074, 0.0
  %v1083 = vadd.f32 %v1081, %v1082
  %v1084 = vsel %vm613, %v1075, 0.0
  %v1085 = vadd.f32 %v1083, %v1084
  %v1086 = vsel %vm613, %v1076, 0.0
  %v1087 = vadd.f32 %v1085, %v1086
  %v1088 = vsel %vm613, %v1077, 0.0
  %v1089 = vadd.f32 %v1087, %v1088
  %v1090 = vsel %vm613, %v1078, 0.0
  %v1091 = vadd.f32 %v1089, %v1090
  %v1092 = vsel %vm613, %v1079, 0.0
  %v1093 = vadd.f32 %v1091, %v1092
  %v1094 = vsel %vm613, %v1080, 0.0
  %v1095 = vadd.f32 %v1093, %v1094
  %v1096 = vrot.slane %v1095, 4
  %v1097 = vadd.f32 %v1095, %v1096
  %v1098 = vrot.slane %v1097, 2
  %v1099 = vadd.f32 %v1097, %v1098
  %v1100 = vrot.slane %v1099, 1
  %v1101 = vadd.f32 %v1099, %v1100
  %v1102 = vmul.f32 %v1072, 0.015625
  %v1103 = vmul.f32 %v1101, 0.015625
  %v1104 = vmul.f32 %v1102, %v1102
  %v1105 = vsub.f32 %v1103, %v1104
  %v1106 = vmax.f32 %v1105, 0.0
  %v1107 = vsub.f32 %v1044, %v1102
  %v1108 = vsub.f32 %v1045, %v1102
  %v1109 = vsub.f32 %v1046, %v1102
  %v1110 = vsub.f32 %v1047, %v1102
  %v1111 = vsub.f32 %v1048, %v1102
  %v1112 = vsub.f32 %v1049, %v1102
  %v1113 = vsub.f32 %v1050, %v1102
  %v1114 = vsub.f32 %v1051, %v1102
  %v1115 = vadd.f32 %v1106, 1e-05
  %v1116 = vrsqrt.pop %v1115
  %v1117 = vmul.f32 %v1107, %v1116
  %v1118 = vmul.f32 %v1108, %v1116
  %v1119 = vmul.f32 %v1109, %v1116
  %v1120 = vmul.f32 %v1110, %v1116
  %v1121 = vmul.f32 %v1111, %v1116
  %v1122 = vmul.f32 %v1112, %v1116
  %v1123 = vmul.f32 %v1113, %v1116
  %v1124 = vmul.f32 %v1114, %v1116
  %v1125 = vld [vmem:[%s19] sm:$0xf]
  %v1126 = vld [vmem:[%s19 + $0x4] sm:$0xf]
  %v1127 = vld [vmem:[%s19 + $0x8] sm:$0xf]
  %v1128 = vld [vmem:[%s19 + $0xc] sm:$0xf]
  %v1129 = vpack.c.bf16 %v1118, %v1117
  %v1130 = vpack.c.bf16 %v1120, %v1119
  %v1131 = vpack.c.bf16 %v1122, %v1121
  %v1132 = vpack.c.bf16 %v1124, %v1123
  %v1137 = vunpack.c.l.b16 %v1125
  %v1138 = vunpack.c.l.b16 %v1126
  %v1139 = vunpack.c.l.b16 %v1127
  %v1140 = vunpack.c.l.b16 %v1128
  %v1141 = vpack.c.b16 %v1138, %v1137
  %v1142 = vpack.c.b16 %v1140, %v1139
  %v1144 = vsel %vm613, %v1141, 0
  %v1147 = vsel %vm613, %v1142, 0
  %1149 = vmatprep.subr.bf16.mxu0 0
  %1150 = vmatpush1.bf16.msra.mxu0 %v1129
  %1151 = vmatprep.subr.bf16.mxu0 0
  %1152 = vmatpush1.bf16.msra.mxu0 %v1130
  %1153 = vmatprep.subr.bf16.mxu0 0
  %1154 = vmatpush1.bf16.msra.mxu0 %v1131
  %1155 = vmatprep.subr.bf16.mxu0 0
  %1156 = vmatpush1.bf16.msra.mxu0 %v1132
  %1157 = vmatprep.subr.bf16.mxu0 0
  %1158 = vmatpush1.bf16.msra.mxu0 0
  %1159 = vmatprep.subr.bf16.mxu0 0
  %1160 = vmatpush1.bf16.msra.mxu0 0
  %1161 = vmatprep.subr.bf16.mxu0 0
  %1162 = vmatpush1.bf16.msra.mxu0 0
  %1163 = vmatprep.subr.bf16.mxu0 0
  %1164 = vmatpush1.bf16.msra.mxu0 0
  %1165 = vmatprep.subr.bf16.mxu0 0
  %1166 = vmatpush1.bf16.msra.mxu0 0
  %1167 = vmatprep.subr.bf16.mxu0 0
  %1168 = vmatpush1.bf16.msra.mxu0 0
  %1169 = vmatprep.subr.bf16.mxu0 0
  %1170 = vmatpush1.bf16.msra.mxu0 0
  %1171 = vmatprep.subr.bf16.mxu0 0
  %1172 = vmatpush1.bf16.msra.mxu0 0
  %1173 = vmatprep.subr.bf16.mxu0 0
  %1174 = vmatpush1.bf16.msra.mxu0 0
  %1175 = vmatprep.subr.bf16.mxu0 0
  %1176 = vmatpush1.bf16.msra.mxu0 0
  %1177 = vmatprep.subr.bf16.mxu0 0
  %1178 = vmatpush1.bf16.msra.mxu0 0
  %1179 = vmatprep.subr.bf16.mxu0 0
  %1180 = vmatpush1.bf16.msra.mxu0 0
  %1181 = vmatprep.mubr.bf16.mxu0 0
  %1182 = vmatmul.mubr.bf16.gmra.mrb[0].mxu0 %v1144
  %v1183 = vpop.f32.mrb[0].mxu0
  %v1184 = vadd.f32 0.0, %v1183
  %v1185 = vpop.f32.mrb[0].mxu0
  %v1186 = vpop.f32.mrb[0].mxu0
  %v1187 = vadd.f32 0.0, %v1186
  %v1188 = vpop.f32.mrb[0].mxu0
  %1189 = vmatprep.mubr.bf16.mxu0 0
  %1190 = vmatmul.mubr.bf16.gmra.mrb[0].mxu0 %v1147
  %v1191 = vpop.f32.mrb[0].mxu0
  %v1192 = vadd.f32 0.0, %v1191
  %v1193 = vpop.f32.mrb[0].mxu0
  %v1194 = vpop.f32.mrb[0].mxu0
  %v1195 = vadd.f32 0.0, %v1194
  %v1196 = vpop.f32.mrb[0].mxu0
  %1197 = vdwg.mxu0
  %v1198 = vpack.c.bf16 %v1187, %v1184
  %v1199 = vpack.c.bf16 %v1195, %v1192
  %v1200 = vld [vmem:[%s13] sm:$0xf]
  %v1201 = vld [vmem:[%s13 + $0x4] sm:$0xf]
  %v1202 = vld [vmem:[%s13 + $0x8] sm:$0xf]
  %v1203 = vld [vmem:[%s13 + $0xc] sm:$0xf]
  %v1208 = vunpack.c.l.b16 %v1200
  %v1209 = vunpack.c.l.b16 %v1201
  %v1210 = vunpack.c.l.b16 %v1202
  %v1211 = vunpack.c.l.b16 %v1203
  %v1212 = vpack.c.b16 %v1209, %v1208
  %v1213 = vpack.c.b16 %v1211, %v1210
  %v1215 = vsel %vm278, %v1212, 0
  %v1218 = vsel %vm278, %v1213, 0
  %1220 = vmatprep.subr.bf16.mxu0 0
  %1221 = vmatpush1.bf16.msra.mxu0 %v1198
  %1222 = vmatprep.subr.bf16.mxu0 0
  %1223 = vmatpush1.bf16.msra.mxu0 %v1199
  %1224 = vmatprep.subr.bf16.mxu0 0
  %1225 = vmatpush1.bf16.msra.mxu0 0
  %1226 = vmatprep.subr.bf16.mxu0 0
  %1227 = vmatpush1.bf16.msra.mxu0 0
  %1228 = vmatprep.subr.bf16.mxu0 0
  %1229 = vmatpush1.bf16.msra.mxu0 0
  %1230 = vmatprep.subr.bf16.mxu0 0
  %1231 = vmatpush1.bf16.msra.mxu0 0
  %1232 = vmatprep.subr.bf16.mxu0 0
  %1233 = vmatpush1.bf16.msra.mxu0 0
  %1234 = vmatprep.subr.bf16.mxu0 0
  %1235 = vmatpush1.bf16.msra.mxu0 0
  %1236 = vmatprep.subr.bf16.mxu0 0
  %1237 = vmatpush1.bf16.msra.mxu0 0
  %1238 = vmatprep.subr.bf16.mxu0 0
  %1239 = vmatpush1.bf16.msra.mxu0 0
  %1240 = vmatprep.subr.bf16.mxu0 0
  %1241 = vmatpush1.bf16.msra.mxu0 0
  %1242 = vmatprep.subr.bf16.mxu0 0
  %1243 = vmatpush1.bf16.msra.mxu0 0
  %1244 = vmatprep.subr.bf16.mxu0 0
  %1245 = vmatpush1.bf16.msra.mxu0 0
  %1246 = vmatprep.subr.bf16.mxu0 0
  %1247 = vmatpush1.bf16.msra.mxu0 0
  %1248 = vmatprep.subr.bf16.mxu0 0
  %1249 = vmatpush1.bf16.msra.mxu0 0
  %1250 = vmatprep.subr.bf16.mxu0 0
  %1251 = vmatpush1.bf16.msra.mxu0 0
  %1252 = vmatprep.mubr.bf16.mxu0 0
  %1253 = vmatmul.mubr.bf16.gmra.mrb[0].mxu0 %v1215
  %v1254 = vpop.f32.mrb[0].mxu0
  %v1255 = vadd.f32 0.0, %v1254
  %v1256 = vpop.f32.mrb[0].mxu0
  %v1257 = vpop.f32.mrb[0].mxu0
  %v1258 = vadd.f32 0.0, %v1257
  %v1259 = vpop.f32.mrb[0].mxu0
  %1260 = vmatprep.mubr.bf16.mxu0 0
  %1261 = vmatmul.mubr.bf16.gmra.mrb[0].mxu0 %v1218
  %v1262 = vpop.f32.mrb[0].mxu0
  %v1263 = vadd.f32 0.0, %v1262
  %v1264 = vpop.f32.mrb[0].mxu0
  %v1265 = vpop.f32.mrb[0].mxu0
  %v1266 = vadd.f32 0.0, %v1265
  %v1267 = vpop.f32.mrb[0].mxu0
  %1268 = vdwg.mxu0
  %v1269 = vld [vmem:[%s37] sm:$0xf]
  %v1270 = vld [vmem:[%s37 + $0x4] sm:$0xf]
  %v1271 = vld [vmem:[%s37 + $0x8] sm:$0xf]
  %v1272 = vld [vmem:[%s37 + $0xc] sm:$0xf]
  %v1273 = vld [vmem:[%s37 + $0x10] sm:$0xf]
  %v1274 = vld [vmem:[%s37 + $0x14] sm:$0xf]
  %v1275 = vld [vmem:[%s37 + $0x18] sm:$0xf]
  %v1276 = vld [vmem:[%s37 + $0x1c] sm:$0xf]
  %v1277 = vpack.c.bf16 %v1258, %v1255
  %v1278 = vpack.c.bf16 %v1266, %v1263
  %v1279 = vld [vmem:[%s37 + $0x20] sm:$0xf]
  %v1280 = vld [vmem:[%s37 + $0x24] sm:$0xf]
  %v1281 = vld [vmem:[%s37 + $0x28] sm:$0xf]
  %v1282 = vld [vmem:[%s37 + $0x2c] sm:$0xf]
  %v1283 = vld [vmem:[%s37 + $0x30] sm:$0xf]
  %v1284 = vld [vmem:[%s37 + $0x34] sm:$0xf]
  %v1285 = vld [vmem:[%s37 + $0x38] sm:$0xf]
  %v1286 = vld [vmem:[%s37 + $0x3c] sm:$0xf]
  %v1295 = vunpack.c.l.b16 %v1279
  %v1296 = vunpack.c.l.b16 %v1280
  %v1297 = vunpack.c.l.b16 %v1281
  %v1298 = vunpack.c.l.b16 %v1282
  %v1299 = vunpack.c.l.b16 %v1283
  %v1300 = vunpack.c.l.b16 %v1284
  %v1301 = vunpack.c.l.b16 %v1285
  %v1302 = vunpack.c.l.b16 %v1286
  %v1303 = vpack.c.b16 %v1296, %v1295
  %v1304 = vpack.c.b16 %v1298, %v1297
  %v1305 = vpack.c.b16 %v1300, %v1299
  %v1306 = vpack.c.b16 %v1302, %v1301
  %v1312 = vsel %vm613, %v1198, 0
  %v1315 = vsel %vm613, %v1199, 0
  %1317 = vmatprep.subr.bf16.mxu0 0
  %1318 = vmatpush1.bf16.msra.mxu0 %v1303
  %1319 = vmatprep.subr.bf16.mxu0 0
  %1320 = vmatpush1.bf16.msra.mxu0 %v1304
  %1321 = vmatprep.subr.bf16.mxu0 0
  %1322 = vmatpush1.bf16.msra.mxu0 %v1305
  %1323 = vmatprep.subr.bf16.mxu0 0
  %1324 = vmatpush1.bf16.msra.mxu0 %v1306
  %1325 = vmatprep.subr.bf16.mxu0 0
  %1326 = vmatpush1.bf16.msra.mxu0 0
  %1327 = vmatprep.subr.bf16.mxu0 0
  %1328 = vmatpush1.bf16.msra.mxu0 0
  %1329 = vmatprep.subr.bf16.mxu0 0
  %1330 = vmatpush1.bf16.msra.mxu0 0
  %1331 = vmatprep.subr.bf16.mxu0 0
  %1332 = vmatpush1.bf16.msra.mxu0 0
  %1333 = vmatprep.subr.bf16.mxu0 0
  %1334 = vmatpush1.bf16.msra.mxu0 0
  %1335 = vmatprep.subr.bf16.mxu0 0
  %1336 = vmatpush1.bf16.msra.mxu0 0
  %1337 = vmatprep.subr.bf16.mxu0 0
  %1338 = vmatpush1.bf16.msra.mxu0 0
  %1339 = vmatprep.subr.bf16.mxu0 0
  %1340 = vmatpush1.bf16.msra.mxu0 0
  %1341 = vmatprep.subr.bf16.mxu0 0
  %1342 = vmatpush1.bf16.msra.mxu0 0
  %1343 = vmatprep.subr.bf16.mxu0 0
  %1344 = vmatpush1.bf16.msra.mxu0 0
  %1345 = vmatprep.subr.bf16.mxu0 0
  %1346 = vmatpush1.bf16.msra.mxu0 0
  %1347 = vmatprep.subr.bf16.mxu0 0
  %1348 = vmatpush1.bf16.msra.mxu0 0
  %1349 = vmatprep.mubr.bf16.mxu0 0
  %1350 = vmatmul.mubr.bf16.gmra.mrb[0].mxu0 %v1312
  %v1351 = vpop.f32.mrb[0].mxu0
  %v1352 = vadd.f32 0.0, %v1351
  %v1353 = vpop.f32.mrb[0].mxu0
  %v1354 = vpop.f32.mrb[0].mxu0
  %v1355 = vadd.f32 0.0, %v1354
  %v1356 = vpop.f32.mrb[0].mxu0
  %1357 = vmatprep.mubr.bf16.mxu0 0
  %1358 = vmatmul.mubr.bf16.gmra.mrb[0].mxu0 %v1315
  %v1359 = vpop.f32.mrb[0].mxu0
  %v1360 = vadd.f32 0.0, %v1359
  %v1361 = vpop.f32.mrb[0].mxu0
  %v1362 = vpop.f32.mrb[0].mxu0
  %v1363 = vadd.f32 0.0, %v1362
  %v1364 = vpop.f32.mrb[0].mxu0
  %1365 = vdwg.mxu0
  %v1374 = vunpack.c.l.b16 %v1269
  %v1375 = vunpack.c.l.b16 %v1270
  %v1376 = vunpack.c.l.b16 %v1271
  %v1377 = vunpack.c.l.b16 %v1272
  %v1378 = vunpack.c.l.b16 %v1273
  %v1379 = vunpack.c.l.b16 %v1274
  %v1380 = vunpack.c.l.b16 %v1275
  %v1381 = vunpack.c.l.b16 %v1276
  %v1382 = vpack.c.b16 %v1375, %v1374
  %v1383 = vpack.c.b16 %v1377, %v1376
  %v1384 = vpack.c.b16 %v1379, %v1378
  %v1385 = vpack.c.b16 %v1381, %v1380
  %v1391 = vsel %vm613, %v1277, 0
  %v1394 = vsel %vm613, %v1278, 0
  %1396 = vmatprep.subr.bf16.mxu0 0
  %1397 = vmatpush1.bf16.msra.mxu0 %v1382
  %1398 = vmatprep.subr.bf16.mxu0 0
  %1399 = vmatpush1.bf16.msra.mxu0 %v1383
  %1400 = vmatprep.subr.bf16.mxu0 0
  %1401 = vmatpush1.bf16.msra.mxu0 %v1384
  %1402 = vmatprep.subr.bf16.mxu0 0
  %1403 = vmatpush1.bf16.msra.mxu0 %v1385
  %1404 = vmatprep.subr.bf16.mxu0 0
  %1405 = vmatpush1.bf16.msra.mxu0 0
  %1406 = vmatprep.subr.bf16.mxu0 0
  %1407 = vmatpush1.bf16.msra.mxu0 0
  %1408 = vmatprep.subr.bf16.mxu0 0
  %1409 = vmatpush1.bf16.msra.mxu0 0
  %1410 = vmatprep.subr.bf16.mxu0 0
  %1411 = vmatpush1.bf16.msra.mxu0 0
  %1412 = vmatprep.subr.bf16.mxu0 0
  %1413 = vmatpush1.bf16.msra.mxu0 0
  %1414 = vmatprep.subr.bf16.mxu0 0
  %1415 = vmatpush1.bf16.msra.mxu0 0
  %1416 = vmatprep.subr.bf16.mxu0 0
  %1417 = vmatpush1.bf16.msra.mxu0 0
  %1418 = vmatprep.subr.bf16.mxu0 0
  %1419 = vmatpush1.bf16.msra.mxu0 0
  %1420 = vmatprep.subr.bf16.mxu0 0
  %1421 = vmatpush1.bf16.msra.mxu0 0
  %1422 = vmatprep.subr.bf16.mxu0 0
  %1423 = vmatpush1.bf16.msra.mxu0 0
  %1424 = vmatprep.subr.bf16.mxu0 0
  %1425 = vmatpush1.bf16.msra.mxu0 0
  %1426 = vmatprep.subr.bf16.mxu0 0
  %1427 = vmatpush1.bf16.msra.mxu0 0
  %1428 = vmatprep.mubr.bf16.mxu0 0
  %1429 = vmatmul.mubr.bf16.gmra.mrb[0].mxu0 %v1391
  %v1430 = vpop.f32.mrb[0].mxu0
  %v1431 = vadd.f32 %v1352, %v1430
  %v1432 = vpop.f32.mrb[0].mxu0
  %v1433 = vpop.f32.mrb[0].mxu0
  %v1434 = vadd.f32 %v1355, %v1433
  %v1435 = vpop.f32.mrb[0].mxu0
  %1436 = vmatprep.mubr.bf16.mxu0 0
  %1437 = vmatmul.mubr.bf16.gmra.mrb[0].mxu0 %v1394
  %v1438 = vpop.f32.mrb[0].mxu0
  %v1439 = vadd.f32 %v1360, %v1438
  %v1440 = vpop.f32.mrb[0].mxu0
  %v1441 = vpop.f32.mrb[0].mxu0
  %v1442 = vadd.f32 %v1363, %v1441
  %v1443 = vpop.f32.mrb[0].mxu0
  %1444 = vdwg.mxu0
  %v1445 = vld [vmem:[%s37 + $0x40] sm:$0x1]
  %v1446 = vunpack.c.l.bf16 %v1445
  %v1447 = vlaneseq
  %v1448 = vshrl.u32 %v1447, 7
  %v1449 = vsub.s32 0, %v1448
  %v1450 = vrot.slane %v1446, %v1449
  %v1451 = vadd.f32 %v1431, %v1450
  %v1452 = vadd.f32 %v1434, %v1450
  %v1453 = vadd.f32 %v1439, %v1450
  %v1454 = vadd.f32 %v1442, %v1450
  %v1455 = vmax.f32 %v1451, 0.0
  %v1456 = vmax.f32 %v1452, 0.0
  %v1457 = vmax.f32 %v1453, 0.0
  %v1458 = vmax.f32 %v1454, 0.0
  %v1459 = vpack.c.bf16 %v1456, %v1455
  %v1460 = vpack.c.bf16 %v1458, %v1457
  %1461 = vmatprep.subr.bf16.mxu0 0
  %1462 = vmatpush1.bf16.msra.mxu0 %v1459
  %1463 = vmatprep.subr.bf16.mxu0 0
  %1464 = vmatpush1.bf16.msra.mxu0 %v1460
  %1465 = vmatprep.subr.bf16.mxu0 0
  %1466 = vmatpush1.bf16.msra.mxu0 0
  %1467 = vmatprep.subr.bf16.mxu0 0
  %1468 = vmatpush1.bf16.msra.mxu0 0
  %1469 = vmatprep.subr.bf16.mxu0 0
  %1470 = vmatpush1.bf16.msra.mxu0 0
  %1471 = vmatprep.subr.bf16.mxu0 0
  %1472 = vmatpush1.bf16.msra.mxu0 0
  %1473 = vmatprep.subr.bf16.mxu0 0
  %1474 = vmatpush1.bf16.msra.mxu0 0
  %1475 = vmatprep.subr.bf16.mxu0 0
  %1476 = vmatpush1.bf16.msra.mxu0 0
  %1477 = vmatprep.subr.bf16.mxu0 0
  %1478 = vmatpush1.bf16.msra.mxu0 0
  %1479 = vmatprep.subr.bf16.mxu0 0
  %1480 = vmatpush1.bf16.msra.mxu0 0
  %1481 = vmatprep.subr.bf16.mxu0 0
  %1482 = vmatpush1.bf16.msra.mxu0 0
  %1483 = vmatprep.subr.bf16.mxu0 0
  %1484 = vmatpush1.bf16.msra.mxu0 0
  %1485 = vmatprep.subr.bf16.mxu0 0
  %1486 = vmatpush1.bf16.msra.mxu0 0
  %1487 = vmatprep.subr.bf16.mxu0 0
  %1488 = vmatpush1.bf16.msra.mxu0 0
  %1489 = vmatprep.subr.bf16.mxu0 0
  %1490 = vmatpush1.bf16.msra.mxu0 0
  %1491 = vmatprep.subr.bf16.mxu0 0
  %1492 = vmatpush1.bf16.msra.mxu0 0
  %1493 = vmatprep.mubr.bf16.mxu0 0
  %1494 = vmatmul.mubr.bf16.gmra.mrb[0].mxu0 %v1215
  %v1495 = vpop.f32.mrb[0].mxu0
  %v1496 = vadd.f32 0.0, %v1495
  %v1497 = vpop.f32.mrb[0].mxu0
  %v1498 = vpop.f32.mrb[0].mxu0
  %v1499 = vadd.f32 0.0, %v1498
  %v1500 = vpop.f32.mrb[0].mxu0
  %1501 = vmatprep.mubr.bf16.mxu0 0
  %1502 = vmatmul.mubr.bf16.gmra.mrb[0].mxu0 %v1218
  %v1503 = vpop.f32.mrb[0].mxu0
  %v1504 = vadd.f32 0.0, %v1503
  %v1505 = vpop.f32.mrb[0].mxu0
  %v1506 = vpop.f32.mrb[0].mxu0
  %v1507 = vadd.f32 0.0, %v1506
  %v1508 = vpop.f32.mrb[0].mxu0
  %1509 = vdwg.mxu0
  %v1510 = vld [vmem:[%s39] sm:$0xf]
  %v1511 = vld [vmem:[%s39 + $0x4] sm:$0xf]
  %v1512 = vld [vmem:[%s39 + $0x8] sm:$0xf]
  %v1513 = vld [vmem:[%s39 + $0xc] sm:$0xf]
  %v1514 = vld [vmem:[%s39 + $0x10] sm:$0xf]
  %v1515 = vld [vmem:[%s39 + $0x14] sm:$0xf]
  %v1516 = vld [vmem:[%s39 + $0x18] sm:$0xf]
  %v1517 = vld [vmem:[%s39 + $0x1c] sm:$0xf]
  %v1518 = vpack.c.bf16 %v1499, %v1496
  %v1519 = vpack.c.bf16 %v1507, %v1504
  %v1520 = vld [vmem:[%s39 + $0x20] sm:$0xf]
  %v1521 = vld [vmem:[%s39 + $0x24] sm:$0xf]
  %v1522 = vld [vmem:[%s39 + $0x28] sm:$0xf]
  %v1523 = vld [vmem:[%s39 + $0x2c] sm:$0xf]
  %v1524 = vld [vmem:[%s39 + $0x30] sm:$0xf]
  %v1525 = vld [vmem:[%s39 + $0x34] sm:$0xf]
  %v1526 = vld [vmem:[%s39 + $0x38] sm:$0xf]
  %v1527 = vld [vmem:[%s39 + $0x3c] sm:$0xf]
  %v1536 = vunpack.c.l.b16 %v1520
  %v1537 = vunpack.c.l.b16 %v1521
  %v1538 = vunpack.c.l.b16 %v1522
  %v1539 = vunpack.c.l.b16 %v1523
  %v1540 = vunpack.c.l.b16 %v1524
  %v1541 = vunpack.c.l.b16 %v1525
  %v1542 = vunpack.c.l.b16 %v1526
  %v1543 = vunpack.c.l.b16 %v1527
  %v1544 = vpack.c.b16 %v1537, %v1536
  %v1545 = vpack.c.b16 %v1539, %v1538
  %v1546 = vpack.c.b16 %v1541, %v1540
  %v1547 = vpack.c.b16 %v1543, %v1542
  %v1553 = vsel %vm613, %v1459, 0
  %v1556 = vsel %vm613, %v1460, 0
  %1558 = vmatprep.subr.bf16.mxu0 0
  %1559 = vmatpush1.bf16.msra.mxu0 %v1544
  %1560 = vmatprep.subr.bf16.mxu0 0
  %1561 = vmatpush1.bf16.msra.mxu0 %v1545
  %1562 = vmatprep.subr.bf16.mxu0 0
  %1563 = vmatpush1.bf16.msra.mxu0 %v1546
  %1564 = vmatprep.subr.bf16.mxu0 0
  %1565 = vmatpush1.bf16.msra.mxu0 %v1547
  %1566 = vmatprep.subr.bf16.mxu0 0
  %1567 = vmatpush1.bf16.msra.mxu0 0
  %1568 = vmatprep.subr.bf16.mxu0 0
  %1569 = vmatpush1.bf16.msra.mxu0 0
  %1570 = vmatprep.subr.bf16.mxu0 0
  %1571 = vmatpush1.bf16.msra.mxu0 0
  %1572 = vmatprep.subr.bf16.mxu0 0
  %1573 = vmatpush1.bf16.msra.mxu0 0
  %1574 = vmatprep.subr.bf16.mxu0 0
  %1575 = vmatpush1.bf16.msra.mxu0 0
  %1576 = vmatprep.subr.bf16.mxu0 0
  %1577 = vmatpush1.bf16.msra.mxu0 0
  %1578 = vmatprep.subr.bf16.mxu0 0
  %1579 = vmatpush1.bf16.msra.mxu0 0
  %1580 = vmatprep.subr.bf16.mxu0 0
  %1581 = vmatpush1.bf16.msra.mxu0 0
  %1582 = vmatprep.subr.bf16.mxu0 0
  %1583 = vmatpush1.bf16.msra.mxu0 0
  %1584 = vmatprep.subr.bf16.mxu0 0
  %1585 = vmatpush1.bf16.msra.mxu0 0
  %1586 = vmatprep.subr.bf16.mxu0 0
  %1587 = vmatpush1.bf16.msra.mxu0 0
  %1588 = vmatprep.subr.bf16.mxu0 0
  %1589 = vmatpush1.bf16.msra.mxu0 0
  %1590 = vmatprep.mubr.bf16.mxu0 0
  %1591 = vmatmul.mubr.bf16.gmra.mrb[0].mxu0 %v1553
  %v1592 = vpop.f32.mrb[0].mxu0
  %v1593 = vadd.f32 0.0, %v1592
  %v1594 = vpop.f32.mrb[0].mxu0
  %v1595 = vpop.f32.mrb[0].mxu0
  %v1596 = vadd.f32 0.0, %v1595
  %v1597 = vpop.f32.mrb[0].mxu0
  %1598 = vmatprep.mubr.bf16.mxu0 0
  %1599 = vmatmul.mubr.bf16.gmra.mrb[0].mxu0 %v1556
  %v1600 = vpop.f32.mrb[0].mxu0
  %v1601 = vadd.f32 0.0, %v1600
  %v1602 = vpop.f32.mrb[0].mxu0
  %v1603 = vpop.f32.mrb[0].mxu0
  %v1604 = vadd.f32 0.0, %v1603
  %v1605 = vpop.f32.mrb[0].mxu0
  %1606 = vdwg.mxu0
  %v1615 = vunpack.c.l.b16 %v1510
  %v1616 = vunpack.c.l.b16 %v1511
  %v1617 = vunpack.c.l.b16 %v1512
  %v1618 = vunpack.c.l.b16 %v1513
  %v1619 = vunpack.c.l.b16 %v1514
  %v1620 = vunpack.c.l.b16 %v1515
  %v1621 = vunpack.c.l.b16 %v1516
  %v1622 = vunpack.c.l.b16 %v1517
  %v1623 = vpack.c.b16 %v1616, %v1615
  %v1624 = vpack.c.b16 %v1618, %v1617
  %v1625 = vpack.c.b16 %v1620, %v1619
  %v1626 = vpack.c.b16 %v1622, %v1621
  %v1632 = vsel %vm613, %v1518, 0
  %v1635 = vsel %vm613, %v1519, 0
  %1637 = vmatprep.subr.bf16.mxu0 0
  %1638 = vmatpush1.bf16.msra.mxu0 %v1623
  %1639 = vmatprep.subr.bf16.mxu0 0
  %1640 = vmatpush1.bf16.msra.mxu0 %v1624
  %1641 = vmatprep.subr.bf16.mxu0 0
  %1642 = vmatpush1.bf16.msra.mxu0 %v1625
  %1643 = vmatprep.subr.bf16.mxu0 0
  %1644 = vmatpush1.bf16.msra.mxu0 %v1626
  %1645 = vmatprep.subr.bf16.mxu0 0
  %1646 = vmatpush1.bf16.msra.mxu0 0
  %1647 = vmatprep.subr.bf16.mxu0 0
  %1648 = vmatpush1.bf16.msra.mxu0 0
  %1649 = vmatprep.subr.bf16.mxu0 0
  %1650 = vmatpush1.bf16.msra.mxu0 0
  %1651 = vmatprep.subr.bf16.mxu0 0
  %1652 = vmatpush1.bf16.msra.mxu0 0
  %1653 = vmatprep.subr.bf16.mxu0 0
  %1654 = vmatpush1.bf16.msra.mxu0 0
  %1655 = vmatprep.subr.bf16.mxu0 0
  %1656 = vmatpush1.bf16.msra.mxu0 0
  %1657 = vmatprep.subr.bf16.mxu0 0
  %1658 = vmatpush1.bf16.msra.mxu0 0
  %1659 = vmatprep.subr.bf16.mxu0 0
  %1660 = vmatpush1.bf16.msra.mxu0 0
  %1661 = vmatprep.subr.bf16.mxu0 0
  %1662 = vmatpush1.bf16.msra.mxu0 0
  %1663 = vmatprep.subr.bf16.mxu0 0
  %1664 = vmatpush1.bf16.msra.mxu0 0
  %1665 = vmatprep.subr.bf16.mxu0 0
  %1666 = vmatpush1.bf16.msra.mxu0 0
  %1667 = vmatprep.subr.bf16.mxu0 0
  %1668 = vmatpush1.bf16.msra.mxu0 0
  %1669 = vmatprep.mubr.bf16.mxu0 0
  %1670 = vmatmul.mubr.bf16.gmra.mrb[0].mxu0 %v1632
  %v1671 = vpop.f32.mrb[0].mxu0
  %v1672 = vadd.f32 %v1593, %v1671
  %v1673 = vpop.f32.mrb[0].mxu0
  %v1674 = vpop.f32.mrb[0].mxu0
  %v1675 = vadd.f32 %v1596, %v1674
  %v1676 = vpop.f32.mrb[0].mxu0
  %1677 = vmatprep.mubr.bf16.mxu0 0
  %1678 = vmatmul.mubr.bf16.gmra.mrb[0].mxu0 %v1635
  %v1679 = vpop.f32.mrb[0].mxu0
  %v1680 = vadd.f32 %v1601, %v1679
  %v1681 = vpop.f32.mrb[0].mxu0
  %v1682 = vpop.f32.mrb[0].mxu0
  %v1683 = vadd.f32 %v1604, %v1682
  %v1684 = vpop.f32.mrb[0].mxu0
  %1685 = vdwg.mxu0
  %v1686 = vld [vmem:[%s39 + $0x40] sm:$0x1]
  %v1687 = vunpack.c.l.bf16 %v1686
  %v1688 = vlaneseq
  %v1689 = vshrl.u32 %v1688, 7
  %v1690 = vsub.s32 0, %v1689
  %v1691 = vrot.slane %v1687, %v1690
  %v1692 = vadd.f32 %v1672, %v1691
  %v1693 = vadd.f32 %v1675, %v1691
  %v1694 = vadd.f32 %v1680, %v1691
  %v1695 = vadd.f32 %v1683, %v1691
  %v1696 = vmax.f32 %v1692, 0.0
  %v1697 = vmax.f32 %v1693, 0.0
  %v1698 = vmax.f32 %v1694, 0.0
  %v1699 = vmax.f32 %v1695, 0.0
  %v1700 = vsel %vm613, %v1696, 0.0
  %v1701 = vsel %vm613, %v1697, 0.0
  %v1702 = vadd.f32 %v1700, %v1701
  %v1703 = vsel %vm613, %v1698, 0.0
  %v1704 = vadd.f32 %v1702, %v1703
  %v1705 = vsel %vm613, %v1699, 0.0
  %v1706 = vadd.f32 %v1704, %v1705
  %v1707 = vrot.slane %v1706, 4
  %v1708 = vadd.f32 %v1706, %v1707
  %v1709 = vrot.slane %v1708, 2
  %v1710 = vadd.f32 %v1708, %v1709
  %v1711 = vrot.slane %v1710, 1
  %v1712 = vadd.f32 %v1710, %v1711
  %v1713 = vmul.f32 %v1696, %v1696
  %v1714 = vmul.f32 %v1697, %v1697
  %v1715 = vmul.f32 %v1698, %v1698
  %v1716 = vmul.f32 %v1699, %v1699
  %v1717 = vsel %vm613, %v1713, 0.0
  %v1718 = vsel %vm613, %v1714, 0.0
  %v1719 = vadd.f32 %v1717, %v1718
  %v1720 = vsel %vm613, %v1715, 0.0
  %v1721 = vadd.f32 %v1719, %v1720
  %v1722 = vsel %vm613, %v1716, 0.0
  %v1723 = vadd.f32 %v1721, %v1722
  %v1724 = vrot.slane %v1723, 4
  %v1725 = vadd.f32 %v1723, %v1724
  %v1726 = vrot.slane %v1725, 2
  %v1727 = vadd.f32 %v1725, %v1726
  %v1728 = vrot.slane %v1727, 1
  %v1729 = vadd.f32 %v1727, %v1728
  %v1730 = vmul.f32 %v1712, 0.03125
  %v1731 = vmul.f32 %v1729, 0.03125
  %v1732 = vmul.f32 %v1730, %v1730
  %v1733 = vsub.f32 %v1731, %v1732
  %v1734 = vmax.f32 %v1733, 0.0
  %v1735 = vsub.f32 %v1696, %v1730
  %v1736 = vsub.f32 %v1697, %v1730
  %v1737 = vsub.f32 %v1698, %v1730
  %v1738 = vsub.f32 %v1699, %v1730
  %v1739 = vadd.f32 %v1734, 1e-05
  %v1740 = vrsqrt.pop %v1739
  %v1741 = vmul.f32 %v1735, %v1740
  %v1742 = vmul.f32 %v1736, %v1740
  %v1743 = vmul.f32 %v1737, %v1740
  %v1744 = vmul.f32 %v1738, %v1740
  %v1745 = vld [vmem:[%s21] sm:$0xf]
  %v1746 = vld [vmem:[%s21 + $0x4] sm:$0xf]
  %v1747 = vpack.c.bf16 %v1742, %v1741
  %v1748 = vpack.c.bf16 %v1744, %v1743
  %v1751 = vunpack.c.l.b16 %v1745
  %v1752 = vunpack.c.l.b16 %v1746
  %v1753 = vpack.c.b16 %v1752, %v1751
  %v1755 = vsel %vm278, %v1753, 0
  %1757 = vmatprep.subr.bf16.mxu0 0
  %1758 = vmatpush1.bf16.msra.mxu0 %v1747
  %1759 = vmatprep.subr.bf16.mxu0 0
  %1760 = vmatpush1.bf16.msra.mxu0 %v1748
  %1761 = vmatprep.subr.bf16.mxu0 0
  %1762 = vmatpush1.bf16.msra.mxu0 0
  %1763 = vmatprep.subr.bf16.mxu0 0
  %1764 = vmatpush1.bf16.msra.mxu0 0
  %1765 = vmatprep.subr.bf16.mxu0 0
  %1766 = vmatpush1.bf16.msra.mxu0 0
  %1767 = vmatprep.subr.bf16.mxu0 0
  %1768 = vmatpush1.bf16.msra.mxu0 0
  %1769 = vmatprep.subr.bf16.mxu0 0
  %1770 = vmatpush1.bf16.msra.mxu0 0
  %1771 = vmatprep.subr.bf16.mxu0 0
  %1772 = vmatpush1.bf16.msra.mxu0 0
  %1773 = vmatprep.subr.bf16.mxu0 0
  %1774 = vmatpush1.bf16.msra.mxu0 0
  %1775 = vmatprep.subr.bf16.mxu0 0
  %1776 = vmatpush1.bf16.msra.mxu0 0
  %1777 = vmatprep.subr.bf16.mxu0 0
  %1778 = vmatpush1.bf16.msra.mxu0 0
  %1779 = vmatprep.subr.bf16.mxu0 0
  %1780 = vmatpush1.bf16.msra.mxu0 0
  %1781 = vmatprep.subr.bf16.mxu0 0
  %1782 = vmatpush1.bf16.msra.mxu0 0
  %1783 = vmatprep.subr.bf16.mxu0 0
  %1784 = vmatpush1.bf16.msra.mxu0 0
  %1785 = vmatprep.subr.bf16.mxu0 0
  %1786 = vmatpush1.bf16.msra.mxu0 0
  %1787 = vmatprep.subr.bf16.mxu0 0
  %1788 = vmatpush1.bf16.msra.mxu0 0
  %1789 = vmatprep.mubr.bf16.mxu0 0
  %1790 = vmatmul.mubr.bf16.gmra.mrb[0].mxu0 %v1755
  %v1791 = vpop.f32.mrb[0].mxu0
  %v1792 = vadd.f32 0.0, %v1791
  %v1793 = vpop.f32.mrb[0].mxu0
  %v1794 = vpop.f32.mrb[0].mxu0
  %v1795 = vadd.f32 0.0, %v1794
  %v1796 = vpop.f32.mrb[0].mxu0
  %1797 = vdwg.mxu0
  %v1798 = vpack.c.bf16 %v1795, %v1792
  %v1799 = vld [vmem:[%s15] sm:$0xf]
  %v1800 = vld [vmem:[%s15 + $0x4] sm:$0xf]
  %v1803 = vunpack.c.l.b16 %v1799
  %v1804 = vunpack.c.l.b16 %v1800
  %v1805 = vpack.c.b16 %v1804, %v1803
  %vm1806 = vcmask 130048
  %v1808 = vsel %vm1806, %v1805, 0
  %1810 = vmatprep.subr.bf16.mxu0 0
  %1811 = vmatpush1.bf16.msra.mxu0 %v1798
  %1812 = vmatprep.subr.bf16.mxu0 0
  %1813 = vmatpush1.bf16.msra.mxu0 0
  %1814 = vmatprep.subr.bf16.mxu0 0
  %1815 = vmatpush1.bf16.msra.mxu0 0
  %1816 = vmatprep.subr.bf16.mxu0 0
  %1817 = vmatpush1.bf16.msra.mxu0 0
  %1818 = vmatprep.subr.bf16.mxu0 0
  %1819 = vmatpush1.bf16.msra.mxu0 0
  %1820 = vmatprep.subr.bf16.mxu0 0
  %1821 = vmatpush1.bf16.msra.mxu0 0
  %1822 = vmatprep.subr.bf16.mxu0 0
  %1823 = vmatpush1.bf16.msra.mxu0 0
  %1824 = vmatprep.subr.bf16.mxu0 0
  %1825 = vmatpush1.bf16.msra.mxu0 0
  %1826 = vmatprep.subr.bf16.mxu0 0
  %1827 = vmatpush1.bf16.msra.mxu0 0
  %1828 = vmatprep.subr.bf16.mxu0 0
  %1829 = vmatpush1.bf16.msra.mxu0 0
  %1830 = vmatprep.subr.bf16.mxu0 0
  %1831 = vmatpush1.bf16.msra.mxu0 0
  %1832 = vmatprep.subr.bf16.mxu0 0
  %1833 = vmatpush1.bf16.msra.mxu0 0
  %1834 = vmatprep.subr.bf16.mxu0 0
  %1835 = vmatpush1.bf16.msra.mxu0 0
  %1836 = vmatprep.subr.bf16.mxu0 0
  %1837 = vmatpush1.bf16.msra.mxu0 0
  %1838 = vmatprep.subr.bf16.mxu0 0
  %1839 = vmatpush1.bf16.msra.mxu0 0
  %1840 = vmatprep.subr.bf16.mxu0 0
  %1841 = vmatpush1.bf16.msra.mxu0 0
  %1842 = vmatprep.mubr.bf16.mxu0 0
  %1843 = vmatmul.mubr.bf16.gmra.mrb[0].mxu0 %v1808
  %v1844 = vpop.f32.mrb[0].mxu0
  %v1845 = vadd.f32 0.0, %v1844
  %v1846 = vpop.f32.mrb[0].mxu0
  %v1847 = vpop.f32.mrb[0].mxu0
  %v1848 = vadd.f32 0.0, %v1847
  %v1849 = vpop.f32.mrb[0].mxu0
  %1850 = vdwg.mxu0
  %v1851 = vld [vmem:[%s41] sm:$0xf]
  %v1852 = vld [vmem:[%s41 + $0x4] sm:$0xf]
  %v1853 = vld [vmem:[%s41 + $0x8] sm:$0xf]
  %v1854 = vld [vmem:[%s41 + $0xc] sm:$0xf]
  %v1855 = vld [vmem:[%s41 + $0x10] sm:$0xf]
  %v1856 = vld [vmem:[%s41 + $0x14] sm:$0xf]
  %v1857 = vld [vmem:[%s41 + $0x18] sm:$0xf]
  %v1858 = vld [vmem:[%s41 + $0x1c] sm:$0xf]
  %v1859 = vpack.c.bf16 %v1848, %v1845
  %v1860 = vld [vmem:[%s41 + $0x20] sm:$0xf]
  %v1861 = vld [vmem:[%s41 + $0x24] sm:$0xf]
  %v1862 = vld [vmem:[%s41 + $0x28] sm:$0xf]
  %v1863 = vld [vmem:[%s41 + $0x2c] sm:$0xf]
  %v1864 = vld [vmem:[%s41 + $0x30] sm:$0xf]
  %v1865 = vld [vmem:[%s41 + $0x34] sm:$0xf]
  %v1866 = vld [vmem:[%s41 + $0x38] sm:$0xf]
  %v1867 = vld [vmem:[%s41 + $0x3c] sm:$0xf]
  %v1876 = vunpack.c.l.b16 %v1860
  %v1877 = vunpack.c.l.b16 %v1861
  %v1878 = vunpack.c.l.b16 %v1862
  %v1879 = vunpack.c.l.b16 %v1863
  %v1880 = vunpack.c.l.b16 %v1864
  %v1881 = vunpack.c.l.b16 %v1865
  %v1882 = vunpack.c.l.b16 %v1866
  %v1883 = vunpack.c.l.b16 %v1867
  %v1884 = vpack.c.b16 %v1877, %v1876
  %v1885 = vpack.c.b16 %v1879, %v1878
  %v1886 = vpack.c.b16 %v1881, %v1880
  %v1887 = vpack.c.b16 %v1883, %v1882
  %v1893 = vsel %vm613, %v1798, 0
  %1895 = vmatprep.subr.bf16.mxu0 0
  %1896 = vmatpush1.bf16.msra.mxu0 %v1884
  %1897 = vmatprep.subr.bf16.mxu0 0
  %1898 = vmatpush1.bf16.msra.mxu0 %v1885
  %1899 = vmatprep.subr.bf16.mxu0 0
  %1900 = vmatpush1.bf16.msra.mxu0 %v1886
  %1901 = vmatprep.subr.bf16.mxu0 0
  %1902 = vmatpush1.bf16.msra.mxu0 %v1887
  %1903 = vmatprep.subr.bf16.mxu0 0
  %1904 = vmatpush1.bf16.msra.mxu0 0
  %1905 = vmatprep.subr.bf16.mxu0 0
  %1906 = vmatpush1.bf16.msra.mxu0 0
  %1907 = vmatprep.subr.bf16.mxu0 0
  %1908 = vmatpush1.bf16.msra.mxu0 0
  %1909 = vmatprep.subr.bf16.mxu0 0
  %1910 = vmatpush1.bf16.msra.mxu0 0
  %1911 = vmatprep.subr.bf16.mxu0 0
  %1912 = vmatpush1.bf16.msra.mxu0 0
  %1913 = vmatprep.subr.bf16.mxu0 0
  %1914 = vmatpush1.bf16.msra.mxu0 0
  %1915 = vmatprep.subr.bf16.mxu0 0
  %1916 = vmatpush1.bf16.msra.mxu0 0
  %1917 = vmatprep.subr.bf16.mxu0 0
  %1918 = vmatpush1.bf16.msra.mxu0 0
  %1919 = vmatprep.subr.bf16.mxu0 0
  %1920 = vmatpush1.bf16.msra.mxu0 0
  %1921 = vmatprep.subr.bf16.mxu0 0
  %1922 = vmatpush1.bf16.msra.mxu0 0
  %1923 = vmatprep.subr.bf16.mxu0 0
  %1924 = vmatpush1.bf16.msra.mxu0 0
  %1925 = vmatprep.subr.bf16.mxu0 0
  %1926 = vmatpush1.bf16.msra.mxu0 0
  %1927 = vmatprep.mubr.bf16.mxu0 0
  %1928 = vmatmul.mubr.bf16.gmra.mrb[0].mxu0 %v1893
  %v1929 = vpop.f32.mrb[0].mxu0
  %v1930 = vadd.f32 0.0, %v1929
  %v1931 = vpop.f32.mrb[0].mxu0
  %v1932 = vpop.f32.mrb[0].mxu0
  %v1933 = vadd.f32 0.0, %v1932
  %v1934 = vpop.f32.mrb[0].mxu0
  %1935 = vdwg.mxu0
  %v1944 = vunpack.c.l.b16 %v1851
  %v1945 = vunpack.c.l.b16 %v1852
  %v1946 = vunpack.c.l.b16 %v1853
  %v1947 = vunpack.c.l.b16 %v1854
  %v1948 = vunpack.c.l.b16 %v1855
  %v1949 = vunpack.c.l.b16 %v1856
  %v1950 = vunpack.c.l.b16 %v1857
  %v1951 = vunpack.c.l.b16 %v1858
  %v1952 = vpack.c.b16 %v1945, %v1944
  %v1953 = vpack.c.b16 %v1947, %v1946
  %v1954 = vpack.c.b16 %v1949, %v1948
  %v1955 = vpack.c.b16 %v1951, %v1950
  %v1961 = vsel %vm613, %v1859, 0
  %1963 = vmatprep.subr.bf16.mxu0 0
  %1964 = vmatpush1.bf16.msra.mxu0 %v1952
  %1965 = vmatprep.subr.bf16.mxu0 0
  %1966 = vmatpush1.bf16.msra.mxu0 %v1953
  %1967 = vmatprep.subr.bf16.mxu0 0
  %1968 = vmatpush1.bf16.msra.mxu0 %v1954
  %1969 = vmatprep.subr.bf16.mxu0 0
  %1970 = vmatpush1.bf16.msra.mxu0 %v1955
  %1971 = vmatprep.subr.bf16.mxu0 0
  %1972 = vmatpush1.bf16.msra.mxu0 0
  %1973 = vmatprep.subr.bf16.mxu0 0
  %1974 = vmatpush1.bf16.msra.mxu0 0
  %1975 = vmatprep.subr.bf16.mxu0 0
  %1976 = vmatpush1.bf16.msra.mxu0 0
  %1977 = vmatprep.subr.bf16.mxu0 0
  %1978 = vmatpush1.bf16.msra.mxu0 0
  %1979 = vmatprep.subr.bf16.mxu0 0
  %1980 = vmatpush1.bf16.msra.mxu0 0
  %1981 = vmatprep.subr.bf16.mxu0 0
  %1982 = vmatpush1.bf16.msra.mxu0 0
  %1983 = vmatprep.subr.bf16.mxu0 0
  %1984 = vmatpush1.bf16.msra.mxu0 0
  %1985 = vmatprep.subr.bf16.mxu0 0
  %1986 = vmatpush1.bf16.msra.mxu0 0
  %1987 = vmatprep.subr.bf16.mxu0 0
  %1988 = vmatpush1.bf16.msra.mxu0 0
  %1989 = vmatprep.subr.bf16.mxu0 0
  %1990 = vmatpush1.bf16.msra.mxu0 0
  %1991 = vmatprep.subr.bf16.mxu0 0
  %1992 = vmatpush1.bf16.msra.mxu0 0
  %1993 = vmatprep.subr.bf16.mxu0 0
  %1994 = vmatpush1.bf16.msra.mxu0 0
  %1995 = vmatprep.mubr.bf16.mxu0 0
  %1996 = vmatmul.mubr.bf16.gmra.mrb[0].mxu0 %v1961
  %v1997 = vpop.f32.mrb[0].mxu0
  %v1998 = vadd.f32 %v1930, %v1997
  %v1999 = vpop.f32.mrb[0].mxu0
  %v2000 = vpop.f32.mrb[0].mxu0
  %v2001 = vadd.f32 %v1933, %v2000
  %v2002 = vpop.f32.mrb[0].mxu0
  %2003 = vdwg.mxu0
  %v2004 = vld [vmem:[%s41 + $0x40] sm:$0x1]
  %v2005 = vunpack.c.l.bf16 %v2004
  %v2006 = vlaneseq
  %v2007 = vshrl.u32 %v2006, 7
  %v2008 = vsub.s32 0, %v2007
  %v2009 = vrot.slane %v2005, %v2008
  %v2010 = vadd.f32 %v1998, %v2009
  %v2011 = vadd.f32 %v2001, %v2009
  %v2012 = vmax.f32 %v2010, 0.0
  %v2013 = vmax.f32 %v2011, 0.0
  %v2014 = vpack.c.bf16 %v2013, %v2012
  %2015 = vmatprep.subr.bf16.mxu0 0
  %2016 = vmatpush1.bf16.msra.mxu0 %v2014
  %2017 = vmatprep.subr.bf16.mxu0 0
  %2018 = vmatpush1.bf16.msra.mxu0 0
  %2019 = vmatprep.subr.bf16.mxu0 0
  %2020 = vmatpush1.bf16.msra.mxu0 0
  %2021 = vmatprep.subr.bf16.mxu0 0
  %2022 = vmatpush1.bf16.msra.mxu0 0
  %2023 = vmatprep.subr.bf16.mxu0 0
  %2024 = vmatpush1.bf16.msra.mxu0 0
  %2025 = vmatprep.subr.bf16.mxu0 0
  %2026 = vmatpush1.bf16.msra.mxu0 0
  %2027 = vmatprep.subr.bf16.mxu0 0
  %2028 = vmatpush1.bf16.msra.mxu0 0
  %2029 = vmatprep.subr.bf16.mxu0 0
  %2030 = vmatpush1.bf16.msra.mxu0 0
  %2031 = vmatprep.subr.bf16.mxu0 0
  %2032 = vmatpush1.bf16.msra.mxu0 0
  %2033 = vmatprep.subr.bf16.mxu0 0
  %2034 = vmatpush1.bf16.msra.mxu0 0
  %2035 = vmatprep.subr.bf16.mxu0 0
  %2036 = vmatpush1.bf16.msra.mxu0 0
  %2037 = vmatprep.subr.bf16.mxu0 0
  %2038 = vmatpush1.bf16.msra.mxu0 0
  %2039 = vmatprep.subr.bf16.mxu0 0
  %2040 = vmatpush1.bf16.msra.mxu0 0
  %2041 = vmatprep.subr.bf16.mxu0 0
  %2042 = vmatpush1.bf16.msra.mxu0 0
  %2043 = vmatprep.subr.bf16.mxu0 0
  %2044 = vmatpush1.bf16.msra.mxu0 0
  %2045 = vmatprep.subr.bf16.mxu0 0
  %2046 = vmatpush1.bf16.msra.mxu0 0
  %2047 = vmatprep.mubr.bf16.mxu0 0
  %2048 = vmatmul.mubr.bf16.gmra.mrb[0].mxu0 %v1808
  %v2049 = vpop.f32.mrb[0].mxu0
  %v2050 = vadd.f32 0.0, %v2049
  %v2051 = vpop.f32.mrb[0].mxu0
  %v2052 = vpop.f32.mrb[0].mxu0
  %v2053 = vadd.f32 0.0, %v2052
  %v2054 = vpop.f32.mrb[0].mxu0
  %2055 = vdwg.mxu0
  %v2056 = vld [vmem:[%s43] sm:$0xf]
  %v2057 = vld [vmem:[%s43 + $0x4] sm:$0xf]
  %v2058 = vld [vmem:[%s43 + $0x8] sm:$0xf]
  %v2059 = vld [vmem:[%s43 + $0xc] sm:$0xf]
  %v2060 = vld [vmem:[%s43 + $0x10] sm:$0xf]
  %v2061 = vld [vmem:[%s43 + $0x14] sm:$0xf]
  %v2062 = vld [vmem:[%s43 + $0x18] sm:$0xf]
  %v2063 = vld [vmem:[%s43 + $0x1c] sm:$0xf]
  %v2064 = vpack.c.bf16 %v2053, %v2050
  %v2065 = vld [vmem:[%s43 + $0x20] sm:$0xf]
  %v2066 = vld [vmem:[%s43 + $0x24] sm:$0xf]
  %v2067 = vld [vmem:[%s43 + $0x28] sm:$0xf]
  %v2068 = vld [vmem:[%s43 + $0x2c] sm:$0xf]
  %v2069 = vld [vmem:[%s43 + $0x30] sm:$0xf]
  %v2070 = vld [vmem:[%s43 + $0x34] sm:$0xf]
  %v2071 = vld [vmem:[%s43 + $0x38] sm:$0xf]
  %v2072 = vld [vmem:[%s43 + $0x3c] sm:$0xf]
  %v2081 = vunpack.c.l.b16 %v2065
  %v2082 = vunpack.c.l.b16 %v2066
  %v2083 = vunpack.c.l.b16 %v2067
  %v2084 = vunpack.c.l.b16 %v2068
  %v2085 = vunpack.c.l.b16 %v2069
  %v2086 = vunpack.c.l.b16 %v2070
  %v2087 = vunpack.c.l.b16 %v2071
  %v2088 = vunpack.c.l.b16 %v2072
  %v2089 = vpack.c.b16 %v2082, %v2081
  %v2090 = vpack.c.b16 %v2084, %v2083
  %v2091 = vpack.c.b16 %v2086, %v2085
  %v2092 = vpack.c.b16 %v2088, %v2087
  %v2098 = vsel %vm613, %v2014, 0
  %2100 = vmatprep.subr.bf16.mxu0 0
  %2101 = vmatpush1.bf16.msra.mxu0 %v2089
  %2102 = vmatprep.subr.bf16.mxu0 0
  %2103 = vmatpush1.bf16.msra.mxu0 %v2090
  %2104 = vmatprep.subr.bf16.mxu0 0
  %2105 = vmatpush1.bf16.msra.mxu0 %v2091
  %2106 = vmatprep.subr.bf16.mxu0 0
  %2107 = vmatpush1.bf16.msra.mxu0 %v2092
  %2108 = vmatprep.subr.bf16.mxu0 0
  %2109 = vmatpush1.bf16.msra.mxu0 0
  %2110 = vmatprep.subr.bf16.mxu0 0
  %2111 = vmatpush1.bf16.msra.mxu0 0
  %2112 = vmatprep.subr.bf16.mxu0 0
  %2113 = vmatpush1.bf16.msra.mxu0 0
  %2114 = vmatprep.subr.bf16.mxu0 0
  %2115 = vmatpush1.bf16.msra.mxu0 0
  %2116 = vmatprep.subr.bf16.mxu0 0
  %2117 = vmatpush1.bf16.msra.mxu0 0
  %2118 = vmatprep.subr.bf16.mxu0 0
  %2119 = vmatpush1.bf16.msra.mxu0 0
  %2120 = vmatprep.subr.bf16.mxu0 0
  %2121 = vmatpush1.bf16.msra.mxu0 0
  %2122 = vmatprep.subr.bf16.mxu0 0
  %2123 = vmatpush1.bf16.msra.mxu0 0
  %2124 = vmatprep.subr.bf16.mxu0 0
  %2125 = vmatpush1.bf16.msra.mxu0 0
  %2126 = vmatprep.subr.bf16.mxu0 0
  %2127 = vmatpush1.bf16.msra.mxu0 0
  %2128 = vmatprep.subr.bf16.mxu0 0
  %2129 = vmatpush1.bf16.msra.mxu0 0
  %2130 = vmatprep.subr.bf16.mxu0 0
  %2131 = vmatpush1.bf16.msra.mxu0 0
  %2132 = vmatprep.mubr.bf16.mxu0 0
  %2133 = vmatmul.mubr.bf16.gmra.mrb[0].mxu0 %v2098
  %v2134 = vpop.f32.mrb[0].mxu0
  %v2135 = vadd.f32 0.0, %v2134
  %v2136 = vpop.f32.mrb[0].mxu0
  %v2137 = vpop.f32.mrb[0].mxu0
  %v2138 = vadd.f32 0.0, %v2137
  %v2139 = vpop.f32.mrb[0].mxu0
  %2140 = vdwg.mxu0
  %v2149 = vunpack.c.l.b16 %v2056
  %v2150 = vunpack.c.l.b16 %v2057
  %v2151 = vunpack.c.l.b16 %v2058
  %v2152 = vunpack.c.l.b16 %v2059
  %v2153 = vunpack.c.l.b16 %v2060
  %v2154 = vunpack.c.l.b16 %v2061
  %v2155 = vunpack.c.l.b16 %v2062
  %v2156 = vunpack.c.l.b16 %v2063
  %v2157 = vpack.c.b16 %v2150, %v2149
  %v2158 = vpack.c.b16 %v2152, %v2151
  %v2159 = vpack.c.b16 %v2154, %v2153
  %v2160 = vpack.c.b16 %v2156, %v2155
  %v2166 = vsel %vm613, %v2064, 0
  %2168 = vmatprep.subr.bf16.mxu0 0
  %2169 = vmatpush1.bf16.msra.mxu0 %v2157
  %2170 = vmatprep.subr.bf16.mxu0 0
  %2171 = vmatpush1.bf16.msra.mxu0 %v2158
  %2172 = vmatprep.subr.bf16.mxu0 0
  %2173 = vmatpush1.bf16.msra.mxu0 %v2159
  %2174 = vmatprep.subr.bf16.mxu0 0
  %2175 = vmatpush1.bf16.msra.mxu0 %v2160
  %2176 = vmatprep.subr.bf16.mxu0 0
  %2177 = vmatpush1.bf16.msra.mxu0 0
  %2178 = vmatprep.subr.bf16.mxu0 0
  %2179 = vmatpush1.bf16.msra.mxu0 0
  %2180 = vmatprep.subr.bf16.mxu0 0
  %2181 = vmatpush1.bf16.msra.mxu0 0
  %2182 = vmatprep.subr.bf16.mxu0 0
  %2183 = vmatpush1.bf16.msra.mxu0 0
  %2184 = vmatprep.subr.bf16.mxu0 0
  %2185 = vmatpush1.bf16.msra.mxu0 0
  %2186 = vmatprep.subr.bf16.mxu0 0
  %2187 = vmatpush1.bf16.msra.mxu0 0
  %2188 = vmatprep.subr.bf16.mxu0 0
  %2189 = vmatpush1.bf16.msra.mxu0 0
  %2190 = vmatprep.subr.bf16.mxu0 0
  %2191 = vmatpush1.bf16.msra.mxu0 0
  %2192 = vmatprep.subr.bf16.mxu0 0
  %2193 = vmatpush1.bf16.msra.mxu0 0
  %2194 = vmatprep.subr.bf16.mxu0 0
  %2195 = vmatpush1.bf16.msra.mxu0 0
  %2196 = vmatprep.subr.bf16.mxu0 0
  %2197 = vmatpush1.bf16.msra.mxu0 0
  %2198 = vmatprep.subr.bf16.mxu0 0
  %2199 = vmatpush1.bf16.msra.mxu0 0
  %2200 = vmatprep.mubr.bf16.mxu0 0
  %2201 = vmatmul.mubr.bf16.gmra.mrb[0].mxu0 %v2166
  %v2202 = vpop.f32.mrb[0].mxu0
  %v2203 = vadd.f32 %v2135, %v2202
  %v2204 = vpop.f32.mrb[0].mxu0
  %v2205 = vpop.f32.mrb[0].mxu0
  %v2206 = vadd.f32 %v2138, %v2205
  %v2207 = vpop.f32.mrb[0].mxu0
  %2208 = vdwg.mxu0
  %v2209 = vld [vmem:[%s43 + $0x40] sm:$0x1]
  %v2210 = vunpack.c.l.bf16 %v2209
  %v2211 = vlaneseq
  %v2212 = vshrl.u32 %v2211, 7
  %v2213 = vsub.s32 0, %v2212
  %v2214 = vrot.slane %v2210, %v2213
  %v2215 = vadd.f32 %v2203, %v2214
  %v2216 = vadd.f32 %v2206, %v2214
  %v2217 = vmax.f32 %v2215, 0.0
  %v2218 = vmax.f32 %v2216, 0.0
  %v2219 = vsel %vm613, %v2217, 0.0
  %v2220 = vsel %vm613, %v2218, 0.0
  %v2221 = vadd.f32 %v2219, %v2220
  %v2222 = vrot.slane %v2221, 4
  %v2223 = vadd.f32 %v2221, %v2222
  %v2224 = vrot.slane %v2223, 2
  %v2225 = vadd.f32 %v2223, %v2224
  %v2226 = vrot.slane %v2225, 1
  %v2227 = vadd.f32 %v2225, %v2226
  %v2228 = vmul.f32 %v2217, %v2217
  %v2229 = vmul.f32 %v2218, %v2218
  %v2230 = vsel %vm613, %v2228, 0.0
  %v2231 = vsel %vm613, %v2229, 0.0
  %v2232 = vadd.f32 %v2230, %v2231
  %v2233 = vrot.slane %v2232, 4
  %v2234 = vadd.f32 %v2232, %v2233
  %v2235 = vrot.slane %v2234, 2
  %v2236 = vadd.f32 %v2234, %v2235
  %v2237 = vrot.slane %v2236, 1
  %v2238 = vadd.f32 %v2236, %v2237
  %v2239 = vmul.f32 %v2227, 0.0625
  %v2240 = vmul.f32 %v2238, 0.0625
  %v2241 = vmul.f32 %v2239, %v2239
  %v2242 = vsub.f32 %v2240, %v2241
  %v2243 = vmax.f32 %v2242, 0.0
  %v2244 = vsub.f32 %v2217, %v2239
  %v2245 = vsub.f32 %v2218, %v2239
  %v2246 = vadd.f32 %v2243, 1e-05
  %v2247 = vrsqrt.pop %v2246
  %v2248 = vmul.f32 %v2244, %v2247
  %v2249 = vmul.f32 %v2245, %v2247
  %v2250 = vld [vmem:[%s23] sm:$0xf]
  %v2251 = vpack.c.bf16 %v2249, %v2248
  %v2253 = vsel %vm1806, %v2250, 0
  %2255 = vmatprep.subr.bf16.mxu0 0
  %2256 = vmatpush1.bf16.msra.mxu0 %v2251
  %2257 = vmatprep.subr.bf16.mxu0 0
  %2258 = vmatpush1.bf16.msra.mxu0 0
  %2259 = vmatprep.subr.bf16.mxu0 0
  %2260 = vmatpush1.bf16.msra.mxu0 0
  %2261 = vmatprep.subr.bf16.mxu0 0
  %2262 = vmatpush1.bf16.msra.mxu0 0
  %2263 = vmatprep.subr.bf16.mxu0 0
  %2264 = vmatpush1.bf16.msra.mxu0 0
  %2265 = vmatprep.subr.bf16.mxu0 0
  %2266 = vmatpush1.bf16.msra.mxu0 0
  %2267 = vmatprep.subr.bf16.mxu0 0
  %2268 = vmatpush1.bf16.msra.mxu0 0
  %2269 = vmatprep.subr.bf16.mxu0 0
  %2270 = vmatpush1.bf16.msra.mxu0 0
  %2271 = vmatprep.subr.bf16.mxu0 0
  %2272 = vmatpush1.bf16.msra.mxu0 0
  %2273 = vmatprep.subr.bf16.mxu0 0
  %2274 = vmatpush1.bf16.msra.mxu0 0
  %2275 = vmatprep.subr.bf16.mxu0 0
  %2276 = vmatpush1.bf16.msra.mxu0 0
  %2277 = vmatprep.subr.bf16.mxu0 0
  %2278 = vmatpush1.bf16.msra.mxu0 0
  %2279 = vmatprep.subr.bf16.mxu0 0
  %2280 = vmatpush1.bf16.msra.mxu0 0
  %2281 = vmatprep.subr.bf16.mxu0 0
  %2282 = vmatpush1.bf16.msra.mxu0 0
  %2283 = vmatprep.subr.bf16.mxu0 0
  %2284 = vmatpush1.bf16.msra.mxu0 0
  %2285 = vmatprep.subr.bf16.mxu0 0
  %2286 = vmatpush1.bf16.msra.mxu0 0
  %2287 = vmatprep.mubr.bf16.mxu0 0
  %2288 = vmatmul.mubr.bf16.gmra.mrb[0].mxu0 %v2253
  %v2289 = vpop.f32.mrb[0].mxu0
  %v2290 = vadd.f32 0.0, %v2289
  %v2291 = vpop.f32.mrb[0].mxu0
  %v2292 = vpop.f32.mrb[0].mxu0
  %v2293 = vpop.f32.mrb[0].mxu0
  %2294 = vdwg.mxu0
  %v2295 = vpack.c.bf16 %v2290, %v2290
  %v2296 = vld [vmem:[%s17] sm:$0xf]
  %v2298 = vsel %vm195, %v2296, 0
  %vm2300 = vcmask 1043456
  %v2302 = vsel %vm2300, %v2295, 0
  %2304 = vmatprep.subr.bf16.mxu0 0
  %2305 = vmatpush1.bf16.msra.mxu0 %v2302
  %2306 = vmatprep.subr.bf16.mxu0 0
  %2307 = vmatpush1.bf16.msra.mxu0 0
  %2308 = vmatprep.subr.bf16.mxu0 0
  %2309 = vmatpush1.bf16.msra.mxu0 0
  %2310 = vmatprep.subr.bf16.mxu0 0
  %2311 = vmatpush1.bf16.msra.mxu0 0
  %2312 = vmatprep.subr.bf16.mxu0 0
  %2313 = vmatpush1.bf16.msra.mxu0 0
  %2314 = vmatprep.subr.bf16.mxu0 0
  %2315 = vmatpush1.bf16.msra.mxu0 0
  %2316 = vmatprep.subr.bf16.mxu0 0
  %2317 = vmatpush1.bf16.msra.mxu0 0
  %2318 = vmatprep.subr.bf16.mxu0 0
  %2319 = vmatpush1.bf16.msra.mxu0 0
  %2320 = vmatprep.subr.bf16.mxu0 0
  %2321 = vmatpush1.bf16.msra.mxu0 0
  %2322 = vmatprep.subr.bf16.mxu0 0
  %2323 = vmatpush1.bf16.msra.mxu0 0
  %2324 = vmatprep.subr.bf16.mxu0 0
  %2325 = vmatpush1.bf16.msra.mxu0 0
  %2326 = vmatprep.subr.bf16.mxu0 0
  %2327 = vmatpush1.bf16.msra.mxu0 0
  %2328 = vmatprep.subr.bf16.mxu0 0
  %2329 = vmatpush1.bf16.msra.mxu0 0
  %2330 = vmatprep.subr.bf16.mxu0 0
  %2331 = vmatpush1.bf16.msra.mxu0 0
  %2332 = vmatprep.subr.bf16.mxu0 0
  %2333 = vmatpush1.bf16.msra.mxu0 0
  %2334 = vmatprep.subr.bf16.mxu0 0
  %2335 = vmatpush1.bf16.msra.mxu0 0
  %2336 = vmatprep.mubr.bf16.mxu0 0
  %2337 = vmatmul.mubr.bf16.gmra.mrb[0].mxu0 %v2298
  %v2338 = vpop.f32.mrb[0].mxu0
  %v2339 = vadd.f32 0.0, %v2338
  %v2340 = vpop.f32.mrb[0].mxu0
  %v2341 = vpop.f32.mrb[0].mxu0
  %v2342 = vpop.f32.mrb[0].mxu0
  %2343 = vdwg.mxu0
  %v2344 = vld [vmem:[%s45] sm:$0xf]
  %v2345 = vld [vmem:[%s45 + $0x4] sm:$0xf]
  %v2346 = vld [vmem:[%s45 + $0x8] sm:$0xf]
  %v2347 = vld [vmem:[%s45 + $0xc] sm:$0xf]
  %v2348 = vld [vmem:[%s45 + $0x10] sm:$0xf]
  %v2349 = vld [vmem:[%s45 + $0x14] sm:$0xf]
  %v2350 = vld [vmem:[%s45 + $0x18] sm:$0xf]
  %v2351 = vld [vmem:[%s45 + $0x1c] sm:$0xf]
  %v2352 = vpack.c.bf16 %v2339, %v2339
  %v2353 = vld [vmem:[%s45 + $0x20] sm:$0xf]
  %v2354 = vld [vmem:[%s45 + $0x24] sm:$0xf]
  %v2355 = vld [vmem:[%s45 + $0x28] sm:$0xf]
  %v2356 = vld [vmem:[%s45 + $0x2c] sm:$0xf]
  %v2357 = vld [vmem:[%s45 + $0x30] sm:$0xf]
  %v2358 = vld [vmem:[%s45 + $0x34] sm:$0xf]
  %v2359 = vld [vmem:[%s45 + $0x38] sm:$0xf]
  %v2360 = vld [vmem:[%s45 + $0x3c] sm:$0xf]
  %v2369 = vunpack.c.l.b16 %v2353
  %v2370 = vunpack.c.l.b16 %v2354
  %v2371 = vunpack.c.l.b16 %v2355
  %v2372 = vunpack.c.l.b16 %v2356
  %v2373 = vunpack.c.l.b16 %v2357
  %v2374 = vunpack.c.l.b16 %v2358
  %v2375 = vunpack.c.l.b16 %v2359
  %v2376 = vunpack.c.l.b16 %v2360
  %v2377 = vpack.c.b16 %v2370, %v2369
  %v2378 = vpack.c.b16 %v2372, %v2371
  %v2379 = vpack.c.b16 %v2374, %v2373
  %v2380 = vpack.c.b16 %v2376, %v2375
  %v2385 = vsel %vm613, %v2295, 0
  %2387 = vmatprep.subr.bf16.mxu0 0
  %2388 = vmatpush1.bf16.msra.mxu0 %v2377
  %2389 = vmatprep.subr.bf16.mxu0 0
  %2390 = vmatpush1.bf16.msra.mxu0 %v2378
  %2391 = vmatprep.subr.bf16.mxu0 0
  %2392 = vmatpush1.bf16.msra.mxu0 %v2379
  %2393 = vmatprep.subr.bf16.mxu0 0
  %2394 = vmatpush1.bf16.msra.mxu0 %v2380
  %2395 = vmatprep.subr.bf16.mxu0 0
  %2396 = vmatpush1.bf16.msra.mxu0 0
  %2397 = vmatprep.subr.bf16.mxu0 0
  %2398 = vmatpush1.bf16.msra.mxu0 0
  %2399 = vmatprep.subr.bf16.mxu0 0
  %2400 = vmatpush1.bf16.msra.mxu0 0
  %2401 = vmatprep.subr.bf16.mxu0 0
  %2402 = vmatpush1.bf16.msra.mxu0 0
  %2403 = vmatprep.subr.bf16.mxu0 0
  %2404 = vmatpush1.bf16.msra.mxu0 0
  %2405 = vmatprep.subr.bf16.mxu0 0
  %2406 = vmatpush1.bf16.msra.mxu0 0
  %2407 = vmatprep.subr.bf16.mxu0 0
  %2408 = vmatpush1.bf16.msra.mxu0 0
  %2409 = vmatprep.subr.bf16.mxu0 0
  %2410 = vmatpush1.bf16.msra.mxu0 0
  %2411 = vmatprep.subr.bf16.mxu0 0
  %2412 = vmatpush1.bf16.msra.mxu0 0
  %2413 = vmatprep.subr.bf16.mxu0 0
  %2414 = vmatpush1.bf16.msra.mxu0 0
  %2415 = vmatprep.subr.bf16.mxu0 0
  %2416 = vmatpush1.bf16.msra.mxu0 0
  %2417 = vmatprep.subr.bf16.mxu0 0
  %2418 = vmatpush1.bf16.msra.mxu0 0
  %2419 = vmatprep.mubr.bf16.mxu0 0
  %2420 = vmatmul.mubr.bf16.gmra.mrb[0].mxu0 %v2385
  %v2421 = vpop.f32.mrb[0].mxu0
  %v2422 = vadd.f32 0.0, %v2421
  %v2423 = vpop.f32.mrb[0].mxu0
  %v2424 = vpop.f32.mrb[0].mxu0
  %v2425 = vpop.f32.mrb[0].mxu0
  %2426 = vdwg.mxu0
  %v2435 = vunpack.c.l.b16 %v2344
  %v2436 = vunpack.c.l.b16 %v2345
  %v2437 = vunpack.c.l.b16 %v2346
  %v2438 = vunpack.c.l.b16 %v2347
  %v2439 = vunpack.c.l.b16 %v2348
  %v2440 = vunpack.c.l.b16 %v2349
  %v2441 = vunpack.c.l.b16 %v2350
  %v2442 = vunpack.c.l.b16 %v2351
  %v2443 = vpack.c.b16 %v2436, %v2435
  %v2444 = vpack.c.b16 %v2438, %v2437
  %v2445 = vpack.c.b16 %v2440, %v2439
  %v2446 = vpack.c.b16 %v2442, %v2441
  %v2452 = vsel %vm613, %v2352, 0
  %2454 = vmatprep.subr.bf16.mxu0 0
  %2455 = vmatpush1.bf16.msra.mxu0 %v2443
  %2456 = vmatprep.subr.bf16.mxu0 0
  %2457 = vmatpush1.bf16.msra.mxu0 %v2444
  %2458 = vmatprep.subr.bf16.mxu0 0
  %2459 = vmatpush1.bf16.msra.mxu0 %v2445
  %2460 = vmatprep.subr.bf16.mxu0 0
  %2461 = vmatpush1.bf16.msra.mxu0 %v2446
  %2462 = vmatprep.subr.bf16.mxu0 0
  %2463 = vmatpush1.bf16.msra.mxu0 0
  %2464 = vmatprep.subr.bf16.mxu0 0
  %2465 = vmatpush1.bf16.msra.mxu0 0
  %2466 = vmatprep.subr.bf16.mxu0 0
  %2467 = vmatpush1.bf16.msra.mxu0 0
  %2468 = vmatprep.subr.bf16.mxu0 0
  %2469 = vmatpush1.bf16.msra.mxu0 0
  %2470 = vmatprep.subr.bf16.mxu0 0
  %2471 = vmatpush1.bf16.msra.mxu0 0
  %2472 = vmatprep.subr.bf16.mxu0 0
  %2473 = vmatpush1.bf16.msra.mxu0 0
  %2474 = vmatprep.subr.bf16.mxu0 0
  %2475 = vmatpush1.bf16.msra.mxu0 0
  %2476 = vmatprep.subr.bf16.mxu0 0
  %2477 = vmatpush1.bf16.msra.mxu0 0
  %2478 = vmatprep.subr.bf16.mxu0 0
  %2479 = vmatpush1.bf16.msra.mxu0 0
  %2480 = vmatprep.subr.bf16.mxu0 0
  %2481 = vmatpush1.bf16.msra.mxu0 0
  %2482 = vmatprep.subr.bf16.mxu0 0
  %2483 = vmatpush1.bf16.msra.mxu0 0
  %2484 = vmatprep.subr.bf16.mxu0 0
  %2485 = vmatpush1.bf16.msra.mxu0 0
  %2486 = vmatprep.mubr.bf16.mxu0 0
  %2487 = vmatmul.mubr.bf16.gmra.mrb[0].mxu0 %v2452
  %v2488 = vpop.f32.mrb[0].mxu0
  %v2489 = vadd.f32 %v2422, %v2488
  %v2490 = vpop.f32.mrb[0].mxu0
  %v2491 = vpop.f32.mrb[0].mxu0
  %v2492 = vpop.f32.mrb[0].mxu0
  %2493 = vdwg.mxu0
  %v2494 = vld [vmem:[%s45 + $0x40] sm:$0x1]
  %v2495 = vunpack.c.l.bf16 %v2494
  %v2496 = vlaneseq
  %v2497 = vshrl.u32 %v2496, 7
  %v2498 = vsub.s32 0, %v2497
  %v2499 = vrot.slane %v2495, %v2498
  %v2500 = vadd.f32 %v2489, %v2499
  %v2501 = vmax.f32 %v2500, 0.0
  %v2502 = vpack.c.bf16 %v2501, %v2501
  %v2504 = vsel %vm2300, %v2502, 0
  %2506 = vmatprep.subr.bf16.mxu0 0
  %2507 = vmatpush1.bf16.msra.mxu0 %v2504
  %2508 = vmatprep.subr.bf16.mxu0 0
  %2509 = vmatpush1.bf16.msra.mxu0 0
  %2510 = vmatprep.subr.bf16.mxu0 0
  %2511 = vmatpush1.bf16.msra.mxu0 0
  %2512 = vmatprep.subr.bf16.mxu0 0
  %2513 = vmatpush1.bf16.msra.mxu0 0
  %2514 = vmatprep.subr.bf16.mxu0 0
  %2515 = vmatpush1.bf16.msra.mxu0 0
  %2516 = vmatprep.subr.bf16.mxu0 0
  %2517 = vmatpush1.bf16.msra.mxu0 0
  %2518 = vmatprep.subr.bf16.mxu0 0
  %2519 = vmatpush1.bf16.msra.mxu0 0
  %2520 = vmatprep.subr.bf16.mxu0 0
  %2521 = vmatpush1.bf16.msra.mxu0 0
  %2522 = vmatprep.subr.bf16.mxu0 0
  %2523 = vmatpush1.bf16.msra.mxu0 0
  %2524 = vmatprep.subr.bf16.mxu0 0
  %2525 = vmatpush1.bf16.msra.mxu0 0
  %2526 = vmatprep.subr.bf16.mxu0 0
  %2527 = vmatpush1.bf16.msra.mxu0 0
  %2528 = vmatprep.subr.bf16.mxu0 0
  %2529 = vmatpush1.bf16.msra.mxu0 0
  %2530 = vmatprep.subr.bf16.mxu0 0
  %2531 = vmatpush1.bf16.msra.mxu0 0
  %2532 = vmatprep.subr.bf16.mxu0 0
  %2533 = vmatpush1.bf16.msra.mxu0 0
  %2534 = vmatprep.subr.bf16.mxu0 0
  %2535 = vmatpush1.bf16.msra.mxu0 0
  %2536 = vmatprep.subr.bf16.mxu0 0
  %2537 = vmatpush1.bf16.msra.mxu0 0
  %2538 = vmatprep.mubr.bf16.mxu0 0
  %2539 = vmatmul.mubr.bf16.gmra.mrb[0].mxu0 %v2298
  %v2540 = vpop.f32.mrb[0].mxu0
  %v2541 = vadd.f32 0.0, %v2540
  %v2542 = vpop.f32.mrb[0].mxu0
  %v2543 = vpop.f32.mrb[0].mxu0
  %v2544 = vpop.f32.mrb[0].mxu0
  %2545 = vdwg.mxu0
  %v2546 = vld [vmem:[%s47] sm:$0xf]
  %v2547 = vld [vmem:[%s47 + $0x4] sm:$0xf]
  %v2548 = vld [vmem:[%s47 + $0x8] sm:$0xf]
  %v2549 = vld [vmem:[%s47 + $0xc] sm:$0xf]
  %v2550 = vld [vmem:[%s47 + $0x10] sm:$0xf]
  %v2551 = vld [vmem:[%s47 + $0x14] sm:$0xf]
  %v2552 = vld [vmem:[%s47 + $0x18] sm:$0xf]
  %v2553 = vld [vmem:[%s47 + $0x1c] sm:$0xf]
  %v2554 = vld [vmem:[%s47 + $0x20] sm:$0xf]
  %v2555 = vld [vmem:[%s47 + $0x24] sm:$0xf]
  %v2556 = vld [vmem:[%s47 + $0x28] sm:$0xf]
  %v2557 = vld [vmem:[%s47 + $0x2c] sm:$0xf]
  %v2558 = vld [vmem:[%s47 + $0x30] sm:$0xf]
  %v2559 = vld [vmem:[%s47 + $0x34] sm:$0xf]
  %v2560 = vld [vmem:[%s47 + $0x38] sm:$0xf]
  %v2561 = vld [vmem:[%s47 + $0x3c] sm:$0xf]
  %v2562 = vpack.c.bf16 %v2541, %v2541
  %v2563 = vld [vmem:[%s47 + $0x40] sm:$0xf]
  %v2564 = vld [vmem:[%s47 + $0x44] sm:$0xf]
  %v2565 = vld [vmem:[%s47 + $0x48] sm:$0xf]
  %v2566 = vld [vmem:[%s47 + $0x4c] sm:$0xf]
  %v2567 = vld [vmem:[%s47 + $0x50] sm:$0xf]
  %v2568 = vld [vmem:[%s47 + $0x54] sm:$0xf]
  %v2569 = vld [vmem:[%s47 + $0x58] sm:$0xf]
  %v2570 = vld [vmem:[%s47 + $0x5c] sm:$0xf]
  %v2571 = vld [vmem:[%s47 + $0x60] sm:$0xf]
  %v2572 = vld [vmem:[%s47 + $0x64] sm:$0xf]
  %v2573 = vld [vmem:[%s47 + $0x68] sm:$0xf]
  %v2574 = vld [vmem:[%s47 + $0x6c] sm:$0xf]
  %v2575 = vld [vmem:[%s47 + $0x70] sm:$0xf]
  %v2576 = vld [vmem:[%s47 + $0x74] sm:$0xf]
  %v2577 = vld [vmem:[%s47 + $0x78] sm:$0xf]
  %v2578 = vld [vmem:[%s47 + $0x7c] sm:$0xf]
  %v2595 = vunpack.c.l.b16 %v2563
  %v2596 = vunpack.c.l.b16 %v2564
  %v2597 = vunpack.c.l.b16 %v2565
  %v2598 = vunpack.c.l.b16 %v2566
  %v2599 = vunpack.c.l.b16 %v2567
  %v2600 = vunpack.c.l.b16 %v2568
  %v2601 = vunpack.c.l.b16 %v2569
  %v2602 = vunpack.c.l.b16 %v2570
  %v2603 = vunpack.c.l.b16 %v2571
  %v2604 = vunpack.c.l.b16 %v2572
  %v2605 = vunpack.c.l.b16 %v2573
  %v2606 = vunpack.c.l.b16 %v2574
  %v2607 = vunpack.c.l.b16 %v2575
  %v2608 = vunpack.c.l.b16 %v2576
  %v2609 = vunpack.c.l.b16 %v2577
  %v2610 = vunpack.c.l.b16 %v2578
  %v2611 = vpack.c.b16 %v2596, %v2595
  %v2612 = vpack.c.b16 %v2598, %v2597
  %v2613 = vpack.c.b16 %v2600, %v2599
  %v2614 = vpack.c.b16 %v2602, %v2601
  %v2615 = vpack.c.b16 %v2604, %v2603
  %v2616 = vpack.c.b16 %v2606, %v2605
  %v2617 = vpack.c.b16 %v2608, %v2607
  %v2618 = vpack.c.b16 %v2610, %v2609
  %2627 = vmatprep.subr.bf16.mxu0 0
  %2628 = vmatpush1.bf16.msra.mxu0 %v2611
  %2629 = vmatprep.subr.bf16.mxu0 0
  %2630 = vmatpush1.bf16.msra.mxu0 %v2612
  %2631 = vmatprep.subr.bf16.mxu0 0
  %2632 = vmatpush1.bf16.msra.mxu0 %v2613
  %2633 = vmatprep.subr.bf16.mxu0 0
  %2634 = vmatpush1.bf16.msra.mxu0 %v2614
  %2635 = vmatprep.subr.bf16.mxu0 0
  %2636 = vmatpush1.bf16.msra.mxu0 %v2615
  %2637 = vmatprep.subr.bf16.mxu0 0
  %2638 = vmatpush1.bf16.msra.mxu0 %v2616
  %2639 = vmatprep.subr.bf16.mxu0 0
  %2640 = vmatpush1.bf16.msra.mxu0 %v2617
  %2641 = vmatprep.subr.bf16.mxu0 0
  %2642 = vmatpush1.bf16.msra.mxu0 %v2618
  %2643 = vmatprep.subr.bf16.mxu0 0
  %2644 = vmatpush1.bf16.msra.mxu0 0
  %2645 = vmatprep.subr.bf16.mxu0 0
  %2646 = vmatpush1.bf16.msra.mxu0 0
  %2647 = vmatprep.subr.bf16.mxu0 0
  %2648 = vmatpush1.bf16.msra.mxu0 0
  %2649 = vmatprep.subr.bf16.mxu0 0
  %2650 = vmatpush1.bf16.msra.mxu0 0
  %2651 = vmatprep.subr.bf16.mxu0 0
  %2652 = vmatpush1.bf16.msra.mxu0 0
  %2653 = vmatprep.subr.bf16.mxu0 0
  %2654 = vmatpush1.bf16.msra.mxu0 0
  %2655 = vmatprep.subr.bf16.mxu0 0
  %2656 = vmatpush1.bf16.msra.mxu0 0
  %2657 = vmatprep.subr.bf16.mxu0 0
  %2658 = vmatpush1.bf16.msra.mxu0 0
  %2659 = vmatprep.mubr.bf16.mxu0 0
  %2660 = vmatmul.mubr.bf16.gmra.mrb[0].mxu0 %v2502
  %v2661 = vpop.f32.mrb[0].mxu0
  %v2662 = vadd.f32 0.0, %v2661
  %v2663 = vpop.f32.mrb[0].mxu0
  %v2664 = vpop.f32.mrb[0].mxu0
  %v2665 = vpop.f32.mrb[0].mxu0
  %2666 = vdwg.mxu0
  %v2683 = vunpack.c.l.b16 %v2546
  %v2684 = vunpack.c.l.b16 %v2547
  %v2685 = vunpack.c.l.b16 %v2548
  %v2686 = vunpack.c.l.b16 %v2549
  %v2687 = vunpack.c.l.b16 %v2550
  %v2688 = vunpack.c.l.b16 %v2551
  %v2689 = vunpack.c.l.b16 %v2552
  %v2690 = vunpack.c.l.b16 %v2553
  %v2691 = vunpack.c.l.b16 %v2554
  %v2692 = vunpack.c.l.b16 %v2555
  %v2693 = vunpack.c.l.b16 %v2556
  %v2694 = vunpack.c.l.b16 %v2557
  %v2695 = vunpack.c.l.b16 %v2558
  %v2696 = vunpack.c.l.b16 %v2559
  %v2697 = vunpack.c.l.b16 %v2560
  %v2698 = vunpack.c.l.b16 %v2561
  %v2699 = vpack.c.b16 %v2684, %v2683
  %v2700 = vpack.c.b16 %v2686, %v2685
  %v2701 = vpack.c.b16 %v2688, %v2687
  %v2702 = vpack.c.b16 %v2690, %v2689
  %v2703 = vpack.c.b16 %v2692, %v2691
  %v2704 = vpack.c.b16 %v2694, %v2693
  %v2705 = vpack.c.b16 %v2696, %v2695
  %v2706 = vpack.c.b16 %v2698, %v2697
  %2715 = vmatprep.subr.bf16.mxu0 0
  %2716 = vmatpush1.bf16.msra.mxu0 %v2699
  %2717 = vmatprep.subr.bf16.mxu0 0
  %2718 = vmatpush1.bf16.msra.mxu0 %v2700
  %2719 = vmatprep.subr.bf16.mxu0 0
  %2720 = vmatpush1.bf16.msra.mxu0 %v2701
  %2721 = vmatprep.subr.bf16.mxu0 0
  %2722 = vmatpush1.bf16.msra.mxu0 %v2702
  %2723 = vmatprep.subr.bf16.mxu0 0
  %2724 = vmatpush1.bf16.msra.mxu0 %v2703
  %2725 = vmatprep.subr.bf16.mxu0 0
  %2726 = vmatpush1.bf16.msra.mxu0 %v2704
  %2727 = vmatprep.subr.bf16.mxu0 0
  %2728 = vmatpush1.bf16.msra.mxu0 %v2705
  %2729 = vmatprep.subr.bf16.mxu0 0
  %2730 = vmatpush1.bf16.msra.mxu0 %v2706
  %2731 = vmatprep.subr.bf16.mxu0 0
  %2732 = vmatpush1.bf16.msra.mxu0 0
  %2733 = vmatprep.subr.bf16.mxu0 0
  %2734 = vmatpush1.bf16.msra.mxu0 0
  %2735 = vmatprep.subr.bf16.mxu0 0
  %2736 = vmatpush1.bf16.msra.mxu0 0
  %2737 = vmatprep.subr.bf16.mxu0 0
  %2738 = vmatpush1.bf16.msra.mxu0 0
  %2739 = vmatprep.subr.bf16.mxu0 0
  %2740 = vmatpush1.bf16.msra.mxu0 0
  %2741 = vmatprep.subr.bf16.mxu0 0
  %2742 = vmatpush1.bf16.msra.mxu0 0
  %2743 = vmatprep.subr.bf16.mxu0 0
  %2744 = vmatpush1.bf16.msra.mxu0 0
  %2745 = vmatprep.subr.bf16.mxu0 0
  %2746 = vmatpush1.bf16.msra.mxu0 0
  %2747 = vmatprep.mubr.bf16.mxu0 0
  %2748 = vmatmul.mubr.bf16.gmra.mrb[0].mxu0 %v2562
  %v2749 = vpop.f32.mrb[0].mxu0
  %v2750 = vadd.f32 %v2662, %v2749
  %v2751 = vpop.f32.mrb[0].mxu0
  %v2752 = vpop.f32.mrb[0].mxu0
  %v2753 = vpop.f32.mrb[0].mxu0
  %2754 = vdwg.mxu0
  %v2755 = vld [vmem:[%s47 + $0x80] sm:$0x1]
  %v2756 = vunpack.c.l.bf16 %v2755
  %v2757 = vlaneseq
  %v2758 = vshrl.u32 %v2757, 7
  %v2759 = vsub.s32 0, %v2758
  %v2760 = vrot.slane %v2756, %v2759
  %v2761 = vadd.f32 %v2750, %v2760
  %v2762 = vmax.f32 %v2761, 0.0
  %v2763 = vpack.c.bf16 %v2762, %v2762
  %v2765 = vsel %vm2300, %v2763, 0
  %2767 = vmatprep.subr.bf16.mxu0 0
  %2768 = vmatpush1.bf16.msra.mxu0 %v2765
  %2769 = vmatprep.subr.bf16.mxu0 0
  %2770 = vmatpush1.bf16.msra.mxu0 0
  %2771 = vmatprep.subr.bf16.mxu0 0
  %2772 = vmatpush1.bf16.msra.mxu0 0
  %2773 = vmatprep.subr.bf16.mxu0 0
  %2774 = vmatpush1.bf16.msra.mxu0 0
  %2775 = vmatprep.subr.bf16.mxu0 0
  %2776 = vmatpush1.bf16.msra.mxu0 0
  %2777 = vmatprep.subr.bf16.mxu0 0
  %2778 = vmatpush1.bf16.msra.mxu0 0
  %2779 = vmatprep.subr.bf16.mxu0 0
  %2780 = vmatpush1.bf16.msra.mxu0 0
  %2781 = vmatprep.subr.bf16.mxu0 0
  %2782 = vmatpush1.bf16.msra.mxu0 0
  %2783 = vmatprep.subr.bf16.mxu0 0
  %2784 = vmatpush1.bf16.msra.mxu0 0
  %2785 = vmatprep.subr.bf16.mxu0 0
  %2786 = vmatpush1.bf16.msra.mxu0 0
  %2787 = vmatprep.subr.bf16.mxu0 0
  %2788 = vmatpush1.bf16.msra.mxu0 0
  %2789 = vmatprep.subr.bf16.mxu0 0
  %2790 = vmatpush1.bf16.msra.mxu0 0
  %2791 = vmatprep.subr.bf16.mxu0 0
  %2792 = vmatpush1.bf16.msra.mxu0 0
  %2793 = vmatprep.subr.bf16.mxu0 0
  %2794 = vmatpush1.bf16.msra.mxu0 0
  %2795 = vmatprep.subr.bf16.mxu0 0
  %2796 = vmatpush1.bf16.msra.mxu0 0
  %2797 = vmatprep.subr.bf16.mxu0 0
  %2798 = vmatpush1.bf16.msra.mxu0 0
  %2799 = vmatprep.mubr.bf16.mxu0 0
  %2800 = vmatmul.mubr.bf16.gmra.mrb[0].mxu0 %v2298
  %v2801 = vpop.f32.mrb[0].mxu0
  %v2802 = vadd.f32 0.0, %v2801
  %v2803 = vpop.f32.mrb[0].mxu0
  %v2804 = vpop.f32.mrb[0].mxu0
  %v2805 = vpop.f32.mrb[0].mxu0
  %2806 = vdwg.mxu0
  %v2807 = vld [vmem:[%s49] sm:$0xf]
  %v2808 = vld [vmem:[%s49 + $0x4] sm:$0xf]
  %v2809 = vld [vmem:[%s49 + $0x8] sm:$0xf]
  %v2810 = vld [vmem:[%s49 + $0xc] sm:$0xf]
  %v2811 = vld [vmem:[%s49 + $0x10] sm:$0xf]
  %v2812 = vld [vmem:[%s49 + $0x14] sm:$0xf]
  %v2813 = vld [vmem:[%s49 + $0x18] sm:$0xf]
  %v2814 = vld [vmem:[%s49 + $0x1c] sm:$0xf]
  %v2815 = vld [vmem:[%s49 + $0x20] sm:$0xf]
  %v2816 = vld [vmem:[%s49 + $0x24] sm:$0xf]
  %v2817 = vld [vmem:[%s49 + $0x28] sm:$0xf]
  %v2818 = vld [vmem:[%s49 + $0x2c] sm:$0xf]
  %v2819 = vld [vmem:[%s49 + $0x30] sm:$0xf]
  %v2820 = vld [vmem:[%s49 + $0x34] sm:$0xf]
  %v2821 = vld [vmem:[%s49 + $0x38] sm:$0xf]
  %v2822 = vld [vmem:[%s49 + $0x3c] sm:$0xf]
  %v2823 = vpack.c.bf16 %v2802, %v2802
  %v2824 = vld [vmem:[%s49 + $0x40] sm:$0xf]
  %v2825 = vld [vmem:[%s49 + $0x44] sm:$0xf]
  %v2826 = vld [vmem:[%s49 + $0x48] sm:$0xf]
  %v2827 = vld [vmem:[%s49 + $0x4c] sm:$0xf]
  %v2828 = vld [vmem:[%s49 + $0x50] sm:$0xf]
  %v2829 = vld [vmem:[%s49 + $0x54] sm:$0xf]
  %v2830 = vld [vmem:[%s49 + $0x58] sm:$0xf]
  %v2831 = vld [vmem:[%s49 + $0x5c] sm:$0xf]
  %v2832 = vld [vmem:[%s49 + $0x60] sm:$0xf]
  %v2833 = vld [vmem:[%s49 + $0x64] sm:$0xf]
  %v2834 = vld [vmem:[%s49 + $0x68] sm:$0xf]
  %v2835 = vld [vmem:[%s49 + $0x6c] sm:$0xf]
  %v2836 = vld [vmem:[%s49 + $0x70] sm:$0xf]
  %v2837 = vld [vmem:[%s49 + $0x74] sm:$0xf]
  %v2838 = vld [vmem:[%s49 + $0x78] sm:$0xf]
  %v2839 = vld [vmem:[%s49 + $0x7c] sm:$0xf]
  %v2856 = vunpack.c.l.b16 %v2824
  %v2857 = vunpack.c.l.b16 %v2825
  %v2858 = vunpack.c.l.b16 %v2826
  %v2859 = vunpack.c.l.b16 %v2827
  %v2860 = vunpack.c.l.b16 %v2828
  %v2861 = vunpack.c.l.b16 %v2829
  %v2862 = vunpack.c.l.b16 %v2830
  %v2863 = vunpack.c.l.b16 %v2831
  %v2864 = vunpack.c.l.b16 %v2832
  %v2865 = vunpack.c.l.b16 %v2833
  %v2866 = vunpack.c.l.b16 %v2834
  %v2867 = vunpack.c.l.b16 %v2835
  %v2868 = vunpack.c.l.b16 %v2836
  %v2869 = vunpack.c.l.b16 %v2837
  %v2870 = vunpack.c.l.b16 %v2838
  %v2871 = vunpack.c.l.b16 %v2839
  %v2872 = vpack.c.b16 %v2857, %v2856
  %v2873 = vpack.c.b16 %v2859, %v2858
  %v2874 = vpack.c.b16 %v2861, %v2860
  %v2875 = vpack.c.b16 %v2863, %v2862
  %v2876 = vpack.c.b16 %v2865, %v2864
  %v2877 = vpack.c.b16 %v2867, %v2866
  %v2878 = vpack.c.b16 %v2869, %v2868
  %v2879 = vpack.c.b16 %v2871, %v2870
  %2888 = vmatprep.subr.bf16.mxu0 0
  %2889 = vmatpush1.bf16.msra.mxu0 %v2872
  %2890 = vmatprep.subr.bf16.mxu0 0
  %2891 = vmatpush1.bf16.msra.mxu0 %v2873
  %2892 = vmatprep.subr.bf16.mxu0 0
  %2893 = vmatpush1.bf16.msra.mxu0 %v2874
  %2894 = vmatprep.subr.bf16.mxu0 0
  %2895 = vmatpush1.bf16.msra.mxu0 %v2875
  %2896 = vmatprep.subr.bf16.mxu0 0
  %2897 = vmatpush1.bf16.msra.mxu0 %v2876
  %2898 = vmatprep.subr.bf16.mxu0 0
  %2899 = vmatpush1.bf16.msra.mxu0 %v2877
  %2900 = vmatprep.subr.bf16.mxu0 0
  %2901 = vmatpush1.bf16.msra.mxu0 %v2878
  %2902 = vmatprep.subr.bf16.mxu0 0
  %2903 = vmatpush1.bf16.msra.mxu0 %v2879
  %2904 = vmatprep.subr.bf16.mxu0 0
  %2905 = vmatpush1.bf16.msra.mxu0 0
  %2906 = vmatprep.subr.bf16.mxu0 0
  %2907 = vmatpush1.bf16.msra.mxu0 0
  %2908 = vmatprep.subr.bf16.mxu0 0
  %2909 = vmatpush1.bf16.msra.mxu0 0
  %2910 = vmatprep.subr.bf16.mxu0 0
  %2911 = vmatpush1.bf16.msra.mxu0 0
  %2912 = vmatprep.subr.bf16.mxu0 0
  %2913 = vmatpush1.bf16.msra.mxu0 0
  %2914 = vmatprep.subr.bf16.mxu0 0
  %2915 = vmatpush1.bf16.msra.mxu0 0
  %2916 = vmatprep.subr.bf16.mxu0 0
  %2917 = vmatpush1.bf16.msra.mxu0 0
  %2918 = vmatprep.subr.bf16.mxu0 0
  %2919 = vmatpush1.bf16.msra.mxu0 0
  %2920 = vmatprep.mubr.bf16.mxu0 0
  %2921 = vmatmul.mubr.bf16.gmra.mrb[0].mxu0 %v2763
  %v2922 = vpop.f32.mrb[0].mxu0
  %v2923 = vadd.f32 0.0, %v2922
  %v2924 = vpop.f32.mrb[0].mxu0
  %v2925 = vpop.f32.mrb[0].mxu0
  %v2926 = vpop.f32.mrb[0].mxu0
  %2927 = vdwg.mxu0
  %v2944 = vunpack.c.l.b16 %v2807
  %v2945 = vunpack.c.l.b16 %v2808
  %v2946 = vunpack.c.l.b16 %v2809
  %v2947 = vunpack.c.l.b16 %v2810
  %v2948 = vunpack.c.l.b16 %v2811
  %v2949 = vunpack.c.l.b16 %v2812
  %v2950 = vunpack.c.l.b16 %v2813
  %v2951 = vunpack.c.l.b16 %v2814
  %v2952 = vunpack.c.l.b16 %v2815
  %v2953 = vunpack.c.l.b16 %v2816
  %v2954 = vunpack.c.l.b16 %v2817
  %v2955 = vunpack.c.l.b16 %v2818
  %v2956 = vunpack.c.l.b16 %v2819
  %v2957 = vunpack.c.l.b16 %v2820
  %v2958 = vunpack.c.l.b16 %v2821
  %v2959 = vunpack.c.l.b16 %v2822
  %v2960 = vpack.c.b16 %v2945, %v2944
  %v2961 = vpack.c.b16 %v2947, %v2946
  %v2962 = vpack.c.b16 %v2949, %v2948
  %v2963 = vpack.c.b16 %v2951, %v2950
  %v2964 = vpack.c.b16 %v2953, %v2952
  %v2965 = vpack.c.b16 %v2955, %v2954
  %v2966 = vpack.c.b16 %v2957, %v2956
  %v2967 = vpack.c.b16 %v2959, %v2958
  %2976 = vmatprep.subr.bf16.mxu0 0
  %2977 = vmatpush1.bf16.msra.mxu0 %v2960
  %2978 = vmatprep.subr.bf16.mxu0 0
  %2979 = vmatpush1.bf16.msra.mxu0 %v2961
  %2980 = vmatprep.subr.bf16.mxu0 0
  %2981 = vmatpush1.bf16.msra.mxu0 %v2962
  %2982 = vmatprep.subr.bf16.mxu0 0
  %2983 = vmatpush1.bf16.msra.mxu0 %v2963
  %2984 = vmatprep.subr.bf16.mxu0 0
  %2985 = vmatpush1.bf16.msra.mxu0 %v2964
  %2986 = vmatprep.subr.bf16.mxu0 0
  %2987 = vmatpush1.bf16.msra.mxu0 %v2965
  %2988 = vmatprep.subr.bf16.mxu0 0
  %2989 = vmatpush1.bf16.msra.mxu0 %v2966
  %2990 = vmatprep.subr.bf16.mxu0 0
  %2991 = vmatpush1.bf16.msra.mxu0 %v2967
  %2992 = vmatprep.subr.bf16.mxu0 0
  %2993 = vmatpush1.bf16.msra.mxu0 0
  %2994 = vmatprep.subr.bf16.mxu0 0
  %2995 = vmatpush1.bf16.msra.mxu0 0
  %2996 = vmatprep.subr.bf16.mxu0 0
  %2997 = vmatpush1.bf16.msra.mxu0 0
  %2998 = vmatprep.subr.bf16.mxu0 0
  %2999 = vmatpush1.bf16.msra.mxu0 0
  %3000 = vmatprep.subr.bf16.mxu0 0
  %3001 = vmatpush1.bf16.msra.mxu0 0
  %3002 = vmatprep.subr.bf16.mxu0 0
  %3003 = vmatpush1.bf16.msra.mxu0 0
  %3004 = vmatprep.subr.bf16.mxu0 0
  %3005 = vmatpush1.bf16.msra.mxu0 0
  %3006 = vmatprep.subr.bf16.mxu0 0
  %3007 = vmatpush1.bf16.msra.mxu0 0
  %3008 = vmatprep.mubr.bf16.mxu0 0
  %3009 = vmatmul.mubr.bf16.gmra.mrb[0].mxu0 %v2823
  %v3010 = vpop.f32.mrb[0].mxu0
  %v3011 = vadd.f32 %v2923, %v3010
  %v3012 = vpop.f32.mrb[0].mxu0
  %v3013 = vpop.f32.mrb[0].mxu0
  %v3014 = vpop.f32.mrb[0].mxu0
  %3015 = vdwg.mxu0
  %v3016 = vld [vmem:[%s49 + $0x80] sm:$0x1]
  %v3017 = vunpack.c.l.bf16 %v3016
  %v3018 = vlaneseq
  %v3019 = vshrl.u32 %v3018, 7
  %v3020 = vsub.s32 0, %v3019
  %v3021 = vrot.slane %v3017, %v3020
  %v3022 = vadd.f32 %v3011, %v3021
  %v3023 = vmax.f32 %v3022, 0.0
  %v3024 = vpack.c.bf16 %v3023, %v3023
  %v3026 = vsel %vm2300, %v3024, 0
  %3028 = vmatprep.subr.bf16.mxu0 0
  %3029 = vmatpush1.bf16.msra.mxu0 %v3026
  %3030 = vmatprep.subr.bf16.mxu0 0
  %3031 = vmatpush1.bf16.msra.mxu0 0
  %3032 = vmatprep.subr.bf16.mxu0 0
  %3033 = vmatpush1.bf16.msra.mxu0 0
  %3034 = vmatprep.subr.bf16.mxu0 0
  %3035 = vmatpush1.bf16.msra.mxu0 0
  %3036 = vmatprep.subr.bf16.mxu0 0
  %3037 = vmatpush1.bf16.msra.mxu0 0
  %3038 = vmatprep.subr.bf16.mxu0 0
  %3039 = vmatpush1.bf16.msra.mxu0 0
  %3040 = vmatprep.subr.bf16.mxu0 0
  %3041 = vmatpush1.bf16.msra.mxu0 0
  %3042 = vmatprep.subr.bf16.mxu0 0
  %3043 = vmatpush1.bf16.msra.mxu0 0
  %3044 = vmatprep.subr.bf16.mxu0 0
  %3045 = vmatpush1.bf16.msra.mxu0 0
  %3046 = vmatprep.subr.bf16.mxu0 0
  %3047 = vmatpush1.bf16.msra.mxu0 0
  %3048 = vmatprep.subr.bf16.mxu0 0
  %3049 = vmatpush1.bf16.msra.mxu0 0
  %3050 = vmatprep.subr.bf16.mxu0 0
  %3051 = vmatpush1.bf16.msra.mxu0 0
  %3052 = vmatprep.subr.bf16.mxu0 0
  %3053 = vmatpush1.bf16.msra.mxu0 0
  %3054 = vmatprep.subr.bf16.mxu0 0
  %3055 = vmatpush1.bf16.msra.mxu0 0
  %3056 = vmatprep.subr.bf16.mxu0 0
  %3057 = vmatpush1.bf16.msra.mxu0 0
  %3058 = vmatprep.subr.bf16.mxu0 0
  %3059 = vmatpush1.bf16.msra.mxu0 0
  %3060 = vmatprep.mubr.bf16.mxu0 0
  %3061 = vmatmul.mubr.bf16.gmra.mrb[0].mxu0 %v2298
  %v3062 = vpop.f32.mrb[0].mxu0
  %v3063 = vadd.f32 0.0, %v3062
  %v3064 = vpop.f32.mrb[0].mxu0
  %v3065 = vpop.f32.mrb[0].mxu0
  %v3066 = vpop.f32.mrb[0].mxu0
  %3067 = vdwg.mxu0
  %v3068 = vld [vmem:[%s51] sm:$0xf]
  %v3069 = vld [vmem:[%s51 + $0x4] sm:$0xf]
  %v3070 = vld [vmem:[%s51 + $0x8] sm:$0xf]
  %v3071 = vld [vmem:[%s51 + $0xc] sm:$0xf]
  %v3072 = vld [vmem:[%s51 + $0x10] sm:$0xf]
  %v3073 = vld [vmem:[%s51 + $0x14] sm:$0xf]
  %v3074 = vld [vmem:[%s51 + $0x18] sm:$0xf]
  %v3075 = vld [vmem:[%s51 + $0x1c] sm:$0xf]
  %v3076 = vld [vmem:[%s51 + $0x20] sm:$0xf]
  %v3077 = vld [vmem:[%s51 + $0x24] sm:$0xf]
  %v3078 = vld [vmem:[%s51 + $0x28] sm:$0xf]
  %v3079 = vld [vmem:[%s51 + $0x2c] sm:$0xf]
  %v3080 = vld [vmem:[%s51 + $0x30] sm:$0xf]
  %v3081 = vld [vmem:[%s51 + $0x34] sm:$0xf]
  %v3082 = vld [vmem:[%s51 + $0x38] sm:$0xf]
  %v3083 = vld [vmem:[%s51 + $0x3c] sm:$0xf]
  %v3084 = vpack.c.bf16 %v3063, %v3063
  %v3085 = vld [vmem:[%s51 + $0x40] sm:$0xf]
  %v3086 = vld [vmem:[%s51 + $0x44] sm:$0xf]
  %v3087 = vld [vmem:[%s51 + $0x48] sm:$0xf]
  %v3088 = vld [vmem:[%s51 + $0x4c] sm:$0xf]
  %v3089 = vld [vmem:[%s51 + $0x50] sm:$0xf]
  %v3090 = vld [vmem:[%s51 + $0x54] sm:$0xf]
  %v3091 = vld [vmem:[%s51 + $0x58] sm:$0xf]
  %v3092 = vld [vmem:[%s51 + $0x5c] sm:$0xf]
  %v3093 = vld [vmem:[%s51 + $0x60] sm:$0xf]
  %v3094 = vld [vmem:[%s51 + $0x64] sm:$0xf]
  %v3095 = vld [vmem:[%s51 + $0x68] sm:$0xf]
  %v3096 = vld [vmem:[%s51 + $0x6c] sm:$0xf]
  %v3097 = vld [vmem:[%s51 + $0x70] sm:$0xf]
  %v3098 = vld [vmem:[%s51 + $0x74] sm:$0xf]
  %v3099 = vld [vmem:[%s51 + $0x78] sm:$0xf]
  %v3100 = vld [vmem:[%s51 + $0x7c] sm:$0xf]
  %v3117 = vunpack.c.l.b16 %v3085
  %v3118 = vunpack.c.l.b16 %v3086
  %v3119 = vunpack.c.l.b16 %v3087
  %v3120 = vunpack.c.l.b16 %v3088
  %v3121 = vunpack.c.l.b16 %v3089
  %v3122 = vunpack.c.l.b16 %v3090
  %v3123 = vunpack.c.l.b16 %v3091
  %v3124 = vunpack.c.l.b16 %v3092
  %v3125 = vunpack.c.l.b16 %v3093
  %v3126 = vunpack.c.l.b16 %v3094
  %v3127 = vunpack.c.l.b16 %v3095
  %v3128 = vunpack.c.l.b16 %v3096
  %v3129 = vunpack.c.l.b16 %v3097
  %v3130 = vunpack.c.l.b16 %v3098
  %v3131 = vunpack.c.l.b16 %v3099
  %v3132 = vunpack.c.l.b16 %v3100
  %v3133 = vpack.c.b16 %v3118, %v3117
  %v3134 = vpack.c.b16 %v3120, %v3119
  %v3135 = vpack.c.b16 %v3122, %v3121
  %v3136 = vpack.c.b16 %v3124, %v3123
  %v3137 = vpack.c.b16 %v3126, %v3125
  %v3138 = vpack.c.b16 %v3128, %v3127
  %v3139 = vpack.c.b16 %v3130, %v3129
  %v3140 = vpack.c.b16 %v3132, %v3131
  %3149 = vmatprep.subr.bf16.mxu0 0
  %3150 = vmatpush1.bf16.msra.mxu0 %v3133
  %3151 = vmatprep.subr.bf16.mxu0 0
  %3152 = vmatpush1.bf16.msra.mxu0 %v3134
  %3153 = vmatprep.subr.bf16.mxu0 0
  %3154 = vmatpush1.bf16.msra.mxu0 %v3135
  %3155 = vmatprep.subr.bf16.mxu0 0
  %3156 = vmatpush1.bf16.msra.mxu0 %v3136
  %3157 = vmatprep.subr.bf16.mxu0 0
  %3158 = vmatpush1.bf16.msra.mxu0 %v3137
  %3159 = vmatprep.subr.bf16.mxu0 0
  %3160 = vmatpush1.bf16.msra.mxu0 %v3138
  %3161 = vmatprep.subr.bf16.mxu0 0
  %3162 = vmatpush1.bf16.msra.mxu0 %v3139
  %3163 = vmatprep.subr.bf16.mxu0 0
  %3164 = vmatpush1.bf16.msra.mxu0 %v3140
  %3165 = vmatprep.subr.bf16.mxu0 0
  %3166 = vmatpush1.bf16.msra.mxu0 0
  %3167 = vmatprep.subr.bf16.mxu0 0
  %3168 = vmatpush1.bf16.msra.mxu0 0
  %3169 = vmatprep.subr.bf16.mxu0 0
  %3170 = vmatpush1.bf16.msra.mxu0 0
  %3171 = vmatprep.subr.bf16.mxu0 0
  %3172 = vmatpush1.bf16.msra.mxu0 0
  %3173 = vmatprep.subr.bf16.mxu0 0
  %3174 = vmatpush1.bf16.msra.mxu0 0
  %3175 = vmatprep.subr.bf16.mxu0 0
  %3176 = vmatpush1.bf16.msra.mxu0 0
  %3177 = vmatprep.subr.bf16.mxu0 0
  %3178 = vmatpush1.bf16.msra.mxu0 0
  %3179 = vmatprep.subr.bf16.mxu0 0
  %3180 = vmatpush1.bf16.msra.mxu0 0
  %3181 = vmatprep.mubr.bf16.mxu0 0
  %3182 = vmatmul.mubr.bf16.gmra.mrb[0].mxu0 %v3024
  %v3183 = vpop.f32.mrb[0].mxu0
  %v3184 = vadd.f32 0.0, %v3183
  %v3185 = vpop.f32.mrb[0].mxu0
  %v3186 = vpop.f32.mrb[0].mxu0
  %v3187 = vpop.f32.mrb[0].mxu0
  %3188 = vdwg.mxu0
  %v3205 = vunpack.c.l.b16 %v3068
  %v3206 = vunpack.c.l.b16 %v3069
  %v3207 = vunpack.c.l.b16 %v3070
  %v3208 = vunpack.c.l.b16 %v3071
  %v3209 = vunpack.c.l.b16 %v3072
  %v3210 = vunpack.c.l.b16 %v3073
  %v3211 = vunpack.c.l.b16 %v3074
  %v3212 = vunpack.c.l.b16 %v3075
  %v3213 = vunpack.c.l.b16 %v3076
  %v3214 = vunpack.c.l.b16 %v3077
  %v3215 = vunpack.c.l.b16 %v3078
  %v3216 = vunpack.c.l.b16 %v3079
  %v3217 = vunpack.c.l.b16 %v3080
  %v3218 = vunpack.c.l.b16 %v3081
  %v3219 = vunpack.c.l.b16 %v3082
  %v3220 = vunpack.c.l.b16 %v3083
  %v3221 = vpack.c.b16 %v3206, %v3205
  %v3222 = vpack.c.b16 %v3208, %v3207
  %v3223 = vpack.c.b16 %v3210, %v3209
  %v3224 = vpack.c.b16 %v3212, %v3211
  %v3225 = vpack.c.b16 %v3214, %v3213
  %v3226 = vpack.c.b16 %v3216, %v3215
  %v3227 = vpack.c.b16 %v3218, %v3217
  %v3228 = vpack.c.b16 %v3220, %v3219
  %3237 = vmatprep.subr.bf16.mxu0 0
  %3238 = vmatpush1.bf16.msra.mxu0 %v3221
  %3239 = vmatprep.subr.bf16.mxu0 0
  %3240 = vmatpush1.bf16.msra.mxu0 %v3222
  %3241 = vmatprep.subr.bf16.mxu0 0
  %3242 = vmatpush1.bf16.msra.mxu0 %v3223
  %3243 = vmatprep.subr.bf16.mxu0 0
  %3244 = vmatpush1.bf16.msra.mxu0 %v3224
  %3245 = vmatprep.subr.bf16.mxu0 0
  %3246 = vmatpush1.bf16.msra.mxu0 %v3225
  %3247 = vmatprep.subr.bf16.mxu0 0
  %3248 = vmatpush1.bf16.msra.mxu0 %v3226
  %3249 = vmatprep.subr.bf16.mxu0 0
  %3250 = vmatpush1.bf16.msra.mxu0 %v3227
  %3251 = vmatprep.subr.bf16.mxu0 0
  %3252 = vmatpush1.bf16.msra.mxu0 %v3228
  %3253 = vmatprep.subr.bf16.mxu0 0
  %3254 = vmatpush1.bf16.msra.mxu0 0
  %3255 = vmatprep.subr.bf16.mxu0 0
  %3256 = vmatpush1.bf16.msra.mxu0 0
  %3257 = vmatprep.subr.bf16.mxu0 0
  %3258 = vmatpush1.bf16.msra.mxu0 0
  %3259 = vmatprep.subr.bf16.mxu0 0
  %3260 = vmatpush1.bf16.msra.mxu0 0
  %3261 = vmatprep.subr.bf16.mxu0 0
  %3262 = vmatpush1.bf16.msra.mxu0 0
  %3263 = vmatprep.subr.bf16.mxu0 0
  %3264 = vmatpush1.bf16.msra.mxu0 0
  %3265 = vmatprep.subr.bf16.mxu0 0
  %3266 = vmatpush1.bf16.msra.mxu0 0
  %3267 = vmatprep.subr.bf16.mxu0 0
  %3268 = vmatpush1.bf16.msra.mxu0 0
  %3269 = vmatprep.mubr.bf16.mxu0 0
  %3270 = vmatmul.mubr.bf16.gmra.mrb[0].mxu0 %v3084
  %v3271 = vpop.f32.mrb[0].mxu0
  %v3272 = vadd.f32 %v3184, %v3271
  %v3273 = vpop.f32.mrb[0].mxu0
  %v3274 = vpop.f32.mrb[0].mxu0
  %v3275 = vpop.f32.mrb[0].mxu0
  %3276 = vdwg.mxu0
  %v3277 = vld [vmem:[%s51 + $0x80] sm:$0x1]
  %v3278 = vunpack.c.l.bf16 %v3277
  %v3279 = vlaneseq
  %v3280 = vshrl.u32 %v3279, 7
  %v3281 = vsub.s32 0, %v3280
  %v3282 = vrot.slane %v3278, %v3281
  %v3283 = vadd.f32 %v3272, %v3282
  %v3284 = vmax.f32 %v3283, 0.0
  %v3285 = vld [vmem:[%s25] sm:$0xf]
  %v3286 = vld [vmem:[%s25 + $0x4] sm:$0xf]
  %v3287 = vpack.c.bf16 %v3284, %v3284
  %v3290 = vunpack.c.l.b16 %v3285
  %v3291 = vunpack.c.l.b16 %v3286
  %v3292 = vpack.c.b16 %v3291, %v3290
  %v3294 = vsel %vm195, %v3292, 0
  %v3297 = vsel %vm2300, %v3287, 0
  %3299 = vmatprep.subr.bf16.mxu0 0
  %3300 = vmatpush1.bf16.msra.mxu0 %v3297
  %3301 = vmatprep.subr.bf16.mxu0 0
  %3302 = vmatpush1.bf16.msra.mxu0 0
  %3303 = vmatprep.subr.bf16.mxu0 0
  %3304 = vmatpush1.bf16.msra.mxu0 0
  %3305 = vmatprep.subr.bf16.mxu0 0
  %3306 = vmatpush1.bf16.msra.mxu0 0
  %3307 = vmatprep.subr.bf16.mxu0 0
  %3308 = vmatpush1.bf16.msra.mxu0 0
  %3309 = vmatprep.subr.bf16.mxu0 0
  %3310 = vmatpush1.bf16.msra.mxu0 0
  %3311 = vmatprep.subr.bf16.mxu0 0
  %3312 = vmatpush1.bf16.msra.mxu0 0
  %3313 = vmatprep.subr.bf16.mxu0 0
  %3314 = vmatpush1.bf16.msra.mxu0 0
  %3315 = vmatprep.subr.bf16.mxu0 0
  %3316 = vmatpush1.bf16.msra.mxu0 0
  %3317 = vmatprep.subr.bf16.mxu0 0
  %3318 = vmatpush1.bf16.msra.mxu0 0
  %3319 = vmatprep.subr.bf16.mxu0 0
  %3320 = vmatpush1.bf16.msra.mxu0 0
  %3321 = vmatprep.subr.bf16.mxu0 0
  %3322 = vmatpush1.bf16.msra.mxu0 0
  %3323 = vmatprep.subr.bf16.mxu0 0
  %3324 = vmatpush1.bf16.msra.mxu0 0
  %3325 = vmatprep.subr.bf16.mxu0 0
  %3326 = vmatpush1.bf16.msra.mxu0 0
  %3327 = vmatprep.subr.bf16.mxu0 0
  %3328 = vmatpush1.bf16.msra.mxu0 0
  %3329 = vmatprep.subr.bf16.mxu0 0
  %3330 = vmatpush1.bf16.msra.mxu0 0
  %3331 = vmatprep.mubr.bf16.mxu0 0
  %3332 = vmatmul.mubr.bf16.gmra.mrb[0].mxu0 %v3294
  %v3333 = vpop.f32.mrb[0].mxu0
  %v3334 = vadd.f32 0.0, %v3333
  %v3335 = vpop.f32.mrb[0].mxu0
  %v3336 = vpop.f32.mrb[0].mxu0
  %v3337 = vadd.f32 0.0, %v3336
  %v3338 = vpop.f32.mrb[0].mxu0
  %3339 = vdwg.mxu0
  %v3340 = vadd.f32 %v3334, %v3337
  %v3341 = vrot.slane %v3340, 4
  %v3342 = vadd.f32 %v3340, %v3341
  %v3343 = vrot.slane %v3342, 2
  %v3344 = vadd.f32 %v3342, %v3343
  %v3345 = vrot.slane %v3344, 1
  %v3346 = vadd.f32 %v3344, %v3345
  %v3347 = vmul.f32 %v3334, %v3334
  %v3348 = vmul.f32 %v3337, %v3337
  %v3349 = vadd.f32 %v3347, %v3348
  %v3350 = vrot.slane %v3349, 4
  %v3351 = vadd.f32 %v3349, %v3350
  %v3352 = vrot.slane %v3351, 2
  %v3353 = vadd.f32 %v3351, %v3352
  %v3354 = vrot.slane %v3353, 1
  %v3355 = vadd.f32 %v3353, %v3354
  %v3356 = vmul.f32 %v3346, 0.0625
  %v3357 = vmul.f32 %v3355, 0.0625
  %v3358 = vmul.f32 %v3356, %v3356
  %v3359 = vsub.f32 %v3357, %v3358
  %v3360 = vmax.f32 %v3359, 0.0
  %v3361 = vsub.f32 %v3334, %v3356
  %v3362 = vsub.f32 %v3337, %v3356
  %v3363 = vadd.f32 %v3360, 1e-05
  %v3364 = vrsqrt.pop %v3363
  %v3365 = vmul.f32 %v3361, %v3364
  %v3366 = vmul.f32 %v3362, %v3364
  %v3367 = vpack.c.bf16 %v3366, %v3365
  %3368 = vmatprep.subr.bf16.mxu0 %v2251
  %3369 = vmatpush1.bf16.msra.mxu0 %v3367
  %3370 = vmatprep.subr.bf16.mxu0 0
  %3371 = vmatpush1.bf16.msra.mxu0 0
  %3372 = vmatprep.subr.bf16.mxu0 0
  %3373 = vmatpush1.bf16.msra.mxu0 0
  %3374 = vmatprep.subr.bf16.mxu0 0
  %3375 = vmatpush1.bf16.msra.mxu0 0
  %3376 = vmatprep.subr.bf16.mxu0 0
  %3377 = vmatpush1.bf16.msra.mxu0 0
  %3378 = vmatprep.subr.bf16.mxu0 0
  %3379 = vmatpush1.bf16.msra.mxu0 0
  %3380 = vmatprep.subr.bf16.mxu0 0
  %3381 = vmatpush1.bf16.msra.mxu0 0
  %3382 = vmatprep.subr.bf16.mxu0 0
  %3383 = vmatpush1.bf16.msra.mxu0 0
  %3384 = vmatprep.subr.bf16.mxu0 0
  %3385 = vmatpush1.bf16.msra.mxu0 0
  %3386 = vmatprep.subr.bf16.mxu0 0
  %3387 = vmatpush1.bf16.msra.mxu0 0
  %3388 = vmatprep.subr.bf16.mxu0 0
  %3389 = vmatpush1.bf16.msra.mxu0 0
  %3390 = vmatprep.subr.bf16.mxu0 0
  %3391 = vmatpush1.bf16.msra.mxu0 0
  %3392 = vmatprep.subr.bf16.mxu0 0
  %3393 = vmatpush1.bf16.msra.mxu0 0
  %3394 = vmatprep.subr.bf16.mxu0 0
  %3395 = vmatpush1.bf16.msra.mxu0 0
  %3396 = vmatprep.subr.bf16.mxu0 0
  %3397 = vmatpush1.bf16.msra.mxu0 0
  %3398 = vmatprep.subr.bf16.mxu0 0
  %3399 = vmatpush1.bf16.msra.mxu0 0
  %3400 = vmatprep.mubr.bf16.mxu0 0
  %3401 = vmatmul.mubr.bf16.gmra.mrb[0].mxu0 %v1808
  %v3402 = vpop.f32.mrb[0].mxu0
  %v3403 = vadd.f32 0.0, %v3402
  %v3404 = vpop.f32.mrb[0].mxu0
  %v3405 = vadd.f32 0.0, %v3404
  %v3406 = vpop.f32.mrb[0].mxu0
  %v3407 = vadd.f32 0.0, %v3406
  %v3408 = vpop.f32.mrb[0].mxu0
  %v3409 = vadd.f32 0.0, %v3408
  %3410 = vdwg.mxu0
  %v3411 = vld [vmem:[%s53] sm:$0xf]
  %v3412 = vld [vmem:[%s53 + $0x4] sm:$0xf]
  %v3413 = vld [vmem:[%s53 + $0x8] sm:$0xf]
  %v3414 = vld [vmem:[%s53 + $0xc] sm:$0xf]
  %v3415 = vld [vmem:[%s53 + $0x10] sm:$0xf]
  %v3416 = vld [vmem:[%s53 + $0x14] sm:$0xf]
  %v3417 = vld [vmem:[%s53 + $0x18] sm:$0xf]
  %v3418 = vld [vmem:[%s53 + $0x1c] sm:$0xf]
  %v3419 = vld [vmem:[%s53 + $0x20] sm:$0xf]
  %v3420 = vld [vmem:[%s53 + $0x24] sm:$0xf]
  %v3421 = vld [vmem:[%s53 + $0x28] sm:$0xf]
  %v3422 = vld [vmem:[%s53 + $0x2c] sm:$0xf]
  %v3423 = vld [vmem:[%s53 + $0x30] sm:$0xf]
  %v3424 = vld [vmem:[%s53 + $0x34] sm:$0xf]
  %v3425 = vld [vmem:[%s53 + $0x38] sm:$0xf]
  %v3426 = vld [vmem:[%s53 + $0x3c] sm:$0xf]
  %v3427 = vld [vmem:[%s53 + $0x40] sm:$0xf]
  %v3428 = vld [vmem:[%s53 + $0x44] sm:$0xf]
  %v3429 = vld [vmem:[%s53 + $0x48] sm:$0xf]
  %v3430 = vld [vmem:[%s53 + $0x4c] sm:$0xf]
  %v3431 = vld [vmem:[%s53 + $0x50] sm:$0xf]
  %v3432 = vld [vmem:[%s53 + $0x54] sm:$0xf]
  %v3433 = vld [vmem:[%s53 + $0x58] sm:$0xf]
  %v3434 = vld [vmem:[%s53 + $0x5c] sm:$0xf]
  %v3435 = vpack.c.bf16 %v3407, %v3403
  %v3436 = vpack.c.bf16 %v3409, %v3405
  %v3437 = vld [vmem:[%s53 + $0x60] sm:$0xf]
  %v3438 = vld [vmem:[%s53 + $0x64] sm:$0xf]
  %v3439 = vld [vmem:[%s53 + $0x68] sm:$0xf]
  %v3440 = vld [vmem:[%s53 + $0x6c] sm:$0xf]
  %v3441 = vld [vmem:[%s53 + $0x70] sm:$0xf]
  %v3442 = vld [vmem:[%s53 + $0x74] sm:$0xf]
  %v3443 = vld [vmem:[%s53 + $0x78] sm:$0xf]
  %v3444 = vld [vmem:[%s53 + $0x7c] sm:$0xf]
  %v3445 = vld [vmem:[%s53 + $0x80] sm:$0xf]
  %v3446 = vld [vmem:[%s53 + $0x84] sm:$0xf]
  %v3447 = vld [vmem:[%s53 + $0x88] sm:$0xf]
  %v3448 = vld [vmem:[%s53 + $0x8c] sm:$0xf]
  %v3449 = vld [vmem:[%s53 + $0x90] sm:$0xf]
  %v3450 = vld [vmem:[%s53 + $0x94] sm:$0xf]
  %v3451 = vld [vmem:[%s53 + $0x98] sm:$0xf]
  %v3452 = vld [vmem:[%s53 + $0x9c] sm:$0xf]
  %v3453 = vld [vmem:[%s53 + $0xa0] sm:$0xf]
  %v3454 = vld [vmem:[%s53 + $0xa4] sm:$0xf]
  %v3455 = vld [vmem:[%s53 + $0xa8] sm:$0xf]
  %v3456 = vld [vmem:[%s53 + $0xac] sm:$0xf]
  %v3457 = vld [vmem:[%s53 + $0xb0] sm:$0xf]
  %v3458 = vld [vmem:[%s53 + $0xb4] sm:$0xf]
  %v3459 = vld [vmem:[%s53 + $0xb8] sm:$0xf]
  %v3460 = vld [vmem:[%s53 + $0xbc] sm:$0xf]
  %v3485 = vunpack.c.l.b16 %v3437
  %v3486 = vunpack.c.l.b16 %v3438
  %v3487 = vunpack.c.l.b16 %v3439
  %v3488 = vunpack.c.l.b16 %v3440
  %v3489 = vunpack.c.l.b16 %v3441
  %v3490 = vunpack.c.l.b16 %v3442
  %v3491 = vunpack.c.l.b16 %v3443
  %v3492 = vunpack.c.l.b16 %v3444
  %v3493 = vunpack.c.l.b16 %v3445
  %v3494 = vunpack.c.l.b16 %v3446
  %v3495 = vunpack.c.l.b16 %v3447
  %v3496 = vunpack.c.l.b16 %v3448
  %v3497 = vunpack.c.l.b16 %v3449
  %v3498 = vunpack.c.l.b16 %v3450
  %v3499 = vunpack.c.l.b16 %v3451
  %v3500 = vunpack.c.l.b16 %v3452
  %v3501 = vunpack.c.l.b16 %v3453
  %v3502 = vunpack.c.l.b16 %v3454
  %v3503 = vunpack.c.l.b16 %v3455
  %v3504 = vunpack.c.l.b16 %v3456
  %v3505 = vunpack.c.l.b16 %v3457
  %v3506 = vunpack.c.l.b16 %v3458
  %v3507 = vunpack.c.l.b16 %v3459
  %v3508 = vunpack.c.l.b16 %v3460
  %v3509 = vpack.c.b16 %v3486, %v3485
  %v3510 = vpack.c.b16 %v3488, %v3487
  %v3511 = vpack.c.b16 %v3490, %v3489
  %v3512 = vpack.c.b16 %v3492, %v3491
  %v3513 = vpack.c.b16 %v3494, %v3493
  %v3514 = vpack.c.b16 %v3496, %v3495
  %v3515 = vpack.c.b16 %v3498, %v3497
  %v3516 = vpack.c.b16 %v3500, %v3499
  %v3517 = vpack.c.b16 %v3502, %v3501
  %v3518 = vpack.c.b16 %v3504, %v3503
  %v3519 = vpack.c.b16 %v3506, %v3505
  %v3520 = vpack.c.b16 %v3508, %v3507
  %v3534 = vsel %vm613, %v2251, 0
  %3536 = vmatprep.subr.bf16.mxu0 0
  %3537 = vmatpush1.bf16.msra.mxu0 %v3509
  %3538 = vmatprep.subr.bf16.mxu0 0
  %3539 = vmatpush1.bf16.msra.mxu0 %v3510
  %3540 = vmatprep.subr.bf16.mxu0 0
  %3541 = vmatpush1.bf16.msra.mxu0 %v3511
  %3542 = vmatprep.subr.bf16.mxu0 0
  %3543 = vmatpush1.bf16.msra.mxu0 %v3512
  %3544 = vmatprep.subr.bf16.mxu0 0
  %3545 = vmatpush1.bf16.msra.mxu0 %v3513
  %3546 = vmatprep.subr.bf16.mxu0 0
  %3547 = vmatpush1.bf16.msra.mxu0 %v3514
  %3548 = vmatprep.subr.bf16.mxu0 0
  %3549 = vmatpush1.bf16.msra.mxu0 %v3515
  %3550 = vmatprep.subr.bf16.mxu0 0
  %3551 = vmatpush1.bf16.msra.mxu0 %v3516
  %3552 = vmatprep.subr.bf16.mxu0 0
  %3553 = vmatpush1.bf16.msra.mxu0 %v3517
  %3554 = vmatprep.subr.bf16.mxu0 0
  %3555 = vmatpush1.bf16.msra.mxu0 %v3518
  %3556 = vmatprep.subr.bf16.mxu0 0
  %3557 = vmatpush1.bf16.msra.mxu0 %v3519
  %3558 = vmatprep.subr.bf16.mxu0 0
  %3559 = vmatpush1.bf16.msra.mxu0 %v3520
  %3560 = vmatprep.subr.bf16.mxu0 0
  %3561 = vmatpush1.bf16.msra.mxu0 0
  %3562 = vmatprep.subr.bf16.mxu0 0
  %3563 = vmatpush1.bf16.msra.mxu0 0
  %3564 = vmatprep.subr.bf16.mxu0 0
  %3565 = vmatpush1.bf16.msra.mxu0 0
  %3566 = vmatprep.subr.bf16.mxu0 0
  %3567 = vmatpush1.bf16.msra.mxu0 0
  %3568 = vmatprep.mubr.bf16.mxu0 %v3534
  %3569 = vmatmul.mubr.bf16.gmra.mrb[0].mxu0 %v3367
  %v3570 = vpop.f32.mrb[0].mxu0
  %v3571 = vadd.f32 0.0, %v3570
  %v3572 = vpop.f32.mrb[0].mxu0
  %v3573 = vpop.f32.mrb[0].mxu0
  %v3574 = vadd.f32 0.0, %v3573
  %v3575 = vpop.f32.mrb[0].mxu0
  %3576 = vdwg.mxu0
  %v3601 = vunpack.c.l.b16 %v3411
  %v3602 = vunpack.c.l.b16 %v3412
  %v3603 = vunpack.c.l.b16 %v3413
  %v3604 = vunpack.c.l.b16 %v3414
  %v3605 = vunpack.c.l.b16 %v3415
  %v3606 = vunpack.c.l.b16 %v3416
  %v3607 = vunpack.c.l.b16 %v3417
  %v3608 = vunpack.c.l.b16 %v3418
  %v3609 = vunpack.c.l.b16 %v3419
  %v3610 = vunpack.c.l.b16 %v3420
  %v3611 = vunpack.c.l.b16 %v3421
  %v3612 = vunpack.c.l.b16 %v3422
  %v3613 = vunpack.c.l.b16 %v3423
  %v3614 = vunpack.c.l.b16 %v3424
  %v3615 = vunpack.c.l.b16 %v3425
  %v3616 = vunpack.c.l.b16 %v3426
  %v3617 = vunpack.c.l.b16 %v3427
  %v3618 = vunpack.c.l.b16 %v3428
  %v3619 = vunpack.c.l.b16 %v3429
  %v3620 = vunpack.c.l.b16 %v3430
  %v3621 = vunpack.c.l.b16 %v3431
  %v3622 = vunpack.c.l.b16 %v3432
  %v3623 = vunpack.c.l.b16 %v3433
  %v3624 = vunpack.c.l.b16 %v3434
  %v3625 = vpack.c.b16 %v3602, %v3601
  %v3626 = vpack.c.b16 %v3604, %v3603
  %v3627 = vpack.c.b16 %v3606, %v3605
  %v3628 = vpack.c.b16 %v3608, %v3607
  %v3629 = vpack.c.b16 %v3610, %v3609
  %v3630 = vpack.c.b16 %v3612, %v3611
  %v3631 = vpack.c.b16 %v3614, %v3613
  %v3632 = vpack.c.b16 %v3616, %v3615
  %v3633 = vpack.c.b16 %v3618, %v3617
  %v3634 = vpack.c.b16 %v3620, %v3619
  %v3635 = vpack.c.b16 %v3622, %v3621
  %v3636 = vpack.c.b16 %v3624, %v3623
  %v3650 = vsel %vm613, %v3436, 0
  %3652 = vmatprep.subr.bf16.mxu0 0
  %3653 = vmatpush1.bf16.msra.mxu0 %v3625
  %3654 = vmatprep.subr.bf16.mxu0 0
  %3655 = vmatpush1.bf16.msra.mxu0 %v3626
  %3656 = vmatprep.subr.bf16.mxu0 0
  %3657 = vmatpush1.bf16.msra.mxu0 %v3627
  %3658 = vmatprep.subr.bf16.mxu0 0
  %3659 = vmatpush1.bf16.msra.mxu0 %v3628
  %3660 = vmatprep.subr.bf16.mxu0 0
  %3661 = vmatpush1.bf16.msra.mxu0 %v3629
  %3662 = vmatprep.subr.bf16.mxu0 0
  %3663 = vmatpush1.bf16.msra.mxu0 %v3630
  %3664 = vmatprep.subr.bf16.mxu0 0
  %3665 = vmatpush1.bf16.msra.mxu0 %v3631
  %3666 = vmatprep.subr.bf16.mxu0 0
  %3667 = vmatpush1.bf16.msra.mxu0 %v3632
  %3668 = vmatprep.subr.bf16.mxu0 0
  %3669 = vmatpush1.bf16.msra.mxu0 %v3633
  %3670 = vmatprep.subr.bf16.mxu0 0
  %3671 = vmatpush1.bf16.msra.mxu0 %v3634
  %3672 = vmatprep.subr.bf16.mxu0 0
  %3673 = vmatpush1.bf16.msra.mxu0 %v3635
  %3674 = vmatprep.subr.bf16.mxu0 0
  %3675 = vmatpush1.bf16.msra.mxu0 %v3636
  %3676 = vmatprep.subr.bf16.mxu0 0
  %3677 = vmatpush1.bf16.msra.mxu0 0
  %3678 = vmatprep.subr.bf16.mxu0 0
  %3679 = vmatpush1.bf16.msra.mxu0 0
  %3680 = vmatprep.subr.bf16.mxu0 0
  %3681 = vmatpush1.bf16.msra.mxu0 0
  %3682 = vmatprep.subr.bf16.mxu0 0
  %3683 = vmatpush1.bf16.msra.mxu0 0
  %3684 = vmatprep.mubr.bf16.mxu0 %v3650
  %3685 = vmatmul.mubr.bf16.gmra.mrb[0].mxu0 %v3435
  %v3686 = vpop.f32.mrb[0].mxu0
  %v3687 = vadd.f32 %v3571, %v3686
  %v3688 = vpop.f32.mrb[0].mxu0
  %v3689 = vpop.f32.mrb[0].mxu0
  %v3690 = vadd.f32 %v3574, %v3689
  %v3691 = vpop.f32.mrb[0].mxu0
  %3692 = vdwg.mxu0
  %v3693 = vld [vmem:[%s53 + $0xc0] sm:$0x1]
  %v3694 = vunpack.c.l.bf16 %v3693
  %v3695 = vlaneseq
  %v3696 = vshrl.u32 %v3695, 7
  %v3697 = vsub.s32 0, %v3696
  %v3698 = vrot.slane %v3694, %v3697
  %v3699 = vadd.f32 %v3687, %v3698
  %v3700 = vadd.f32 %v3690, %v3698
  %v3701 = vmax.f32 %v3699, 0.0
  %v3702 = vmax.f32 %v3700, 0.0
  %v3703 = vpack.c.bf16 %v3702, %v3701
  %3704 = vmatprep.subr.bf16.mxu0 0
  %3705 = vmatpush1.bf16.msra.mxu0 %v3703
  %3706 = vmatprep.subr.bf16.mxu0 0
  %3707 = vmatpush1.bf16.msra.mxu0 0
  %3708 = vmatprep.subr.bf16.mxu0 0
  %3709 = vmatpush1.bf16.msra.mxu0 0
  %3710 = vmatprep.subr.bf16.mxu0 0
  %3711 = vmatpush1.bf16.msra.mxu0 0
  %3712 = vmatprep.subr.bf16.mxu0 0
  %3713 = vmatpush1.bf16.msra.mxu0 0
  %3714 = vmatprep.subr.bf16.mxu0 0
  %3715 = vmatpush1.bf16.msra.mxu0 0
  %3716 = vmatprep.subr.bf16.mxu0 0
  %3717 = vmatpush1.bf16.msra.mxu0 0
  %3718 = vmatprep.subr.bf16.mxu0 0
  %3719 = vmatpush1.bf16.msra.mxu0 0
  %3720 = vmatprep.subr.bf16.mxu0 0
  %3721 = vmatpush1.bf16.msra.mxu0 0
  %3722 = vmatprep.subr.bf16.mxu0 0
  %3723 = vmatpush1.bf16.msra.mxu0 0
  %3724 = vmatprep.subr.bf16.mxu0 0
  %3725 = vmatpush1.bf16.msra.mxu0 0
  %3726 = vmatprep.subr.bf16.mxu0 0
  %3727 = vmatpush1.bf16.msra.mxu0 0
  %3728 = vmatprep.subr.bf16.mxu0 0
  %3729 = vmatpush1.bf16.msra.mxu0 0
  %3730 = vmatprep.subr.bf16.mxu0 0
  %3731 = vmatpush1.bf16.msra.mxu0 0
  %3732 = vmatprep.subr.bf16.mxu0 0
  %3733 = vmatpush1.bf16.msra.mxu0 0
  %3734 = vmatprep.subr.bf16.mxu0 0
  %3735 = vmatpush1.bf16.msra.mxu0 0
  %3736 = vmatprep.mubr.bf16.mxu0 0
  %3737 = vmatmul.mubr.bf16.gmra.mrb[0].mxu0 %v1808
  %v3738 = vpop.f32.mrb[0].mxu0
  %v3739 = vadd.f32 0.0, %v3738
  %v3740 = vpop.f32.mrb[0].mxu0
  %v3741 = vpop.f32.mrb[0].mxu0
  %v3742 = vadd.f32 0.0, %v3741
  %v3743 = vpop.f32.mrb[0].mxu0
  %3744 = vdwg.mxu0
  %v3745 = vld [vmem:[%s55] sm:$0xf]
  %v3746 = vld [vmem:[%s55 + $0x4] sm:$0xf]
  %v3747 = vld [vmem:[%s55 + $0x8] sm:$0xf]
  %v3748 = vld [vmem:[%s55 + $0xc] sm:$0xf]
  %v3749 = vld [vmem:[%s55 + $0x10] sm:$0xf]
  %v3750 = vld [vmem:[%s55 + $0x14] sm:$0xf]
  %v3751 = vld [vmem:[%s55 + $0x18] sm:$0xf]
  %v3752 = vld [vmem:[%s55 + $0x1c] sm:$0xf]
  %v3753 = vld [vmem:[%s55 + $0x20] sm:$0xf]
  %v3754 = vld [vmem:[%s55 + $0x24] sm:$0xf]
  %v3755 = vld [vmem:[%s55 + $0x28] sm:$0xf]
  %v3756 = vld [vmem:[%s55 + $0x2c] sm:$0xf]
  %v3757 = vld [vmem:[%s55 + $0x30] sm:$0xf]
  %v3758 = vld [vmem:[%s55 + $0x34] sm:$0xf]
  %v3759 = vld [vmem:[%s55 + $0x38] sm:$0xf]
  %v3760 = vld [vmem:[%s55 + $0x3c] sm:$0xf]
  %v3761 = vpack.c.bf16 %v3742, %v3739
  %v3762 = vld [vmem:[%s55 + $0x40] sm:$0xf]
  %v3763 = vld [vmem:[%s55 + $0x44] sm:$0xf]
  %v3764 = vld [vmem:[%s55 + $0x48] sm:$0xf]
  %v3765 = vld [vmem:[%s55 + $0x4c] sm:$0xf]
  %v3766 = vld [vmem:[%s55 + $0x50] sm:$0xf]
  %v3767 = vld [vmem:[%s55 + $0x54] sm:$0xf]
  %v3768 = vld [vmem:[%s55 + $0x58] sm:$0xf]
  %v3769 = vld [vmem:[%s55 + $0x5c] sm:$0xf]
  %v3770 = vld [vmem:[%s55 + $0x60] sm:$0xf]
  %v3771 = vld [vmem:[%s55 + $0x64] sm:$0xf]
  %v3772 = vld [vmem:[%s55 + $0x68] sm:$0xf]
  %v3773 = vld [vmem:[%s55 + $0x6c] sm:$0xf]
  %v3774 = vld [vmem:[%s55 + $0x70] sm:$0xf]
  %v3775 = vld [vmem:[%s55 + $0x74] sm:$0xf]
  %v3776 = vld [vmem:[%s55 + $0x78] sm:$0xf]
  %v3777 = vld [vmem:[%s55 + $0x7c] sm:$0xf]
  %v3794 = vunpack.c.l.b16 %v3762
  %v3795 = vunpack.c.l.b16 %v3763
  %v3796 = vunpack.c.l.b16 %v3764
  %v3797 = vunpack.c.l.b16 %v3765
  %v3798 = vunpack.c.l.b16 %v3766
  %v3799 = vunpack.c.l.b16 %v3767
  %v3800 = vunpack.c.l.b16 %v3768
  %v3801 = vunpack.c.l.b16 %v3769
  %v3802 = vunpack.c.l.b16 %v3770
  %v3803 = vunpack.c.l.b16 %v3771
  %v3804 = vunpack.c.l.b16 %v3772
  %v3805 = vunpack.c.l.b16 %v3773
  %v3806 = vunpack.c.l.b16 %v3774
  %v3807 = vunpack.c.l.b16 %v3775
  %v3808 = vunpack.c.l.b16 %v3776
  %v3809 = vunpack.c.l.b16 %v3777
  %v3810 = vpack.c.b16 %v3795, %v3794
  %v3811 = vpack.c.b16 %v3797, %v3796
  %v3812 = vpack.c.b16 %v3799, %v3798
  %v3813 = vpack.c.b16 %v3801, %v3800
  %v3814 = vpack.c.b16 %v3803, %v3802
  %v3815 = vpack.c.b16 %v3805, %v3804
  %v3816 = vpack.c.b16 %v3807, %v3806
  %v3817 = vpack.c.b16 %v3809, %v3808
  %3826 = vmatprep.subr.bf16.mxu0 0
  %3827 = vmatpush1.bf16.msra.mxu0 %v3810
  %3828 = vmatprep.subr.bf16.mxu0 0
  %3829 = vmatpush1.bf16.msra.mxu0 %v3811
  %3830 = vmatprep.subr.bf16.mxu0 0
  %3831 = vmatpush1.bf16.msra.mxu0 %v3812
  %3832 = vmatprep.subr.bf16.mxu0 0
  %3833 = vmatpush1.bf16.msra.mxu0 %v3813
  %3834 = vmatprep.subr.bf16.mxu0 0
  %3835 = vmatpush1.bf16.msra.mxu0 %v3814
  %3836 = vmatprep.subr.bf16.mxu0 0
  %3837 = vmatpush1.bf16.msra.mxu0 %v3815
  %3838 = vmatprep.subr.bf16.mxu0 0
  %3839 = vmatpush1.bf16.msra.mxu0 %v3816
  %3840 = vmatprep.subr.bf16.mxu0 0
  %3841 = vmatpush1.bf16.msra.mxu0 %v3817
  %3842 = vmatprep.subr.bf16.mxu0 0
  %3843 = vmatpush1.bf16.msra.mxu0 0
  %3844 = vmatprep.subr.bf16.mxu0 0
  %3845 = vmatpush1.bf16.msra.mxu0 0
  %3846 = vmatprep.subr.bf16.mxu0 0
  %3847 = vmatpush1.bf16.msra.mxu0 0
  %3848 = vmatprep.subr.bf16.mxu0 0
  %3849 = vmatpush1.bf16.msra.mxu0 0
  %3850 = vmatprep.subr.bf16.mxu0 0
  %3851 = vmatpush1.bf16.msra.mxu0 0
  %3852 = vmatprep.subr.bf16.mxu0 0
  %3853 = vmatpush1.bf16.msra.mxu0 0
  %3854 = vmatprep.subr.bf16.mxu0 0
  %3855 = vmatpush1.bf16.msra.mxu0 0
  %3856 = vmatprep.subr.bf16.mxu0 0
  %3857 = vmatpush1.bf16.msra.mxu0 0
  %3858 = vmatprep.mubr.bf16.mxu0 0
  %3859 = vmatmul.mubr.bf16.gmra.mrb[0].mxu0 %v3703
  %v3860 = vpop.f32.mrb[0].mxu0
  %v3861 = vadd.f32 0.0, %v3860
  %v3862 = vpop.f32.mrb[0].mxu0
  %v3863 = vpop.f32.mrb[0].mxu0
  %v3864 = vadd.f32 0.0, %v3863
  %v3865 = vpop.f32.mrb[0].mxu0
  %3866 = vdwg.mxu0
  %v3883 = vunpack.c.l.b16 %v3745
  %v3884 = vunpack.c.l.b16 %v3746
  %v3885 = vunpack.c.l.b16 %v3747
  %v3886 = vunpack.c.l.b16 %v3748
  %v3887 = vunpack.c.l.b16 %v3749
  %v3888 = vunpack.c.l.b16 %v3750
  %v3889 = vunpack.c.l.b16 %v3751
  %v3890 = vunpack.c.l.b16 %v3752
  %v3891 = vunpack.c.l.b16 %v3753
  %v3892 = vunpack.c.l.b16 %v3754
  %v3893 = vunpack.c.l.b16 %v3755
  %v3894 = vunpack.c.l.b16 %v3756
  %v3895 = vunpack.c.l.b16 %v3757
  %v3896 = vunpack.c.l.b16 %v3758
  %v3897 = vunpack.c.l.b16 %v3759
  %v3898 = vunpack.c.l.b16 %v3760
  %v3899 = vpack.c.b16 %v3884, %v3883
  %v3900 = vpack.c.b16 %v3886, %v3885
  %v3901 = vpack.c.b16 %v3888, %v3887
  %v3902 = vpack.c.b16 %v3890, %v3889
  %v3903 = vpack.c.b16 %v3892, %v3891
  %v3904 = vpack.c.b16 %v3894, %v3893
  %v3905 = vpack.c.b16 %v3896, %v3895
  %v3906 = vpack.c.b16 %v3898, %v3897
  %3915 = vmatprep.subr.bf16.mxu0 0
  %3916 = vmatpush1.bf16.msra.mxu0 %v3899
  %3917 = vmatprep.subr.bf16.mxu0 0
  %3918 = vmatpush1.bf16.msra.mxu0 %v3900
  %3919 = vmatprep.subr.bf16.mxu0 0
  %3920 = vmatpush1.bf16.msra.mxu0 %v3901
  %3921 = vmatprep.subr.bf16.mxu0 0
  %3922 = vmatpush1.bf16.msra.mxu0 %v3902
  %3923 = vmatprep.subr.bf16.mxu0 0
  %3924 = vmatpush1.bf16.msra.mxu0 %v3903
  %3925 = vmatprep.subr.bf16.mxu0 0
  %3926 = vmatpush1.bf16.msra.mxu0 %v3904
  %3927 = vmatprep.subr.bf16.mxu0 0
  %3928 = vmatpush1.bf16.msra.mxu0 %v3905
  %3929 = vmatprep.subr.bf16.mxu0 0
  %3930 = vmatpush1.bf16.msra.mxu0 %v3906
  %3931 = vmatprep.subr.bf16.mxu0 0
  %3932 = vmatpush1.bf16.msra.mxu0 0
  %3933 = vmatprep.subr.bf16.mxu0 0
  %3934 = vmatpush1.bf16.msra.mxu0 0
  %3935 = vmatprep.subr.bf16.mxu0 0
  %3936 = vmatpush1.bf16.msra.mxu0 0
  %3937 = vmatprep.subr.bf16.mxu0 0
  %3938 = vmatpush1.bf16.msra.mxu0 0
  %3939 = vmatprep.subr.bf16.mxu0 0
  %3940 = vmatpush1.bf16.msra.mxu0 0
  %3941 = vmatprep.subr.bf16.mxu0 0
  %3942 = vmatpush1.bf16.msra.mxu0 0
  %3943 = vmatprep.subr.bf16.mxu0 0
  %3944 = vmatpush1.bf16.msra.mxu0 0
  %3945 = vmatprep.subr.bf16.mxu0 0
  %3946 = vmatpush1.bf16.msra.mxu0 0
  %3947 = vmatprep.mubr.bf16.mxu0 0
  %3948 = vmatmul.mubr.bf16.gmra.mrb[0].mxu0 %v3761
  %v3949 = vpop.f32.mrb[0].mxu0
  %v3950 = vadd.f32 %v3861, %v3949
  %v3951 = vpop.f32.mrb[0].mxu0
  %v3952 = vpop.f32.mrb[0].mxu0
  %v3953 = vadd.f32 %v3864, %v3952
  %v3954 = vpop.f32.mrb[0].mxu0
  %3955 = vdwg.mxu0
  %v3956 = vld [vmem:[%s55 + $0x80] sm:$0x1]
  %v3957 = vunpack.c.l.bf16 %v3956
  %v3958 = vlaneseq
  %v3959 = vshrl.u32 %v3958, 7
  %v3960 = vsub.s32 0, %v3959
  %v3961 = vrot.slane %v3957, %v3960
  %v3962 = vadd.f32 %v3950, %v3961
  %v3963 = vadd.f32 %v3953, %v3961
  %v3964 = vmax.f32 %v3962, 0.0
  %v3965 = vmax.f32 %v3963, 0.0
  %v3966 = vld [vmem:[%s27] sm:$0xf]
  %v3967 = vld [vmem:[%s27 + $0x4] sm:$0xf]
  %v3968 = vld [vmem:[%s27 + $0x8] sm:$0xf]
  %v3969 = vld [vmem:[%s27 + $0xc] sm:$0xf]
  %v3970 = vpack.c.bf16 %v3965, %v3964
  %v3975 = vunpack.c.l.b16 %v3966
  %v3976 = vunpack.c.l.b16 %v3967
  %v3977 = vunpack.c.l.b16 %v3968
  %v3978 = vunpack.c.l.b16 %v3969
  %v3979 = vpack.c.b16 %v3976, %v3975
  %v3980 = vpack.c.b16 %v3978, %v3977
  %v3982 = vsel %vm1806, %v3979, 0
  %v3985 = vsel %vm1806, %v3980, 0
  %3987 = vmatprep.subr.bf16.mxu0 0
  %3988 = vmatpush1.bf16.msra.mxu0 %v3970
  %3989 = vmatprep.subr.bf16.mxu0 0
  %3990 = vmatpush1.bf16.msra.mxu0 0
  %3991 = vmatprep.subr.bf16.mxu0 0
  %3992 = vmatpush1.bf16.msra.mxu0 0
  %3993 = vmatprep.subr.bf16.mxu0 0
  %3994 = vmatpush1.bf16.msra.mxu0 0
  %3995 = vmatprep.subr.bf16.mxu0 0
  %3996 = vmatpush1.bf16.msra.mxu0 0
  %3997 = vmatprep.subr.bf16.mxu0 0
  %3998 = vmatpush1.bf16.msra.mxu0 0
  %3999 = vmatprep.subr.bf16.mxu0 0
  %4000 = vmatpush1.bf16.msra.mxu0 0
  %4001 = vmatprep.subr.bf16.mxu0 0
  %4002 = vmatpush1.bf16.msra.mxu0 0
  %4003 = vmatprep.subr.bf16.mxu0 0
  %4004 = vmatpush1.bf16.msra.mxu0 0
  %4005 = vmatprep.subr.bf16.mxu0 0
  %4006 = vmatpush1.bf16.msra.mxu0 0
  %4007 = vmatprep.subr.bf16.mxu0 0
  %4008 = vmatpush1.bf16.msra.mxu0 0
  %4009 = vmatprep.subr.bf16.mxu0 0
  %4010 = vmatpush1.bf16.msra.mxu0 0
  %4011 = vmatprep.subr.bf16.mxu0 0
  %4012 = vmatpush1.bf16.msra.mxu0 0
  %4013 = vmatprep.subr.bf16.mxu0 0
  %4014 = vmatpush1.bf16.msra.mxu0 0
  %4015 = vmatprep.subr.bf16.mxu0 0
  %4016 = vmatpush1.bf16.msra.mxu0 0
  %4017 = vmatprep.subr.bf16.mxu0 0
  %4018 = vmatpush1.bf16.msra.mxu0 0
  %4019 = vmatprep.mubr.bf16.mxu0 0
  %4020 = vmatmul.mubr.bf16.gmra.mrb[0].mxu0 %v3982
  %v4021 = vpop.f32.mrb[0].mxu0
  %v4022 = vadd.f32 0.0, %v4021
  %v4023 = vpop.f32.mrb[0].mxu0
  %v4024 = vpop.f32.mrb[0].mxu0
  %v4025 = vadd.f32 0.0, %v4024
  %v4026 = vpop.f32.mrb[0].mxu0
  %4027 = vmatprep.mubr.bf16.mxu0 0
  %4028 = vmatmul.mubr.bf16.gmra.mrb[0].mxu0 %v3985
  %v4029 = vpop.f32.mrb[0].mxu0
  %v4030 = vadd.f32 0.0, %v4029
  %v4031 = vpop.f32.mrb[0].mxu0
  %v4032 = vpop.f32.mrb[0].mxu0
  %v4033 = vadd.f32 0.0, %v4032
  %v4034 = vpop.f32.mrb[0].mxu0
  %4035 = vdwg.mxu0
  %v4036 = vadd.f32 %v4022, %v4025
  %v4037 = vadd.f32 %v4036, %v4030
  %v4038 = vadd.f32 %v4037, %v4033
  %v4039 = vrot.slane %v4038, 4
  %v4040 = vadd.f32 %v4038, %v4039
  %v4041 = vrot.slane %v4040, 2
  %v4042 = vadd.f32 %v4040, %v4041
  %v4043 = vrot.slane %v4042, 1
  %v4044 = vadd.f32 %v4042, %v4043
  %v4045 = vmul.f32 %v4022, %v4022
  %v4046 = vmul.f32 %v4025, %v4025
  %v4047 = vmul.f32 %v4030, %v4030
  %v4048 = vmul.f32 %v4033, %v4033
  %v4049 = vadd.f32 %v4045, %v4046
  %v4050 = vadd.f32 %v4049, %v4047
  %v4051 = vadd.f32 %v4050, %v4048
  %v4052 = vrot.slane %v4051, 4
  %v4053 = vadd.f32 %v4051, %v4052
  %v4054 = vrot.slane %v4053, 2
  %v4055 = vadd.f32 %v4053, %v4054
  %v4056 = vrot.slane %v4055, 1
  %v4057 = vadd.f32 %v4055, %v4056
  %v4058 = vmul.f32 %v4044, 0.03125
  %v4059 = vmul.f32 %v4057, 0.03125
  %v4060 = vmul.f32 %v4058, %v4058
  %v4061 = vsub.f32 %v4059, %v4060
  %v4062 = vmax.f32 %v4061, 0.0
  %v4063 = vsub.f32 %v4022, %v4058
  %v4064 = vsub.f32 %v4025, %v4058
  %v4065 = vsub.f32 %v4030, %v4058
  %v4066 = vsub.f32 %v4033, %v4058
  %v4067 = vadd.f32 %v4062, 1e-05
  %v4068 = vrsqrt.pop %v4067
  %v4069 = vmul.f32 %v4063, %v4068
  %v4070 = vmul.f32 %v4064, %v4068
  %v4071 = vmul.f32 %v4065, %v4068
  %v4072 = vmul.f32 %v4066, %v4068
  %v4073 = vpack.c.bf16 %v4070, %v4069
  %v4074 = vpack.c.bf16 %v4072, %v4071
  %4075 = vmatprep.subr.bf16.mxu0 %v1747
  %4076 = vmatpush1.bf16.msra.mxu0 %v4073
  %4077 = vmatprep.subr.bf16.mxu0 %v1748
  %4078 = vmatpush1.bf16.msra.mxu0 %v4074
  %4079 = vmatprep.subr.bf16.mxu0 0
  %4080 = vmatpush1.bf16.msra.mxu0 0
  %4081 = vmatprep.subr.bf16.mxu0 0
  %4082 = vmatpush1.bf16.msra.mxu0 0
  %4083 = vmatprep.subr.bf16.mxu0 0
  %4084 = vmatpush1.bf16.msra.mxu0 0
  %4085 = vmatprep.subr.bf16.mxu0 0
  %4086 = vmatpush1.bf16.msra.mxu0 0
  %4087 = vmatprep.subr.bf16.mxu0 0
  %4088 = vmatpush1.bf16.msra.mxu0 0
  %4089 = vmatprep.subr.bf16.mxu0 0
  %4090 = vmatpush1.bf16.msra.mxu0 0
  %4091 = vmatprep.subr.bf16.mxu0 0
  %4092 = vmatpush1.bf16.msra.mxu0 0
  %4093 = vmatprep.subr.bf16.mxu0 0
  %4094 = vmatpush1.bf16.msra.mxu0 0
  %4095 = vmatprep.subr.bf16.mxu0 0
  %4096 = vmatpush1.bf16.msra.mxu0 0
  %4097 = vmatprep.subr.bf16.mxu0 0
  %4098 = vmatpush1.bf16.msra.mxu0 0
  %4099 = vmatprep.subr.bf16.mxu0 0
  %4100 = vmatpush1.bf16.msra.mxu0 0
  %4101 = vmatprep.subr.bf16.mxu0 0
  %4102 = vmatpush1.bf16.msra.mxu0 0
  %4103 = vmatprep.subr.bf16.mxu0 0
  %4104 = vmatpush1.bf16.msra.mxu0 0
  %4105 = vmatprep.subr.bf16.mxu0 0
  %4106 = vmatpush1.bf16.msra.mxu0 0
  %4107 = vmatprep.mubr.bf16.mxu0 0
  %4108 = vmatmul.mubr.bf16.gmra.mrb[0].mxu0 %v1215
  %v4109 = vpop.f32.mrb[0].mxu0
  %v4110 = vadd.f32 0.0, %v4109
  %v4111 = vpop.f32.mrb[0].mxu0
  %v4112 = vadd.f32 0.0, %v4111
  %v4113 = vpop.f32.mrb[0].mxu0
  %v4114 = vadd.f32 0.0, %v4113
  %v4115 = vpop.f32.mrb[0].mxu0
  %v4116 = vadd.f32 0.0, %v4115
  %4117 = vmatprep.mubr.bf16.mxu0 0
  %4118 = vmatmul.mubr.bf16.gmra.mrb[0].mxu0 %v1218
  %v4119 = vpop.f32.mrb[0].mxu0
  %v4120 = vadd.f32 0.0, %v4119
  %v4121 = vpop.f32.mrb[0].mxu0
  %v4122 = vadd.f32 0.0, %v4121
  %v4123 = vpop.f32.mrb[0].mxu0
  %v4124 = vadd.f32 0.0, %v4123
  %v4125 = vpop.f32.mrb[0].mxu0
  %v4126 = vadd.f32 0.0, %v4125
  %4127 = vdwg.mxu0
  %v4128 = vld [vmem:[%s57] sm:$0xf]
  %v4129 = vld [vmem:[%s57 + $0x4] sm:$0xf]
  %v4130 = vld [vmem:[%s57 + $0x8] sm:$0xf]
  %v4131 = vld [vmem:[%s57 + $0xc] sm:$0xf]
  %v4132 = vld [vmem:[%s57 + $0x10] sm:$0xf]
  %v4133 = vld [vmem:[%s57 + $0x14] sm:$0xf]
  %v4134 = vld [vmem:[%s57 + $0x18] sm:$0xf]
  %v4135 = vld [vmem:[%s57 + $0x1c] sm:$0xf]
  %v4136 = vld [vmem:[%s57 + $0x20] sm:$0xf]
  %v4137 = vld [vmem:[%s57 + $0x24] sm:$0xf]
  %v4138 = vld [vmem:[%s57 + $0x28] sm:$0xf]
  %v4139 = vld [vmem:[%s57 + $0x2c] sm:$0xf]
  %v4140 = vld [vmem:[%s57 + $0x30] sm:$0xf]
  %v4141 = vld [vmem:[%s57 + $0x34] sm:$0xf]
  %v4142 = vld [vmem:[%s57 + $0x38] sm:$0xf]
  %v4143 = vld [vmem:[%s57 + $0x3c] sm:$0xf]
  %v4144 = vld [vmem:[%s57 + $0x40] sm:$0xf]
  %v4145 = vld [vmem:[%s57 + $0x44] sm:$0xf]
  %v4146 = vld [vmem:[%s57 + $0x48] sm:$0xf]
  %v4147 = vld [vmem:[%s57 + $0x4c] sm:$0xf]
  %v4148 = vld [vmem:[%s57 + $0x50] sm:$0xf]
  %v4149 = vld [vmem:[%s57 + $0x54] sm:$0xf]
  %v4150 = vld [vmem:[%s57 + $0x58] sm:$0xf]
  %v4151 = vld [vmem:[%s57 + $0x5c] sm:$0xf]
  %v4152 = vpack.c.bf16 %v4114, %v4110
  %v4153 = vpack.c.bf16 %v4116, %v4112
  %v4154 = vpack.c.bf16 %v4124, %v4120
  %v4155 = vpack.c.bf16 %v4126, %v4122
  %v4156 = vld [vmem:[%s57 + $0x60] sm:$0xf]
  %v4157 = vld [vmem:[%s57 + $0x64] sm:$0xf]
  %v4158 = vld [vmem:[%s57 + $0x68] sm:$0xf]
  %v4159 = vld [vmem:[%s57 + $0x6c] sm:$0xf]
  %v4160 = vld [vmem:[%s57 + $0x70] sm:$0xf]
  %v4161 = vld [vmem:[%s57 + $0x74] sm:$0xf]
  %v4162 = vld [vmem:[%s57 + $0x78] sm:$0xf]
  %v4163 = vld [vmem:[%s57 + $0x7c] sm:$0xf]
  %v4164 = vld [vmem:[%s57 + $0x80] sm:$0xf]
  %v4165 = vld [vmem:[%s57 + $0x84] sm:$0xf]
  %v4166 = vld [vmem:[%s57 + $0x88] sm:$0xf]
  %v4167 = vld [vmem:[%s57 + $0x8c] sm:$0xf]
  %v4168 = vld [vmem:[%s57 + $0x90] sm:$0xf]
  %v4169 = vld [vmem:[%s57 + $0x94] sm:$0xf]
  %v4170 = vld [vmem:[%s57 + $0x98] sm:$0xf]
  %v4171 = vld [vmem:[%s57 + $0x9c] sm:$0xf]
  %v4172 = vld [vmem:[%s57 + $0xa0] sm:$0xf]
  %v4173 = vld [vmem:[%s57 + $0xa4] sm:$0xf]
  %v4174 = vld [vmem:[%s57 + $0xa8] sm:$0xf]
  %v4175 = vld [vmem:[%s57 + $0xac] sm:$0xf]
  %v4176 = vld [vmem:[%s57 + $0xb0] sm:$0xf]
  %v4177 = vld [vmem:[%s57 + $0xb4] sm:$0xf]
  %v4178 = vld [vmem:[%s57 + $0xb8] sm:$0xf]
  %v4179 = vld [vmem:[%s57 + $0xbc] sm:$0xf]
  %v4204 = vunpack.c.l.b16 %v4156
  %v4205 = vunpack.c.l.b16 %v4157
  %v4206 = vunpack.c.l.b16 %v4158
  %v4207 = vunpack.c.l.b16 %v4159
  %v4208 = vunpack.c.l.b16 %v4160
  %v4209 = vunpack.c.l.b16 %v4161
  %v4210 = vunpack.c.l.b16 %v4162
  %v4211 = vunpack.c.l.b16 %v4163
  %v4212 = vunpack.c.l.b16 %v4164
  %v4213 = vunpack.c.l.b16 %v4165
  %v4214 = vunpack.c.l.b16 %v4166
  %v4215 = vunpack.c.l.b16 %v4167
  %v4216 = vunpack.c.l.b16 %v4168
  %v4217 = vunpack.c.l.b16 %v4169
  %v4218 = vunpack.c.l.b16 %v4170
  %v4219 = vunpack.c.l.b16 %v4171
  %v4220 = vunpack.c.l.b16 %v4172
  %v4221 = vunpack.c.l.b16 %v4173
  %v4222 = vunpack.c.l.b16 %v4174
  %v4223 = vunpack.c.l.b16 %v4175
  %v4224 = vunpack.c.l.b16 %v4176
  %v4225 = vunpack.c.l.b16 %v4177
  %v4226 = vunpack.c.l.b16 %v4178
  %v4227 = vunpack.c.l.b16 %v4179
  %v4228 = vpack.c.b16 %v4205, %v4204
  %v4229 = vpack.c.b16 %v4207, %v4206
  %v4230 = vpack.c.b16 %v4209, %v4208
  %v4231 = vpack.c.b16 %v4211, %v4210
  %v4232 = vpack.c.b16 %v4213, %v4212
  %v4233 = vpack.c.b16 %v4215, %v4214
  %v4234 = vpack.c.b16 %v4217, %v4216
  %v4235 = vpack.c.b16 %v4219, %v4218
  %v4236 = vpack.c.b16 %v4221, %v4220
  %v4237 = vpack.c.b16 %v4223, %v4222
  %v4238 = vpack.c.b16 %v4225, %v4224
  %v4239 = vpack.c.b16 %v4227, %v4226
  %v4253 = vsel %vm613, %v1747, 0
  %v4256 = vsel %vm613, %v1748, 0
  %4258 = vmatprep.subr.bf16.mxu0 0
  %4259 = vmatpush1.bf16.msra.mxu0 %v4228
  %4260 = vmatprep.subr.bf16.mxu0 0
  %4261 = vmatpush1.bf16.msra.mxu0 %v4229
  %4262 = vmatprep.subr.bf16.mxu0 0
  %4263 = vmatpush1.bf16.msra.mxu0 %v4230
  %4264 = vmatprep.subr.bf16.mxu0 0
  %4265 = vmatpush1.bf16.msra.mxu0 %v4231
  %4266 = vmatprep.subr.bf16.mxu0 0
  %4267 = vmatpush1.bf16.msra.mxu0 %v4232
  %4268 = vmatprep.subr.bf16.mxu0 0
  %4269 = vmatpush1.bf16.msra.mxu0 %v4233
  %4270 = vmatprep.subr.bf16.mxu0 0
  %4271 = vmatpush1.bf16.msra.mxu0 %v4234
  %4272 = vmatprep.subr.bf16.mxu0 0
  %4273 = vmatpush1.bf16.msra.mxu0 %v4235
  %4274 = vmatprep.subr.bf16.mxu0 0
  %4275 = vmatpush1.bf16.msra.mxu0 %v4236
  %4276 = vmatprep.subr.bf16.mxu0 0
  %4277 = vmatpush1.bf16.msra.mxu0 %v4237
  %4278 = vmatprep.subr.bf16.mxu0 0
  %4279 = vmatpush1.bf16.msra.mxu0 %v4238
  %4280 = vmatprep.subr.bf16.mxu0 0
  %4281 = vmatpush1.bf16.msra.mxu0 %v4239
  %4282 = vmatprep.subr.bf16.mxu0 0
  %4283 = vmatpush1.bf16.msra.mxu0 0
  %4284 = vmatprep.subr.bf16.mxu0 0
  %4285 = vmatpush1.bf16.msra.mxu0 0
  %4286 = vmatprep.subr.bf16.mxu0 0
  %4287 = vmatpush1.bf16.msra.mxu0 0
  %4288 = vmatprep.subr.bf16.mxu0 0
  %4289 = vmatpush1.bf16.msra.mxu0 0
  %4290 = vmatprep.mubr.bf16.mxu0 %v4253
  %4291 = vmatmul.mubr.bf16.gmra.mrb[0].mxu0 %v4073
  %v4292 = vpop.f32.mrb[0].mxu0
  %v4293 = vadd.f32 0.0, %v4292
  %v4294 = vpop.f32.mrb[0].mxu0
  %v4295 = vpop.f32.mrb[0].mxu0
  %v4296 = vadd.f32 0.0, %v4295
  %v4297 = vpop.f32.mrb[0].mxu0
  %4298 = vmatprep.mubr.bf16.mxu0 %v4256
  %4299 = vmatmul.mubr.bf16.gmra.mrb[0].mxu0 %v4074
  %v4300 = vpop.f32.mrb[0].mxu0
  %v4301 = vadd.f32 0.0, %v4300
  %v4302 = vpop.f32.mrb[0].mxu0
  %v4303 = vpop.f32.mrb[0].mxu0
  %v4304 = vadd.f32 0.0, %v4303
  %v4305 = vpop.f32.mrb[0].mxu0
  %4306 = vdwg.mxu0
  %v4331 = vunpack.c.l.b16 %v4128
  %v4332 = vunpack.c.l.b16 %v4129
  %v4333 = vunpack.c.l.b16 %v4130
  %v4334 = vunpack.c.l.b16 %v4131
  %v4335 = vunpack.c.l.b16 %v4132
  %v4336 = vunpack.c.l.b16 %v4133
  %v4337 = vunpack.c.l.b16 %v4134
  %v4338 = vunpack.c.l.b16 %v4135
  %v4339 = vunpack.c.l.b16 %v4136
  %v4340 = vunpack.c.l.b16 %v4137
  %v4341 = vunpack.c.l.b16 %v4138
  %v4342 = vunpack.c.l.b16 %v4139
  %v4343 = vunpack.c.l.b16 %v4140
  %v4344 = vunpack.c.l.b16 %v4141
  %v4345 = vunpack.c.l.b16 %v4142
  %v4346 = vunpack.c.l.b16 %v4143
  %v4347 = vunpack.c.l.b16 %v4144
  %v4348 = vunpack.c.l.b16 %v4145
  %v4349 = vunpack.c.l.b16 %v4146
  %v4350 = vunpack.c.l.b16 %v4147
  %v4351 = vunpack.c.l.b16 %v4148
  %v4352 = vunpack.c.l.b16 %v4149
  %v4353 = vunpack.c.l.b16 %v4150
  %v4354 = vunpack.c.l.b16 %v4151
  %v4355 = vpack.c.b16 %v4332, %v4331
  %v4356 = vpack.c.b16 %v4334, %v4333
  %v4357 = vpack.c.b16 %v4336, %v4335
  %v4358 = vpack.c.b16 %v4338, %v4337
  %v4359 = vpack.c.b16 %v4340, %v4339
  %v4360 = vpack.c.b16 %v4342, %v4341
  %v4361 = vpack.c.b16 %v4344, %v4343
  %v4362 = vpack.c.b16 %v4346, %v4345
  %v4363 = vpack.c.b16 %v4348, %v4347
  %v4364 = vpack.c.b16 %v4350, %v4349
  %v4365 = vpack.c.b16 %v4352, %v4351
  %v4366 = vpack.c.b16 %v4354, %v4353
  %v4380 = vsel %vm613, %v4153, 0
  %v4383 = vsel %vm613, %v4155, 0
  %4385 = vmatprep.subr.bf16.mxu0 0
  %4386 = vmatpush1.bf16.msra.mxu0 %v4355
  %4387 = vmatprep.subr.bf16.mxu0 0
  %4388 = vmatpush1.bf16.msra.mxu0 %v4356
  %4389 = vmatprep.subr.bf16.mxu0 0
  %4390 = vmatpush1.bf16.msra.mxu0 %v4357
  %4391 = vmatprep.subr.bf16.mxu0 0
  %4392 = vmatpush1.bf16.msra.mxu0 %v4358
  %4393 = vmatprep.subr.bf16.mxu0 0
  %4394 = vmatpush1.bf16.msra.mxu0 %v4359
  %4395 = vmatprep.subr.bf16.mxu0 0
  %4396 = vmatpush1.bf16.msra.mxu0 %v4360
  %4397 = vmatprep.subr.bf16.mxu0 0
  %4398 = vmatpush1.bf16.msra.mxu0 %v4361
  %4399 = vmatprep.subr.bf16.mxu0 0
  %4400 = vmatpush1.bf16.msra.mxu0 %v4362
  %4401 = vmatprep.subr.bf16.mxu0 0
  %4402 = vmatpush1.bf16.msra.mxu0 %v4363
  %4403 = vmatprep.subr.bf16.mxu0 0
  %4404 = vmatpush1.bf16.msra.mxu0 %v4364
  %4405 = vmatprep.subr.bf16.mxu0 0
  %4406 = vmatpush1.bf16.msra.mxu0 %v4365
  %4407 = vmatprep.subr.bf16.mxu0 0
  %4408 = vmatpush1.bf16.msra.mxu0 %v4366
  %4409 = vmatprep.subr.bf16.mxu0 0
  %4410 = vmatpush1.bf16.msra.mxu0 0
  %4411 = vmatprep.subr.bf16.mxu0 0
  %4412 = vmatpush1.bf16.msra.mxu0 0
  %4413 = vmatprep.subr.bf16.mxu0 0
  %4414 = vmatpush1.bf16.msra.mxu0 0
  %4415 = vmatprep.subr.bf16.mxu0 0
  %4416 = vmatpush1.bf16.msra.mxu0 0
  %4417 = vmatprep.mubr.bf16.mxu0 %v4380
  %4418 = vmatmul.mubr.bf16.gmra.mrb[0].mxu0 %v4152
  %v4419 = vpop.f32.mrb[0].mxu0
  %v4420 = vadd.f32 %v4293, %v4419
  %v4421 = vpop.f32.mrb[0].mxu0
  %v4422 = vpop.f32.mrb[0].mxu0
  %v4423 = vadd.f32 %v4296, %v4422
  %v4424 = vpop.f32.mrb[0].mxu0
  %4425 = vmatprep.mubr.bf16.mxu0 %v4383
  %4426 = vmatmul.mubr.bf16.gmra.mrb[0].mxu0 %v4154
  %v4427 = vpop.f32.mrb[0].mxu0
  %v4428 = vadd.f32 %v4301, %v4427
  %v4429 = vpop.f32.mrb[0].mxu0
  %v4430 = vpop.f32.mrb[0].mxu0
  %v4431 = vadd.f32 %v4304, %v4430
  %v4432 = vpop.f32.mrb[0].mxu0
  %4433 = vdwg.mxu0
  %v4434 = vld [vmem:[%s57 + $0xc0] sm:$0x1]
  %v4435 = vunpack.c.l.bf16 %v4434
  %v4436 = vlaneseq
  %v4437 = vshrl.u32 %v4436, 7
  %v4438 = vsub.s32 0, %v4437
  %v4439 = vrot.slane %v4435, %v4438
  %v4440 = vadd.f32 %v4420, %v4439
  %v4441 = vadd.f32 %v4423, %v4439
  %v4442 = vadd.f32 %v4428, %v4439
  %v4443 = vadd.f32 %v4431, %v4439
  %v4444 = vmax.f32 %v4440, 0.0
  %v4445 = vmax.f32 %v4441, 0.0
  %v4446 = vmax.f32 %v4442, 0.0
  %v4447 = vmax.f32 %v4443, 0.0
  %v4448 = vpack.c.bf16 %v4445, %v4444
  %v4449 = vpack.c.bf16 %v4447, %v4446
  %4450 = vmatprep.subr.bf16.mxu0 0
  %4451 = vmatpush1.bf16.msra.mxu0 %v4448
  %4452 = vmatprep.subr.bf16.mxu0 0
  %4453 = vmatpush1.bf16.msra.mxu0 %v4449
  %4454 = vmatprep.subr.bf16.mxu0 0
  %4455 = vmatpush1.bf16.msra.mxu0 0
  %4456 = vmatprep.subr.bf16.mxu0 0
  %4457 = vmatpush1.bf16.msra.mxu0 0
  %4458 = vmatprep.subr.bf16.mxu0 0
  %4459 = vmatpush1.bf16.msra.mxu0 0
  %4460 = vmatprep.subr.bf16.mxu0 0
  %4461 = vmatpush1.bf16.msra.mxu0 0
  %4462 = vmatprep.subr.bf16.mxu0 0
  %4463 = vmatpush1.bf16.msra.mxu0 0
  %4464 = vmatprep.subr.bf16.mxu0 0
  %4465 = vmatpush1.bf16.msra.mxu0 0
  %4466 = vmatprep.subr.bf16.mxu0 0
  %4467 = vmatpush1.bf16.msra.mxu0 0
  %4468 = vmatprep.subr.bf16.mxu0 0
  %4469 = vmatpush1.bf16.msra.mxu0 0
  %4470 = vmatprep.subr.bf16.mxu0 0
  %4471 = vmatpush1.bf16.msra.mxu0 0
  %4472 = vmatprep.subr.bf16.mxu0 0
  %4473 = vmatpush1.bf16.msra.mxu0 0
  %4474 = vmatprep.subr.bf16.mxu0 0
  %4475 = vmatpush1.bf16.msra.mxu0 0
  %4476 = vmatprep.subr.bf16.mxu0 0
  %4477 = vmatpush1.bf16.msra.mxu0 0
  %4478 = vmatprep.subr.bf16.mxu0 0
  %4479 = vmatpush1.bf16.msra.mxu0 0
  %4480 = vmatprep.subr.bf16.mxu0 0
  %4481 = vmatpush1.bf16.msra.mxu0 0
  %4482 = vmatprep.mubr.bf16.mxu0 0
  %4483 = vmatmul.mubr.bf16.gmra.mrb[0].mxu0 %v1215
  %v4484 = vpop.f32.mrb[0].mxu0
  %v4485 = vadd.f32 0.0, %v4484
  %v4486 = vpop.f32.mrb[0].mxu0
  %v4487 = vpop.f32.mrb[0].mxu0
  %v4488 = vadd.f32 0.0, %v4487
  %v4489 = vpop.f32.mrb[0].mxu0
  %4490 = vmatprep.mubr.bf16.mxu0 0
  %4491 = vmatmul.mubr.bf16.gmra.mrb[0].mxu0 %v1218
  %v4492 = vpop.f32.mrb[0].mxu0
  %v4493 = vadd.f32 0.0, %v4492
  %v4494 = vpop.f32.mrb[0].mxu0
  %v4495 = vpop.f32.mrb[0].mxu0
  %v4496 = vadd.f32 0.0, %v4495
  %v4497 = vpop.f32.mrb[0].mxu0
  %4498 = vdwg.mxu0
  %v4499 = vld [vmem:[%s59] sm:$0xf]
  %v4500 = vld [vmem:[%s59 + $0x4] sm:$0xf]
  %v4501 = vld [vmem:[%s59 + $0x8] sm:$0xf]
  %v4502 = vld [vmem:[%s59 + $0xc] sm:$0xf]
  %v4503 = vld [vmem:[%s59 + $0x10] sm:$0xf]
  %v4504 = vld [vmem:[%s59 + $0x14] sm:$0xf]
  %v4505 = vld [vmem:[%s59 + $0x18] sm:$0xf]
  %v4506 = vld [vmem:[%s59 + $0x1c] sm:$0xf]
  %v4507 = vpack.c.bf16 %v4488, %v4485
  %v4508 = vpack.c.bf16 %v4496, %v4493
  %v4509 = vld [vmem:[%s59 + $0x20] sm:$0xf]
  %v4510 = vld [vmem:[%s59 + $0x24] sm:$0xf]
  %v4511 = vld [vmem:[%s59 + $0x28] sm:$0xf]
  %v4512 = vld [vmem:[%s59 + $0x2c] sm:$0xf]
  %v4513 = vld [vmem:[%s59 + $0x30] sm:$0xf]
  %v4514 = vld [vmem:[%s59 + $0x34] sm:$0xf]
  %v4515 = vld [vmem:[%s59 + $0x38] sm:$0xf]
  %v4516 = vld [vmem:[%s59 + $0x3c] sm:$0xf]
  %v4525 = vunpack.c.l.b16 %v4509
  %v4526 = vunpack.c.l.b16 %v4510
  %v4527 = vunpack.c.l.b16 %v4511
  %v4528 = vunpack.c.l.b16 %v4512
  %v4529 = vunpack.c.l.b16 %v4513
  %v4530 = vunpack.c.l.b16 %v4514
  %v4531 = vunpack.c.l.b16 %v4515
  %v4532 = vunpack.c.l.b16 %v4516
  %v4533 = vpack.c.b16 %v4526, %v4525
  %v4534 = vpack.c.b16 %v4528, %v4527
  %v4535 = vpack.c.b16 %v4530, %v4529
  %v4536 = vpack.c.b16 %v4532, %v4531
  %v4542 = vsel %vm613, %v4448, 0
  %v4545 = vsel %vm613, %v4449, 0
  %4547 = vmatprep.subr.bf16.mxu0 0
  %4548 = vmatpush1.bf16.msra.mxu0 %v4533
  %4549 = vmatprep.subr.bf16.mxu0 0
  %4550 = vmatpush1.bf16.msra.mxu0 %v4534
  %4551 = vmatprep.subr.bf16.mxu0 0
  %4552 = vmatpush1.bf16.msra.mxu0 %v4535
  %4553 = vmatprep.subr.bf16.mxu0 0
  %4554 = vmatpush1.bf16.msra.mxu0 %v4536
  %4555 = vmatprep.subr.bf16.mxu0 0
  %4556 = vmatpush1.bf16.msra.mxu0 0
  %4557 = vmatprep.subr.bf16.mxu0 0
  %4558 = vmatpush1.bf16.msra.mxu0 0
  %4559 = vmatprep.subr.bf16.mxu0 0
  %4560 = vmatpush1.bf16.msra.mxu0 0
  %4561 = vmatprep.subr.bf16.mxu0 0
  %4562 = vmatpush1.bf16.msra.mxu0 0
  %4563 = vmatprep.subr.bf16.mxu0 0
  %4564 = vmatpush1.bf16.msra.mxu0 0
  %4565 = vmatprep.subr.bf16.mxu0 0
  %4566 = vmatpush1.bf16.msra.mxu0 0
  %4567 = vmatprep.subr.bf16.mxu0 0
  %4568 = vmatpush1.bf16.msra.mxu0 0
  %4569 = vmatprep.subr.bf16.mxu0 0
  %4570 = vmatpush1.bf16.msra.mxu0 0
  %4571 = vmatprep.subr.bf16.mxu0 0
  %4572 = vmatpush1.bf16.msra.mxu0 0
  %4573 = vmatprep.subr.bf16.mxu0 0
  %4574 = vmatpush1.bf16.msra.mxu0 0
  %4575 = vmatprep.subr.bf16.mxu0 0
  %4576 = vmatpush1.bf16.msra.mxu0 0
  %4577 = vmatprep.subr.bf16.mxu0 0
  %4578 = vmatpush1.bf16.msra.mxu0 0
  %4579 = vmatprep.mubr.bf16.mxu0 0
  %4580 = vmatmul.mubr.bf16.gmra.mrb[0].mxu0 %v4542
  %v4581 = vpop.f32.mrb[0].mxu0
  %v4582 = vadd.f32 0.0, %v4581
  %v4583 = vpop.f32.mrb[0].mxu0
  %v4584 = vpop.f32.mrb[0].mxu0
  %v4585 = vadd.f32 0.0, %v4584
  %v4586 = vpop.f32.mrb[0].mxu0
  %4587 = vmatprep.mubr.bf16.mxu0 0
  %4588 = vmatmul.mubr.bf16.gmra.mrb[0].mxu0 %v4545
  %v4589 = vpop.f32.mrb[0].mxu0
  %v4590 = vadd.f32 0.0, %v4589
  %v4591 = vpop.f32.mrb[0].mxu0
  %v4592 = vpop.f32.mrb[0].mxu0
  %v4593 = vadd.f32 0.0, %v4592
  %v4594 = vpop.f32.mrb[0].mxu0
  %4595 = vdwg.mxu0
  %v4604 = vunpack.c.l.b16 %v4499
  %v4605 = vunpack.c.l.b16 %v4500
  %v4606 = vunpack.c.l.b16 %v4501
  %v4607 = vunpack.c.l.b16 %v4502
  %v4608 = vunpack.c.l.b16 %v4503
  %v4609 = vunpack.c.l.b16 %v4504
  %v4610 = vunpack.c.l.b16 %v4505
  %v4611 = vunpack.c.l.b16 %v4506
  %v4612 = vpack.c.b16 %v4605, %v4604
  %v4613 = vpack.c.b16 %v4607, %v4606
  %v4614 = vpack.c.b16 %v4609, %v4608
  %v4615 = vpack.c.b16 %v4611, %v4610
  %v4621 = vsel %vm613, %v4507, 0
  %v4624 = vsel %vm613, %v4508, 0
  %4626 = vmatprep.subr.bf16.mxu0 0
  %4627 = vmatpush1.bf16.msra.mxu0 %v4612
  %4628 = vmatprep.subr.bf16.mxu0 0
  %4629 = vmatpush1.bf16.msra.mxu0 %v4613
  %4630 = vmatprep.subr.bf16.mxu0 0
  %4631 = vmatpush1.bf16.msra.mxu0 %v4614
  %4632 = vmatprep.subr.bf16.mxu0 0
  %4633 = vmatpush1.bf16.msra.mxu0 %v4615
  %4634 = vmatprep.subr.bf16.mxu0 0
  %4635 = vmatpush1.bf16.msra.mxu0 0
  %4636 = vmatprep.subr.bf16.mxu0 0
  %4637 = vmatpush1.bf16.msra.mxu0 0
  %4638 = vmatprep.subr.bf16.mxu0 0
  %4639 = vmatpush1.bf16.msra.mxu0 0
  %4640 = vmatprep.subr.bf16.mxu0 0
  %4641 = vmatpush1.bf16.msra.mxu0 0
  %4642 = vmatprep.subr.bf16.mxu0 0
  %4643 = vmatpush1.bf16.msra.mxu0 0
  %4644 = vmatprep.subr.bf16.mxu0 0
  %4645 = vmatpush1.bf16.msra.mxu0 0
  %4646 = vmatprep.subr.bf16.mxu0 0
  %4647 = vmatpush1.bf16.msra.mxu0 0
  %4648 = vmatprep.subr.bf16.mxu0 0
  %4649 = vmatpush1.bf16.msra.mxu0 0
  %4650 = vmatprep.subr.bf16.mxu0 0
  %4651 = vmatpush1.bf16.msra.mxu0 0
  %4652 = vmatprep.subr.bf16.mxu0 0
  %4653 = vmatpush1.bf16.msra.mxu0 0
  %4654 = vmatprep.subr.bf16.mxu0 0
  %4655 = vmatpush1.bf16.msra.mxu0 0
  %4656 = vmatprep.subr.bf16.mxu0 0
  %4657 = vmatpush1.bf16.msra.mxu0 0
  %4658 = vmatprep.mubr.bf16.mxu0 0
  %4659 = vmatmul.mubr.bf16.gmra.mrb[0].mxu0 %v4621
  %v4660 = vpop.f32.mrb[0].mxu0
  %v4661 = vadd.f32 %v4582, %v4660
  %v4662 = vpop.f32.mrb[0].mxu0
  %v4663 = vpop.f32.mrb[0].mxu0
  %v4664 = vadd.f32 %v4585, %v4663
  %v4665 = vpop.f32.mrb[0].mxu0
  %4666 = vmatprep.mubr.bf16.mxu0 0
  %4667 = vmatmul.mubr.bf16.gmra.mrb[0].mxu0 %v4624
  %v4668 = vpop.f32.mrb[0].mxu0
  %v4669 = vadd.f32 %v4590, %v4668
  %v4670 = vpop.f32.mrb[0].mxu0
  %v4671 = vpop.f32.mrb[0].mxu0
  %v4672 = vadd.f32 %v4593, %v4671
  %v4673 = vpop.f32.mrb[0].mxu0
  %4674 = vdwg.mxu0
  %v4675 = vld [vmem:[%s59 + $0x40] sm:$0x1]
  %v4676 = vunpack.c.l.bf16 %v4675
  %v4677 = vlaneseq
  %v4678 = vshrl.u32 %v4677, 7
  %v4679 = vsub.s32 0, %v4678
  %v4680 = vrot.slane %v4676, %v4679
  %v4681 = vadd.f32 %v4661, %v4680
  %v4682 = vadd.f32 %v4664, %v4680
  %v4683 = vadd.f32 %v4669, %v4680
  %v4684 = vadd.f32 %v4672, %v4680
  %v4685 = vmax.f32 %v4681, 0.0
  %v4686 = vmax.f32 %v4682, 0.0
  %v4687 = vmax.f32 %v4683, 0.0
  %v4688 = vmax.f32 %v4684, 0.0
  %v4689 = vld [vmem:[%s29] sm:$0xf]
  %v4690 = vld [vmem:[%s29 + $0x4] sm:$0xf]
  %v4691 = vld [vmem:[%s29 + $0x8] sm:$0xf]
  %v4692 = vld [vmem:[%s29 + $0xc] sm:$0xf]
  %v4693 = vld [vmem:[%s29 + $0x10] sm:$0xf]
  %v4694 = vld [vmem:[%s29 + $0x14] sm:$0xf]
  %v4695 = vld [vmem:[%s29 + $0x18] sm:$0xf]
  %v4696 = vld [vmem:[%s29 + $0x1c] sm:$0xf]
  %v4697 = vpack.c.bf16 %v4686, %v4685
  %v4698 = vpack.c.bf16 %v4688, %v4687
  %v4707 = vunpack.c.l.b16 %v4689
  %v4708 = vunpack.c.l.b16 %v4690
  %v4709 = vunpack.c.l.b16 %v4691
  %v4710 = vunpack.c.l.b16 %v4692
  %v4711 = vunpack.c.l.b16 %v4693
  %v4712 = vunpack.c.l.b16 %v4694
  %v4713 = vunpack.c.l.b16 %v4695
  %v4714 = vunpack.c.l.b16 %v4696
  %v4715 = vpack.c.b16 %v4708, %v4707
  %v4716 = vpack.c.b16 %v4710, %v4709
  %v4717 = vpack.c.b16 %v4712, %v4711
  %v4718 = vpack.c.b16 %v4714, %v4713
  %v4720 = vsel %vm278, %v4715, 0
  %v4723 = vsel %vm278, %v4716, 0
  %v4726 = vsel %vm278, %v4717, 0
  %v4729 = vsel %vm278, %v4718, 0
  %4731 = vmatprep.subr.bf16.mxu0 0
  %4732 = vmatpush1.bf16.msra.mxu0 %v4697
  %4733 = vmatprep.subr.bf16.mxu0 0
  %4734 = vmatpush1.bf16.msra.mxu0 %v4698
  %4735 = vmatprep.subr.bf16.mxu0 0
  %4736 = vmatpush1.bf16.msra.mxu0 0
  %4737 = vmatprep.subr.bf16.mxu0 0
  %4738 = vmatpush1.bf16.msra.mxu0 0
  %4739 = vmatprep.subr.bf16.mxu0 0
  %4740 = vmatpush1.bf16.msra.mxu0 0
  %4741 = vmatprep.subr.bf16.mxu0 0
  %4742 = vmatpush1.bf16.msra.mxu0 0
  %4743 = vmatprep.subr.bf16.mxu0 0
  %4744 = vmatpush1.bf16.msra.mxu0 0
  %4745 = vmatprep.subr.bf16.mxu0 0
  %4746 = vmatpush1.bf16.msra.mxu0 0
  %4747 = vmatprep.subr.bf16.mxu0 0
  %4748 = vmatpush1.bf16.msra.mxu0 0
  %4749 = vmatprep.subr.bf16.mxu0 0
  %4750 = vmatpush1.bf16.msra.mxu0 0
  %4751 = vmatprep.subr.bf16.mxu0 0
  %4752 = vmatpush1.bf16.msra.mxu0 0
  %4753 = vmatprep.subr.bf16.mxu0 0
  %4754 = vmatpush1.bf16.msra.mxu0 0
  %4755 = vmatprep.subr.bf16.mxu0 0
  %4756 = vmatpush1.bf16.msra.mxu0 0
  %4757 = vmatprep.subr.bf16.mxu0 0
  %4758 = vmatpush1.bf16.msra.mxu0 0
  %4759 = vmatprep.subr.bf16.mxu0 0
  %4760 = vmatpush1.bf16.msra.mxu0 0
  %4761 = vmatprep.subr.bf16.mxu0 0
  %4762 = vmatpush1.bf16.msra.mxu0 0
  %4763 = vmatprep.mubr.bf16.mxu0 0
  %4764 = vmatmul.mubr.bf16.gmra.mrb[0].mxu0 %v4720
  %v4765 = vpop.f32.mrb[0].mxu0
  %v4766 = vadd.f32 0.0, %v4765
  %v4767 = vpop.f32.mrb[0].mxu0
  %v4768 = vpop.f32.mrb[0].mxu0
  %v4769 = vadd.f32 0.0, %v4768
  %v4770 = vpop.f32.mrb[0].mxu0
  %4771 = vmatprep.mubr.bf16.mxu0 0
  %4772 = vmatmul.mubr.bf16.gmra.mrb[0].mxu0 %v4723
  %v4773 = vpop.f32.mrb[0].mxu0
  %v4774 = vadd.f32 0.0, %v4773
  %v4775 = vpop.f32.mrb[0].mxu0
  %v4776 = vpop.f32.mrb[0].mxu0
  %v4777 = vadd.f32 0.0, %v4776
  %v4778 = vpop.f32.mrb[0].mxu0
  %4779 = vmatprep.mubr.bf16.mxu0 0
  %4780 = vmatmul.mubr.bf16.gmra.mrb[0].mxu0 %v4726
  %v4781 = vpop.f32.mrb[0].mxu0
  %v4782 = vadd.f32 0.0, %v4781
  %v4783 = vpop.f32.mrb[0].mxu0
  %v4784 = vpop.f32.mrb[0].mxu0
  %v4785 = vadd.f32 0.0, %v4784
  %v4786 = vpop.f32.mrb[0].mxu0
  %4787 = vmatprep.mubr.bf16.mxu0 0
  %4788 = vmatmul.mubr.bf16.gmra.mrb[0].mxu0 %v4729
  %v4789 = vpop.f32.mrb[0].mxu0
  %v4790 = vadd.f32 0.0, %v4789
  %v4791 = vpop.f32.mrb[0].mxu0
  %v4792 = vpop.f32.mrb[0].mxu0
  %v4793 = vadd.f32 0.0, %v4792
  %v4794 = vpop.f32.mrb[0].mxu0
  %4795 = vdwg.mxu0
  %v4796 = vsel %vm613, %v4766, 0.0
  %v4797 = vsel %vm613, %v4769, 0.0
  %v4798 = vadd.f32 %v4796, %v4797
  %v4799 = vsel %vm613, %v4774, 0.0
  %v4800 = vadd.f32 %v4798, %v4799
  %v4801 = vsel %vm613, %v4777, 0.0
  %v4802 = vadd.f32 %v4800, %v4801
  %v4803 = vsel %vm613, %v4782, 0.0
  %v4804 = vadd.f32 %v4802, %v4803
  %v4805 = vsel %vm613, %v4785, 0.0
  %v4806 = vadd.f32 %v4804, %v4805
  %v4807 = vsel %vm613, %v4790, 0.0
  %v4808 = vadd.f32 %v4806, %v4807
  %v4809 = vsel %vm613, %v4793, 0.0
  %v4810 = vadd.f32 %v4808, %v4809
  %v4811 = vrot.slane %v4810, 4
  %v4812 = vadd.f32 %v4810, %v4811
  %v4813 = vrot.slane %v4812, 2
  %v4814 = vadd.f32 %v4812, %v4813
  %v4815 = vrot.slane %v4814, 1
  %v4816 = vadd.f32 %v4814, %v4815
  %v4817 = vmul.f32 %v4766, %v4766
  %v4818 = vmul.f32 %v4769, %v4769
  %v4819 = vmul.f32 %v4774, %v4774
  %v4820 = vmul.f32 %v4777, %v4777
  %v4821 = vmul.f32 %v4782, %v4782
  %v4822 = vmul.f32 %v4785, %v4785
  %v4823 = vmul.f32 %v4790, %v4790
  %v4824 = vmul.f32 %v4793, %v4793
  %v4825 = vsel %vm613, %v4817, 0.0
  %v4826 = vsel %vm613, %v4818, 0.0
  %v4827 = vadd.f32 %v4825, %v4826
  %v4828 = vsel %vm613, %v4819, 0.0
  %v4829 = vadd.f32 %v4827, %v4828
  %v4830 = vsel %vm613, %v4820, 0.0
  %v4831 = vadd.f32 %v4829, %v4830
  %v4832 = vsel %vm613, %v4821, 0.0
  %v4833 = vadd.f32 %v4831, %v4832
  %v4834 = vsel %vm613, %v4822, 0.0
  %v4835 = vadd.f32 %v4833, %v4834
  %v4836 = vsel %vm613, %v4823, 0.0
  %v4837 = vadd.f32 %v4835, %v4836
  %v4838 = vsel %vm613, %v4824, 0.0
  %v4839 = vadd.f32 %v4837, %v4838
  %v4840 = vrot.slane %v4839, 4
  %v4841 = vadd.f32 %v4839, %v4840
  %v4842 = vrot.slane %v4841, 2
  %v4843 = vadd.f32 %v4841, %v4842
  %v4844 = vrot.slane %v4843, 1
  %v4845 = vadd.f32 %v4843, %v4844
  %v4846 = vmul.f32 %v4816, 0.015625
  %v4847 = vmul.f32 %v4845, 0.015625
  %v4848 = vmul.f32 %v4846, %v4846
  %v4849 = vsub.f32 %v4847, %v4848
  %v4850 = vmax.f32 %v4849, 0.0
  %v4851 = vsub.f32 %v4766, %v4846
  %v4852 = vsub.f32 %v4769, %v4846
  %v4853 = vsub.f32 %v4774, %v4846
  %v4854 = vsub.f32 %v4777, %v4846
  %v4855 = vsub.f32 %v4782, %v4846
  %v4856 = vsub.f32 %v4785, %v4846
  %v4857 = vsub.f32 %v4790, %v4846
  %v4858 = vsub.f32 %v4793, %v4846
  %v4859 = vadd.f32 %v4850, 1e-05
  %v4860 = vrsqrt.pop %v4859
  %v4861 = vmul.f32 %v4851, %v4860
  %v4862 = vmul.f32 %v4852, %v4860
  %v4863 = vmul.f32 %v4853, %v4860
  %v4864 = vmul.f32 %v4854, %v4860
  %v4865 = vmul.f32 %v4855, %v4860
  %v4866 = vmul.f32 %v4856, %v4860
  %v4867 = vmul.f32 %v4857, %v4860
  %v4868 = vmul.f32 %v4858, %v4860
  %4877 = vrot.lane.b32.xlu0 %v1117, 64
  %v4878 = vpop.permute.xlu0 %4877
  %4879 = vrot.lane.b32.xlu0 %v1118, 64
  %v4880 = vpop.permute.xlu0 %4879
  %4881 = vrot.lane.b32.xlu0 %v1119, 64
  %v4882 = vpop.permute.xlu0 %4881
  %4883 = vrot.lane.b32.xlu0 %v1120, 64
  %v4884 = vpop.permute.xlu0 %4883
  %4885 = vrot.lane.b32.xlu0 %v1121, 64
  %v4886 = vpop.permute.xlu0 %4885
  %4887 = vrot.lane.b32.xlu0 %v1122, 64
  %v4888 = vpop.permute.xlu0 %4887
  %4889 = vrot.lane.b32.xlu0 %v1123, 64
  %v4890 = vpop.permute.xlu0 %4889
  %4891 = vrot.lane.b32.xlu0 %v1124, 64
  %v4892 = vpop.permute.xlu0 %4891
  %v4901 = vsel %vm613, %v4861, %v4878
  %v4902 = vsel %vm613, %v4862, %v4880
  %v4903 = vsel %vm613, %v4863, %v4882
  %v4904 = vsel %vm613, %v4864, %v4884
  %v4905 = vsel %vm613, %v4865, %v4886
  %v4906 = vsel %vm613, %v4866, %v4888
  %v4907 = vsel %vm613, %v4867, %v4890
  %v4908 = vsel %vm613, %v4868, %v4892
  %v4909 = vpack.c.bf16 %v4902, %v4901
  %v4910 = vpack.c.bf16 %v4904, %v4903
  %v4911 = vpack.c.bf16 %v4906, %v4905
  %v4912 = vpack.c.bf16 %v4908, %v4907
  %4913 = vmatprep.subr.bf16.mxu0 0
  %4914 = vmatpush1.bf16.msra.mxu0 %v4909
  %4915 = vmatprep.subr.bf16.mxu0 0
  %4916 = vmatpush1.bf16.msra.mxu0 %v4910
  %4917 = vmatprep.subr.bf16.mxu0 0
  %4918 = vmatpush1.bf16.msra.mxu0 %v4911
  %4919 = vmatprep.subr.bf16.mxu0 0
  %4920 = vmatpush1.bf16.msra.mxu0 %v4912
  %4921 = vmatprep.subr.bf16.mxu0 0
  %4922 = vmatpush1.bf16.msra.mxu0 0
  %4923 = vmatprep.subr.bf16.mxu0 0
  %4924 = vmatpush1.bf16.msra.mxu0 0
  %4925 = vmatprep.subr.bf16.mxu0 0
  %4926 = vmatpush1.bf16.msra.mxu0 0
  %4927 = vmatprep.subr.bf16.mxu0 0
  %4928 = vmatpush1.bf16.msra.mxu0 0
  %4929 = vmatprep.subr.bf16.mxu0 0
  %4930 = vmatpush1.bf16.msra.mxu0 0
  %4931 = vmatprep.subr.bf16.mxu0 0
  %4932 = vmatpush1.bf16.msra.mxu0 0
  %4933 = vmatprep.subr.bf16.mxu0 0
  %4934 = vmatpush1.bf16.msra.mxu0 0
  %4935 = vmatprep.subr.bf16.mxu0 0
  %4936 = vmatpush1.bf16.msra.mxu0 0
  %4937 = vmatprep.subr.bf16.mxu0 0
  %4938 = vmatpush1.bf16.msra.mxu0 0
  %4939 = vmatprep.subr.bf16.mxu0 0
  %4940 = vmatpush1.bf16.msra.mxu0 0
  %4941 = vmatprep.subr.bf16.mxu0 0
  %4942 = vmatpush1.bf16.msra.mxu0 0
  %4943 = vmatprep.subr.bf16.mxu0 0
  %4944 = vmatpush1.bf16.msra.mxu0 0
  %4945 = vmatprep.mubr.bf16.mxu0 0
  %4946 = vmatmul.mubr.bf16.gmra.mrb[0].mxu0 %v732
  %v4947 = vpop.f32.mrb[0].mxu0
  %v4948 = vadd.f32 0.0, %v4947
  %v4949 = vpop.f32.mrb[0].mxu0
  %v4950 = vpop.f32.mrb[0].mxu0
  %v4951 = vadd.f32 0.0, %v4950
  %v4952 = vpop.f32.mrb[0].mxu0
  %4953 = vmatprep.mubr.bf16.mxu0 0
  %4954 = vmatmul.mubr.bf16.gmra.mrb[0].mxu0 %v735
  %v4955 = vpop.f32.mrb[0].mxu0
  %v4956 = vadd.f32 0.0, %v4955
  %v4957 = vpop.f32.mrb[0].mxu0
  %v4958 = vpop.f32.mrb[0].mxu0
  %v4959 = vadd.f32 0.0, %v4958
  %v4960 = vpop.f32.mrb[0].mxu0
  %4961 = vmatprep.mubr.bf16.mxu0 0
  %4962 = vmatmul.mubr.bf16.gmra.mrb[0].mxu0 %v738
  %v4963 = vpop.f32.mrb[0].mxu0
  %v4964 = vadd.f32 0.0, %v4963
  %v4965 = vpop.f32.mrb[0].mxu0
  %v4966 = vpop.f32.mrb[0].mxu0
  %v4967 = vadd.f32 0.0, %v4966
  %v4968 = vpop.f32.mrb[0].mxu0
  %4969 = vmatprep.mubr.bf16.mxu0 0
  %4970 = vmatmul.mubr.bf16.gmra.mrb[0].mxu0 %v741
  %v4971 = vpop.f32.mrb[0].mxu0
  %v4972 = vadd.f32 0.0, %v4971
  %v4973 = vpop.f32.mrb[0].mxu0
  %v4974 = vpop.f32.mrb[0].mxu0
  %v4975 = vadd.f32 0.0, %v4974
  %v4976 = vpop.f32.mrb[0].mxu0
  %4977 = vdwg.mxu0
  %v4978 = vld [vmem:[%s61] sm:$0xf]
  %v4979 = vld [vmem:[%s61 + $0x4] sm:$0xf]
  %v4980 = vld [vmem:[%s61 + $0x8] sm:$0xf]
  %v4981 = vld [vmem:[%s61 + $0xc] sm:$0xf]
  %v4982 = vld [vmem:[%s61 + $0x10] sm:$0xf]
  %v4983 = vld [vmem:[%s61 + $0x14] sm:$0xf]
  %v4984 = vld [vmem:[%s61 + $0x18] sm:$0xf]
  %v4985 = vld [vmem:[%s61 + $0x1c] sm:$0xf]
  %v4986 = vld [vmem:[%s61 + $0x20] sm:$0xf]
  %v4987 = vld [vmem:[%s61 + $0x24] sm:$0xf]
  %v4988 = vld [vmem:[%s61 + $0x28] sm:$0xf]
  %v4989 = vld [vmem:[%s61 + $0x2c] sm:$0xf]
  %v4990 = vld [vmem:[%s61 + $0x30] sm:$0xf]
  %v4991 = vld [vmem:[%s61 + $0x34] sm:$0xf]
  %v4992 = vld [vmem:[%s61 + $0x38] sm:$0xf]
  %v4993 = vld [vmem:[%s61 + $0x3c] sm:$0xf]
  %v4994 = vpack.c.bf16 %v4951, %v4948
  %v4995 = vpack.c.bf16 %v4959, %v4956
  %v4996 = vpack.c.bf16 %v4967, %v4964
  %v4997 = vpack.c.bf16 %v4975, %v4972
  %v4998 = vld [vmem:[%s61 + $0x40] sm:$0xf]
  %v4999 = vld [vmem:[%s61 + $0x44] sm:$0xf]
  %v5000 = vld [vmem:[%s61 + $0x48] sm:$0xf]
  %v5001 = vld [vmem:[%s61 + $0x4c] sm:$0xf]
  %v5002 = vld [vmem:[%s61 + $0x50] sm:$0xf]
  %v5003 = vld [vmem:[%s61 + $0x54] sm:$0xf]
  %v5004 = vld [vmem:[%s61 + $0x58] sm:$0xf]
  %v5005 = vld [vmem:[%s61 + $0x5c] sm:$0xf]
  %v5006 = vld [vmem:[%s61 + $0x60] sm:$0xf]
  %v5007 = vld [vmem:[%s61 + $0x64] sm:$0xf]
  %v5008 = vld [vmem:[%s61 + $0x68] sm:$0xf]
  %v5009 = vld [vmem:[%s61 + $0x6c] sm:$0xf]
  %v5010 = vld [vmem:[%s61 + $0x70] sm:$0xf]
  %v5011 = vld [vmem:[%s61 + $0x74] sm:$0xf]
  %v5012 = vld [vmem:[%s61 + $0x78] sm:$0xf]
  %v5013 = vld [vmem:[%s61 + $0x7c] sm:$0xf]
  %v5030 = vunpack.c.l.b16 %v4998
  %v5031 = vunpack.c.l.b16 %v4999
  %v5032 = vunpack.c.l.b16 %v5000
  %v5033 = vunpack.c.l.b16 %v5001
  %v5034 = vunpack.c.l.b16 %v5002
  %v5035 = vunpack.c.l.b16 %v5003
  %v5036 = vunpack.c.l.b16 %v5004
  %v5037 = vunpack.c.l.b16 %v5005
  %v5038 = vunpack.c.l.b16 %v5006
  %v5039 = vunpack.c.l.b16 %v5007
  %v5040 = vunpack.c.l.b16 %v5008
  %v5041 = vunpack.c.l.b16 %v5009
  %v5042 = vunpack.c.l.b16 %v5010
  %v5043 = vunpack.c.l.b16 %v5011
  %v5044 = vunpack.c.l.b16 %v5012
  %v5045 = vunpack.c.l.b16 %v5013
  %v5046 = vpack.c.b16 %v5031, %v5030
  %v5047 = vpack.c.b16 %v5033, %v5032
  %v5048 = vpack.c.b16 %v5035, %v5034
  %v5049 = vpack.c.b16 %v5037, %v5036
  %v5050 = vpack.c.b16 %v5039, %v5038
  %v5051 = vpack.c.b16 %v5041, %v5040
  %v5052 = vpack.c.b16 %v5043, %v5042
  %v5053 = vpack.c.b16 %v5045, %v5044
  %5062 = vmatprep.subr.bf16.mxu0 0
  %5063 = vmatpush1.bf16.msra.mxu0 %v5046
  %5064 = vmatprep.subr.bf16.mxu0 0
  %5065 = vmatpush1.bf16.msra.mxu0 %v5047
  %5066 = vmatprep.subr.bf16.mxu0 0
  %5067 = vmatpush1.bf16.msra.mxu0 %v5048
  %5068 = vmatprep.subr.bf16.mxu0 0
  %5069 = vmatpush1.bf16.msra.mxu0 %v5049
  %5070 = vmatprep.subr.bf16.mxu0 0
  %5071 = vmatpush1.bf16.msra.mxu0 %v5050
  %5072 = vmatprep.subr.bf16.mxu0 0
  %5073 = vmatpush1.bf16.msra.mxu0 %v5051
  %5074 = vmatprep.subr.bf16.mxu0 0
  %5075 = vmatpush1.bf16.msra.mxu0 %v5052
  %5076 = vmatprep.subr.bf16.mxu0 0
  %5077 = vmatpush1.bf16.msra.mxu0 %v5053
  %5078 = vmatprep.subr.bf16.mxu0 0
  %5079 = vmatpush1.bf16.msra.mxu0 0
  %5080 = vmatprep.subr.bf16.mxu0 0
  %5081 = vmatpush1.bf16.msra.mxu0 0
  %5082 = vmatprep.subr.bf16.mxu0 0
  %5083 = vmatpush1.bf16.msra.mxu0 0
  %5084 = vmatprep.subr.bf16.mxu0 0
  %5085 = vmatpush1.bf16.msra.mxu0 0
  %5086 = vmatprep.subr.bf16.mxu0 0
  %5087 = vmatpush1.bf16.msra.mxu0 0
  %5088 = vmatprep.subr.bf16.mxu0 0
  %5089 = vmatpush1.bf16.msra.mxu0 0
  %5090 = vmatprep.subr.bf16.mxu0 0
  %5091 = vmatpush1.bf16.msra.mxu0 0
  %5092 = vmatprep.subr.bf16.mxu0 0
  %5093 = vmatpush1.bf16.msra.mxu0 0
  %5094 = vmatprep.mubr.bf16.mxu0 0
  %5095 = vmatmul.mubr.bf16.gmra.mrb[0].mxu0 %v4909
  %v5096 = vpop.f32.mrb[0].mxu0
  %v5097 = vadd.f32 0.0, %v5096
  %v5098 = vpop.f32.mrb[0].mxu0
  %v5099 = vpop.f32.mrb[0].mxu0
  %v5100 = vadd.f32 0.0, %v5099
  %v5101 = vpop.f32.mrb[0].mxu0
  %5102 = vmatprep.mubr.bf16.mxu0 0
  %5103 = vmatmul.mubr.bf16.gmra.mrb[0].mxu0 %v4910
  %v5104 = vpop.f32.mrb[0].mxu0
  %v5105 = vadd.f32 0.0, %v5104
  %v5106 = vpop.f32.mrb[0].mxu0
  %v5107 = vpop.f32.mrb[0].mxu0
  %v5108 = vadd.f32 0.0, %v5107
  %v5109 = vpop.f32.mrb[0].mxu0
  %5110 = vmatprep.mubr.bf16.mxu0 0
  %5111 = vmatmul.mubr.bf16.gmra.mrb[0].mxu0 %v4911
  %v5112 = vpop.f32.mrb[0].mxu0
  %v5113 = vadd.f32 0.0, %v5112
  %v5114 = vpop.f32.mrb[0].mxu0
  %v5115 = vpop.f32.mrb[0].mxu0
  %v5116 = vadd.f32 0.0, %v5115
  %v5117 = vpop.f32.mrb[0].mxu0
  %5118 = vmatprep.mubr.bf16.mxu0 0
  %5119 = vmatmul.mubr.bf16.gmra.mrb[0].mxu0 %v4912
  %v5120 = vpop.f32.mrb[0].mxu0
  %v5121 = vadd.f32 0.0, %v5120
  %v5122 = vpop.f32.mrb[0].mxu0
  %v5123 = vpop.f32.mrb[0].mxu0
  %v5124 = vadd.f32 0.0, %v5123
  %v5125 = vpop.f32.mrb[0].mxu0
  %5126 = vdwg.mxu0
  %v5143 = vunpack.c.l.b16 %v4978
  %v5144 = vunpack.c.l.b16 %v4979
  %v5145 = vunpack.c.l.b16 %v4980
  %v5146 = vunpack.c.l.b16 %v4981
  %v5147 = vunpack.c.l.b16 %v4982
  %v5148 = vunpack.c.l.b16 %v4983
  %v5149 = vunpack.c.l.b16 %v4984
  %v5150 = vunpack.c.l.b16 %v4985
  %v5151 = vunpack.c.l.b16 %v4986
  %v5152 = vunpack.c.l.b16 %v4987
  %v5153 = vunpack.c.l.b16 %v4988
  %v5154 = vunpack.c.l.b16 %v4989
  %v5155 = vunpack.c.l.b16 %v4990
  %v5156 = vunpack.c.l.b16 %v4991
  %v5157 = vunpack.c.l.b16 %v4992
  %v5158 = vunpack.c.l.b16 %v4993
  %v5159 = vpack.c.b16 %v5144, %v5143
  %v5160 = vpack.c.b16 %v5146, %v5145
  %v5161 = vpack.c.b16 %v5148, %v5147
  %v5162 = vpack.c.b16 %v5150, %v5149
  %v5163 = vpack.c.b16 %v5152, %v5151
  %v5164 = vpack.c.b16 %v5154, %v5153
  %v5165 = vpack.c.b16 %v5156, %v5155
  %v5166 = vpack.c.b16 %v5158, %v5157
  %5175 = vmatprep.subr.bf16.mxu0 0
  %5176 = vmatpush1.bf16.msra.mxu0 %v5159
  %5177 = vmatprep.subr.bf16.mxu0 0
  %5178 = vmatpush1.bf16.msra.mxu0 %v5160
  %5179 = vmatprep.subr.bf16.mxu0 0
  %5180 = vmatpush1.bf16.msra.mxu0 %v5161
  %5181 = vmatprep.subr.bf16.mxu0 0
  %5182 = vmatpush1.bf16.msra.mxu0 %v5162
  %5183 = vmatprep.subr.bf16.mxu0 0
  %5184 = vmatpush1.bf16.msra.mxu0 %v5163
  %5185 = vmatprep.subr.bf16.mxu0 0
  %5186 = vmatpush1.bf16.msra.mxu0 %v5164
  %5187 = vmatprep.subr.bf16.mxu0 0
  %5188 = vmatpush1.bf16.msra.mxu0 %v5165
  %5189 = vmatprep.subr.bf16.mxu0 0
  %5190 = vmatpush1.bf16.msra.mxu0 %v5166
  %5191 = vmatprep.subr.bf16.mxu0 0
  %5192 = vmatpush1.bf16.msra.mxu0 0
  %5193 = vmatprep.subr.bf16.mxu0 0
  %5194 = vmatpush1.bf16.msra.mxu0 0
  %5195 = vmatprep.subr.bf16.mxu0 0
  %5196 = vmatpush1.bf16.msra.mxu0 0
  %5197 = vmatprep.subr.bf16.mxu0 0
  %5198 = vmatpush1.bf16.msra.mxu0 0
  %5199 = vmatprep.subr.bf16.mxu0 0
  %5200 = vmatpush1.bf16.msra.mxu0 0
  %5201 = vmatprep.subr.bf16.mxu0 0
  %5202 = vmatpush1.bf16.msra.mxu0 0
  %5203 = vmatprep.subr.bf16.mxu0 0
  %5204 = vmatpush1.bf16.msra.mxu0 0
  %5205 = vmatprep.subr.bf16.mxu0 0
  %5206 = vmatpush1.bf16.msra.mxu0 0
  %5207 = vmatprep.mubr.bf16.mxu0 0
  %5208 = vmatmul.mubr.bf16.gmra.mrb[0].mxu0 %v4994
  %v5209 = vpop.f32.mrb[0].mxu0
  %v5210 = vadd.f32 %v5097, %v5209
  %v5211 = vpop.f32.mrb[0].mxu0
  %v5212 = vpop.f32.mrb[0].mxu0
  %v5213 = vadd.f32 %v5100, %v5212
  %v5214 = vpop.f32.mrb[0].mxu0
  %5215 = vmatprep.mubr.bf16.mxu0 0
  %5216 = vmatmul.mubr.bf16.gmra.mrb[0].mxu0 %v4995
  %v5217 = vpop.f32.mrb[0].mxu0
  %v5218 = vadd.f32 %v5105, %v5217
  %v5219 = vpop.f32.mrb[0].mxu0
  %v5220 = vpop.f32.mrb[0].mxu0
  %v5221 = vadd.f32 %v5108, %v5220
  %v5222 = vpop.f32.mrb[0].mxu0
  %5223 = vmatprep.mubr.bf16.mxu0 0
  %5224 = vmatmul.mubr.bf16.gmra.mrb[0].mxu0 %v4996
  %v5225 = vpop.f32.mrb[0].mxu0
  %v5226 = vadd.f32 %v5113, %v5225
  %v5227 = vpop.f32.mrb[0].mxu0
  %v5228 = vpop.f32.mrb[0].mxu0
  %v5229 = vadd.f32 %v5116, %v5228
  %v5230 = vpop.f32.mrb[0].mxu0
  %5231 = vmatprep.mubr.bf16.mxu0 0
  %5232 = vmatmul.mubr.bf16.gmra.mrb[0].mxu0 %v4997
  %v5233 = vpop.f32.mrb[0].mxu0
  %v5234 = vadd.f32 %v5121, %v5233
  %v5235 = vpop.f32.mrb[0].mxu0
  %v5236 = vpop.f32.mrb[0].mxu0
  %v5237 = vadd.f32 %v5124, %v5236
  %v5238 = vpop.f32.mrb[0].mxu0
  %5239 = vdwg.mxu0
  %v5240 = vld [vmem:[%s61 + $0x80] sm:$0x1]
  %v5241 = vunpack.c.l.bf16 %v5240
  %v5242 = vlaneseq
  %v5243 = vshrl.u32 %v5242, 7
  %v5244 = vsub.s32 0, %v5243
  %v5245 = vrot.slane %v5241, %v5244
  %v5246 = vadd.f32 %v5210, %v5245
  %v5247 = vadd.f32 %v5213, %v5245
  %v5248 = vadd.f32 %v5218, %v5245
  %v5249 = vadd.f32 %v5221, %v5245
  %v5250 = vadd.f32 %v5226, %v5245
  %v5251 = vadd.f32 %v5229, %v5245
  %v5252 = vadd.f32 %v5234, %v5245
  %v5253 = vadd.f32 %v5237, %v5245
  %v5254 = vmax.f32 %v5246, 0.0
  %v5255 = vmax.f32 %v5247, 0.0
  %v5256 = vmax.f32 %v5248, 0.0
  %v5257 = vmax.f32 %v5249, 0.0
  %v5258 = vmax.f32 %v5250, 0.0
  %v5259 = vmax.f32 %v5251, 0.0
  %v5260 = vmax.f32 %v5252, 0.0
  %v5261 = vmax.f32 %v5253, 0.0
  %v5262 = vpack.c.bf16 %v5255, %v5254
  %v5263 = vpack.c.bf16 %v5257, %v5256
  %v5264 = vpack.c.bf16 %v5259, %v5258
  %v5265 = vpack.c.bf16 %v5261, %v5260
  %v5266 = vld [vmem:[%s9] sm:$0xf]
  %v5267 = vld [vmem:[%s9 + $0x4] sm:$0xf]
  %v5268 = vld [vmem:[%s9 + $0x8] sm:$0xf]
  %v5269 = vld [vmem:[%s9 + $0xc] sm:$0xf]
  %v5274 = vunpack.c.l.b16 %v5266
  %v5275 = vunpack.c.l.b16 %v5267
  %v5276 = vunpack.c.l.b16 %v5268
  %v5277 = vunpack.c.l.b16 %v5269
  %v5278 = vpack.c.b16 %v5275, %v5274
  %v5279 = vpack.c.b16 %v5277, %v5276
  %v5281 = vsel %vm613, %v5278, 0
  %v5284 = vsel %vm613, %v5279, 0
  %5286 = vmatprep.subr.bf16.mxu0 0
  %5287 = vmatpush1.bf16.msra.mxu0 %v5262
  %5288 = vmatprep.subr.bf16.mxu0 0
  %5289 = vmatpush1.bf16.msra.mxu0 %v5263
  %5290 = vmatprep.subr.bf16.mxu0 0
  %5291 = vmatpush1.bf16.msra.mxu0 %v5264
  %5292 = vmatprep.subr.bf16.mxu0 0
  %5293 = vmatpush1.bf16.msra.mxu0 %v5265
  %5294 = vmatprep.subr.bf16.mxu0 0
  %5295 = vmatpush1.bf16.msra.mxu0 0
  %5296 = vmatprep.subr.bf16.mxu0 0
  %5297 = vmatpush1.bf16.msra.mxu0 0
  %5298 = vmatprep.subr.bf16.mxu0 0
  %5299 = vmatpush1.bf16.msra.mxu0 0
  %5300 = vmatprep.subr.bf16.mxu0 0
  %5301 = vmatpush1.bf16.msra.mxu0 0
  %5302 = vmatprep.subr.bf16.mxu0 0
  %5303 = vmatpush1.bf16.msra.mxu0 0
  %5304 = vmatprep.subr.bf16.mxu0 0
  %5305 = vmatpush1.bf16.msra.mxu0 0
  %5306 = vmatprep.subr.bf16.mxu0 0
  %5307 = vmatpush1.bf16.msra.mxu0 0
  %5308 = vmatprep.subr.bf16.mxu0 0
  %5309 = vmatpush1.bf16.msra.mxu0 0
  %5310 = vmatprep.subr.bf16.mxu0 0
  %5311 = vmatpush1.bf16.msra.mxu0 0
  %5312 = vmatprep.subr.bf16.mxu0 0
  %5313 = vmatpush1.bf16.msra.mxu0 0
  %5314 = vmatprep.subr.bf16.mxu0 0
  %5315 = vmatpush1.bf16.msra.mxu0 0
  %5316 = vmatprep.subr.bf16.mxu0 0
  %5317 = vmatpush1.bf16.msra.mxu0 0
  %5318 = vmatprep.mubr.bf16.mxu0 0
  %5319 = vmatmul.mubr.bf16.gmra.mrb[0].mxu0 %v5281
  %v5320 = vpop.f32.mrb[0].mxu0
  %v5321 = vadd.f32 0.0, %v5320
  %v5322 = vpop.f32.mrb[0].mxu0
  %v5323 = vpop.f32.mrb[0].mxu0
  %v5324 = vadd.f32 0.0, %v5323
  %v5325 = vpop.f32.mrb[0].mxu0
  %5326 = vmatprep.mubr.bf16.mxu0 0
  %5327 = vmatmul.mubr.bf16.gmra.mrb[0].mxu0 %v5284
  %v5328 = vpop.f32.mrb[0].mxu0
  %v5329 = vadd.f32 0.0, %v5328
  %v5330 = vpop.f32.mrb[0].mxu0
  %v5331 = vpop.f32.mrb[0].mxu0
  %v5332 = vadd.f32 0.0, %v5331
  %v5333 = vpop.f32.mrb[0].mxu0
  %5334 = vdwg.mxu0
  %v5335 = vld [vmem:[%s63] sm:$0xf]
  %v5336 = vld [vmem:[%s63 + $0x4] sm:$0xf]
  %v5337 = vld [vmem:[%s63 + $0x8] sm:$0xf]
  %v5338 = vld [vmem:[%s63 + $0xc] sm:$0xf]
  %v5339 = vld [vmem:[%s63 + $0x10] sm:$0xf]
  %v5340 = vld [vmem:[%s63 + $0x14] sm:$0xf]
  %v5341 = vld [vmem:[%s63 + $0x18] sm:$0xf]
  %v5342 = vld [vmem:[%s63 + $0x1c] sm:$0xf]
  %v5343 = vpack.c.bf16 %v5324, %v5321
  %v5344 = vpack.c.bf16 %v5332, %v5329
  %v5345 = vld [vmem:[%s63 + $0x20] sm:$0x1]
  %v5346 = vunpack.c.l.bf16 %v5345
  %v5347 = vlaneseq
  %v5348 = vshrl.u32 %v5347, 7
  %v5349 = vsub.s32 0, %v5348
  %v5350 = vrot.slane %v5346, %v5349
  %v5359 = vunpack.c.l.b16 %v5335
  %v5360 = vunpack.c.l.b16 %v5336
  %v5361 = vunpack.c.l.b16 %v5337
  %v5362 = vunpack.c.l.b16 %v5338
  %v5363 = vunpack.c.l.b16 %v5339
  %v5364 = vunpack.c.l.b16 %v5340
  %v5365 = vunpack.c.l.b16 %v5341
  %v5366 = vunpack.c.l.b16 %v5342
  %v5367 = vpack.c.b16 %v5360, %v5359
  %v5368 = vpack.c.b16 %v5362, %v5361
  %v5369 = vpack.c.b16 %v5364, %v5363
  %v5370 = vpack.c.b16 %v5366, %v5365
  %v5376 = vsel %vm613, %v5343, 0
  %v5379 = vsel %vm613, %v5344, 0
  %5381 = vmatprep.subr.bf16.mxu0 0
  %5382 = vmatpush1.bf16.msra.mxu0 %v5367
  %5383 = vmatprep.subr.bf16.mxu0 0
  %5384 = vmatpush1.bf16.msra.mxu0 %v5368
  %5385 = vmatprep.subr.bf16.mxu0 0
  %5386 = vmatpush1.bf16.msra.mxu0 %v5369
  %5387 = vmatprep.subr.bf16.mxu0 0
  %5388 = vmatpush1.bf16.msra.mxu0 %v5370
  %5389 = vmatprep.subr.bf16.mxu0 0
  %5390 = vmatpush1.bf16.msra.mxu0 0
  %5391 = vmatprep.subr.bf16.mxu0 0
  %5392 = vmatpush1.bf16.msra.mxu0 0
  %5393 = vmatprep.subr.bf16.mxu0 0
  %5394 = vmatpush1.bf16.msra.mxu0 0
  %5395 = vmatprep.subr.bf16.mxu0 0
  %5396 = vmatpush1.bf16.msra.mxu0 0
  %5397 = vmatprep.subr.bf16.mxu0 0
  %5398 = vmatpush1.bf16.msra.mxu0 0
  %5399 = vmatprep.subr.bf16.mxu0 0
  %5400 = vmatpush1.bf16.msra.mxu0 0
  %5401 = vmatprep.subr.bf16.mxu0 0
  %5402 = vmatpush1.bf16.msra.mxu0 0
  %5403 = vmatprep.subr.bf16.mxu0 0
  %5404 = vmatpush1.bf16.msra.mxu0 0
  %5405 = vmatprep.subr.bf16.mxu0 0
  %5406 = vmatpush1.bf16.msra.mxu0 0
  %5407 = vmatprep.subr.bf16.mxu0 0
  %5408 = vmatpush1.bf16.msra.mxu0 0
  %5409 = vmatprep.subr.bf16.mxu0 0
  %5410 = vmatpush1.bf16.msra.mxu0 0
  %5411 = vmatprep.subr.bf16.mxu0 0
  %5412 = vmatpush1.bf16.msra.mxu0 0
  %5413 = vmatprep.mubr.bf16.mxu0 0
  %5414 = vmatmul.mubr.bf16.gmra.mrb[0].mxu0 %v5376
  %v5415 = vpop.f32.mrb[0].mxu0
  %v5416 = vadd.f32 %v5350, %v5415
  %v5417 = vpop.f32.mrb[0].mxu0
  %v5418 = vpop.f32.mrb[0].mxu0
  %v5419 = vadd.f32 %v5350, %v5418
  %v5420 = vpop.f32.mrb[0].mxu0
  %5421 = vmatprep.mubr.bf16.mxu0 0
  %5422 = vmatmul.mubr.bf16.gmra.mrb[0].mxu0 %v5379
  %v5423 = vpop.f32.mrb[0].mxu0
  %v5424 = vadd.f32 %v5350, %v5423
  %v5425 = vpop.f32.mrb[0].mxu0
  %v5426 = vpop.f32.mrb[0].mxu0
  %v5427 = vadd.f32 %v5350, %v5426
  %v5428 = vpop.f32.mrb[0].mxu0
  %5429 = vdwg.mxu0
  %v5430 = vmax.f32 %v5416, 0.0
  %v5431 = vmax.f32 %v5419, 0.0
  %v5432 = vmax.f32 %v5424, 0.0
  %v5433 = vmax.f32 %v5427, 0.0
  %v5434 = vld [vmem:[%s65] sm:$0xf]
  %v5435 = vld [vmem:[%s65 + $0x4] sm:$0xf]
  %v5436 = vld [vmem:[%s65 + $0x8] sm:$0xf]
  %v5437 = vld [vmem:[%s65 + $0xc] sm:$0xf]
  %v5438 = vld [vmem:[%s65 + $0x10] sm:$0xf]
  %v5439 = vld [vmem:[%s65 + $0x14] sm:$0xf]
  %v5440 = vld [vmem:[%s65 + $0x18] sm:$0xf]
  %v5441 = vld [vmem:[%s65 + $0x1c] sm:$0xf]
  %v5442 = vpack.c.bf16 %v5431, %v5430
  %v5443 = vpack.c.bf16 %v5433, %v5432
  %v5444 = vld [vmem:[%s65 + $0x20] sm:$0x1]
  %v5445 = vunpack.c.l.bf16 %v5444
  %v5446 = vlaneseq
  %v5447 = vshrl.u32 %v5446, 7
  %v5448 = vsub.s32 0, %v5447
  %v5449 = vrot.slane %v5445, %v5448
  %v5458 = vunpack.c.l.b16 %v5434
  %v5459 = vunpack.c.l.b16 %v5435
  %v5460 = vunpack.c.l.b16 %v5436
  %v5461 = vunpack.c.l.b16 %v5437
  %v5462 = vunpack.c.l.b16 %v5438
  %v5463 = vunpack.c.l.b16 %v5439
  %v5464 = vunpack.c.l.b16 %v5440
  %v5465 = vunpack.c.l.b16 %v5441
  %v5466 = vpack.c.b16 %v5459, %v5458
  %v5467 = vpack.c.b16 %v5461, %v5460
  %v5468 = vpack.c.b16 %v5463, %v5462
  %v5469 = vpack.c.b16 %v5465, %v5464
  %v5475 = vsel %vm613, %v5442, 0
  %v5478 = vsel %vm613, %v5443, 0
  %5480 = vmatprep.subr.bf16.mxu0 0
  %5481 = vmatpush1.bf16.msra.mxu0 %v5466
  %5482 = vmatprep.subr.bf16.mxu0 0
  %5483 = vmatpush1.bf16.msra.mxu0 %v5467
  %5484 = vmatprep.subr.bf16.mxu0 0
  %5485 = vmatpush1.bf16.msra.mxu0 %v5468
  %5486 = vmatprep.subr.bf16.mxu0 0
  %5487 = vmatpush1.bf16.msra.mxu0 %v5469
  %5488 = vmatprep.subr.bf16.mxu0 0
  %5489 = vmatpush1.bf16.msra.mxu0 0
  %5490 = vmatprep.subr.bf16.mxu0 0
  %5491 = vmatpush1.bf16.msra.mxu0 0
  %5492 = vmatprep.subr.bf16.mxu0 0
  %5493 = vmatpush1.bf16.msra.mxu0 0
  %5494 = vmatprep.subr.bf16.mxu0 0
  %5495 = vmatpush1.bf16.msra.mxu0 0
  %5496 = vmatprep.subr.bf16.mxu0 0
  %5497 = vmatpush1.bf16.msra.mxu0 0
  %5498 = vmatprep.subr.bf16.mxu0 0
  %5499 = vmatpush1.bf16.msra.mxu0 0
  %5500 = vmatprep.subr.bf16.mxu0 0
  %5501 = vmatpush1.bf16.msra.mxu0 0
  %5502 = vmatprep.subr.bf16.mxu0 0
  %5503 = vmatpush1.bf16.msra.mxu0 0
  %5504 = vmatprep.subr.bf16.mxu0 0
  %5505 = vmatpush1.bf16.msra.mxu0 0
  %5506 = vmatprep.subr.bf16.mxu0 0
  %5507 = vmatpush1.bf16.msra.mxu0 0
  %5508 = vmatprep.subr.bf16.mxu0 0
  %5509 = vmatpush1.bf16.msra.mxu0 0
  %5510 = vmatprep.subr.bf16.mxu0 0
  %5511 = vmatpush1.bf16.msra.mxu0 0
  %5512 = vmatprep.mubr.bf16.mxu0 0
  %5513 = vmatmul.mubr.bf16.gmra.mrb[0].mxu0 %v5475
  %v5514 = vpop.f32.mrb[0].mxu0
  %v5515 = vadd.f32 %v5449, %v5514
  %v5516 = vpop.f32.mrb[0].mxu0
  %v5517 = vpop.f32.mrb[0].mxu0
  %v5518 = vadd.f32 %v5449, %v5517
  %v5519 = vpop.f32.mrb[0].mxu0
  %5520 = vmatprep.mubr.bf16.mxu0 0
  %5521 = vmatmul.mubr.bf16.gmra.mrb[0].mxu0 %v5478
  %v5522 = vpop.f32.mrb[0].mxu0
  %v5523 = vadd.f32 %v5449, %v5522
  %v5524 = vpop.f32.mrb[0].mxu0
  %v5525 = vpop.f32.mrb[0].mxu0
  %v5526 = vadd.f32 %v5449, %v5525
  %v5527 = vpop.f32.mrb[0].mxu0
  %5528 = vdwg.mxu0
  %vm5529 = vcmask 15360
  %5530 = vst.msk [vmem:[%s67] sm:$0xff] %vm5529, %v5515
  %5531 = vst.msk [vmem:[%s67 + $0x8] sm:$0xff] %vm5529, %v5518
  %5532 = vst.msk [vmem:[%s67 + $0x10] sm:$0xff] %vm5529, %v5523
  %5533 = vst.msk [vmem:[%s67 + $0x18] sm:$0xff] %vm5529, %v5526
  // Predicated region
  $region134: #{tpu_custom_call.1} parent=0 // pred_check
    _
  $region135: #{tpu_custom_call.1} parent=0 // pred_check_branch
    %5535 = sbr.rel (0) target = $region137
  $region136: #{tpu_custom_call.1} parent=0 // pred_region
    _
  $region137: #{tpu_custom_call.1} parent=0 // pred_fallthru
    _
  // Predicated region
  $region138: #{tpu_custom_call.1} parent=0 // pred_check
    _
  $region139: #{tpu_custom_call.1} parent=0 // pred_check_branch
    %5537 = sbr.rel (0) target = $region141
  $region140: #{tpu_custom_call.1} parent=0 // pred_region
    _
  $region141: #{tpu_custom_call.1} parent=0 // pred_fallthru
    _

</llo_original>
